<compile_context>
chip_gen: v5e
topology: v5e:2x2
jax: 0.10.0
libtpu: 0.0.40
codegen_flags: <defaults>
</compile_context>

<pallas_src>
import jax
import jax.numpy as jnp
from jax import lax
from jax.experimental import pallas as pl
from jax.experimental.pallas import tpu as pltpu

BN_EPS = 1e-5


def _conv_stats_kernel(x_ref, w_ref, y_ref, stats_ref, xp_scr, col_scr):
    # x_ref    : (1, H, W, Cin)     input image (NHWC block)
    # w_ref    : (9*Cin, Cout)      conv weights folded over (kh, kw, cin)
    # y_ref    : (1, H, W, Cout)    conv output (pre-BN), f32
    # stats_ref: (1, 2, Cout)       [sum, sum-of-squares] over this image
    # xp_scr   : (H+2, W+2, Cin)    zero-padded input scratch (VMEM)
    # col_scr  : (H, W, 9*Cin)      im2col scratch (VMEM)
    _, H, W, Cin = x_ref.shape
    Cout = w_ref.shape[1]

    # Zero-pad into VMEM (avoids writing/re-reading a padded copy through HBM).
    xp_scr[...] = jnp.zeros_like(xp_scr)
    xp_scr[1:H + 1, 1:W + 1, :] = x_ref[0].astype(jnp.float32)

    # Single im2col pass; tap order (kh, kw, cin) matches the folded weight layout.
    for t, (kh, kw) in enumerate([(a, b) for a in range(3) for b in range(3)]):
        col_scr[:, :, t * Cin:(t + 1) * Cin] = xp_scr[kh:kh + H, kw:kw + W, :]

    # One MXU contraction with K = 9*Cin instead of nine K=Cin matmuls.
    # TODO(synk): cast both matmul operands to bf16 if the surrounding model tolerates it.
    patches = col_scr[...].reshape(H * W, 9 * Cin)
    conv = jnp.dot(patches, w_ref[...], preferred_element_type=jnp.float32)  # (H*W, Cout)

    # Conv bias intentionally omitted: with training-mode BN it is exactly
    # cancelled by the batch-mean subtraction (keep it only for an eval-mode path).

    # Fused partial BN statistics in one traversal of the conv result.
    s = jnp.sum(conv, axis=0, keepdims=True)           # (1, Cout)
    ss = jnp.sum(conv * conv, axis=0, keepdims=True)   # (1, Cout)
    stats_ref[0] = jnp.concatenate([s, ss], axis=0)    # (2, Cout)

    y_ref[0] = conv.reshape(H, W, Cout)


def _bn_relu_pool_kernel(y_ref, scale_ref, shift_ref, o_ref):
    # y_ref     : (1, H, W, Cout)       conv output
    # scale_ref : (1, Cout)             gamma * rsqrt(var + eps)
    # shift_ref : (1, Cout)             beta  - mean * scale
    # o_ref     : (1, H//2, W//2, Cout)
    _, H, W, C = y_ref.shape
    scale = scale_ref[...].reshape(1, 1, C)
    shift = shift_ref[...].reshape(1, 1, C)

    y = y_ref[0] * scale + shift          # BN affine (per-channel broadcast)
    y = jnp.maximum(y, 0.0)               # ReLU

    # 2x2 max pool via last-dim-preserving reshapes (no strided slices).
    y = y.reshape(H // 2, 2, W, C)
    y = jnp.maximum(y[:, 0], y[:, 1])     # (H//2, W, C)
    y = y.reshape(H // 2, W // 2, 2, C)
    y = jnp.maximum(y[:, :, 0], y[:, :, 1])   # (H//2, W//2, C)

    o_ref[0] = y.astype(o_ref.dtype)


@jax.jit
def down_forward(x_nchw, w_oihw, bias, gamma, beta):
    """Pallas implementation of Down.forward. x_nchw: (N, Cin, H, W) -> (N, Cout, H//2, W//2)."""
    del bias  # exactly cancelled by training-mode BatchNorm (see kernel comment)
    N, Cin, H, W = x_nchw.shape
    Cout = w_oihw.shape[0]
    assert H % 2 == 0 and W % 2 == 0

    # Layout glue: NCHW -> NHWC; fold conv weights OIHW -> (kh*kw*cin, Cout).
    # TODO(synk): if adjacent layers are also NHWC Pallas kernels, keep NHWC end-to-end
    # and drop these per-layer transposes.
    x_nhwc = jnp.transpose(x_nchw, (0, 2, 3, 1)).astype(jnp.float32)
    w_folded = jnp.transpose(w_oihw, (2, 3, 1, 0)).reshape(9 * Cin, Cout).astype(jnp.float32)

    # ---- pass 1: conv (single folded-K matmul) + per-image partial BN stats ----
    # TODO(synk): for large spatial dims, add an H-row-tile grid axis (with a 1-row
    # halo) so double-buffered tiles stay within v7x's 64 MiB VMEM budget.
    conv_out, stats = pl.pallas_call(
        _conv_stats_kernel,
        grid_spec=pltpu.PrefetchScalarGridSpec(
            num_scalar_prefetch=0,
            grid=(N,),
            in_specs=[
                pl.BlockSpec((1, H, W, Cin), lambda n: (n, 0, 0, 0)),
                pl.BlockSpec((9 * Cin, Cout), lambda n: (0, 0)),
            ],
            out_specs=[
                pl.BlockSpec((1, H, W, Cout), lambda n: (n, 0, 0, 0)),
                pl.BlockSpec((1, 2, Cout), lambda n: (n, 0, 0)),
            ],
            scratch_shapes=[
                pltpu.VMEM((H + 2, W + 2, Cin), jnp.float32),
                pltpu.VMEM((H, W, 9 * Cin), jnp.float32),
            ],
        ),
        out_shape=(
            jax.ShapeDtypeStruct((N, H, W, Cout), jnp.float32),
            jax.ShapeDtypeStruct((N, 2, Cout), jnp.float32),
        ),
        compiler_params=pltpu.CompilerParams(dimension_semantics=("parallel",)),
    )(x_nhwc, w_folded)

    # ---- wrapper glue: fold global batch statistics into per-channel scale/shift ----
    count = N * H * W
    mean = jnp.sum(stats[:, 0, :], axis=0) / count
    # Biased variance via E[x^2] - mean^2 (kept in f32; cancellation is benign here).
    var = jnp.sum(stats[:, 1, :], axis=0) / count - mean * mean
    inv = lax.rsqrt(var + BN_EPS)
    g = gamma.astype(jnp.float32)
    scale = (g * inv).reshape(1, Cout)
    shift = (beta.astype(jnp.float32) - mean * g * inv).reshape(1, Cout)

    # ---- pass 2: normalize + ReLU + 2x2 max-pool ----
    out_nhwc = pl.pallas_call(
        _bn_relu_pool_kernel,
        grid_spec=pltpu.PrefetchScalarGridSpec(
            num_scalar_prefetch=0,
            grid=(N,),
            in_specs=[
                pl.BlockSpec((1, H, W, Cout), lambda n: (n, 0, 0, 0)),
                pl.BlockSpec((1, Cout), lambda n: (0, 0)),
                pl.BlockSpec((1, Cout), lambda n: (0, 0)),
            ],
            out_specs=pl.BlockSpec((1, H // 2, W // 2, Cout), lambda n: (n, 0, 0, 0)),
        ),
        out_shape=jax.ShapeDtypeStruct((N, H // 2, W // 2, Cout), jnp.float32),
        compiler_params=pltpu.CompilerParams(dimension_semantics=("parallel",)),
    )(conv_out, scale, shift)

    return jnp.transpose(out_nhwc, (0, 3, 1, 2))  # back to NCHW


def down_reference(x_nchw, w_oihw, bias, gamma, beta):
    """Pure-JAX reference mirroring PyTorch semantics (training-mode BN)."""
    conv = lax.conv_general_dilated(
        x_nchw.astype(jnp.float32), w_oihw.astype(jnp.float32),
        window_strides=(1, 1), padding=((1, 1), (1, 1)),
        dimension_numbers=("NCHW", "OIHW", "NCHW"))
    conv = conv + bias.reshape(1, -1, 1, 1)
    mean = jnp.mean(conv, axis=(0, 2, 3), keepdims=True)
    var = jnp.mean((conv - mean) ** 2, axis=(0, 2, 3), keepdims=True)
    y = (conv - mean) * lax.rsqrt(var + BN_EPS)
    y = y * gamma.reshape(1, -1, 1, 1) + beta.reshape(1, -1, 1, 1)
    y = jnp.maximum(y, 0.0)
    N, C, H, W = y.shape
    y = y.reshape(N, C, H // 2, 2, W // 2, 2)
    return jnp.max(y, axis=(3, 5))


if __name__ == "__main__":
    # Small shapes consistent with the module: N=2, Cin=4, Cout=8, 16x16 spatial.
    N, Cin, Cout, H, W = 2, 4, 8, 16, 16
    key = jax.random.PRNGKey(0)
    kx, kw, kb, kg, kbeta = jax.random.split(key, 5)

    x = jax.random.normal(kx, (N, Cin, H, W), jnp.float32)
    # Deterministic synthetic parameters (shapes from Conv2d / BatchNorm2d __init__).
    w = 0.1 * jax.random.normal(kw, (Cout, Cin, 3, 3), jnp.float32)   # conv weight (OIHW)
    b = 0.1 * jax.random.normal(kb, (Cout,), jnp.float32)             # conv bias
    gamma = 1.0 + 0.1 * jax.random.normal(kg, (Cout,), jnp.float32)   # BN weight
    beta = 0.1 * jax.random.normal(kbeta, (Cout,), jnp.float32)       # BN bias

    out = jax.block_until_ready(down_forward(x, w, b, gamma, beta))
    ref = jax.block_until_ready(down_reference(x, w, b, gamma, beta))

    assert out.shape == (N, Cout, H // 2, W // 2), out.shape
    assert jnp.allclose(out, ref, rtol=1e-4, atol=1e-4), "mismatch vs reference"
    print("KERNEL_OK")
</pallas_src>

<mosaic_0001>
module attributes {stable_mosaic.version = 11 : i64} {
  func.func @_conv_stats_kernel(%arg0: i32, %arg1: memref<1x16x16x4xf32, #tpu.memory_space<vmem>>, %arg2: memref<36x8xf32, #tpu.memory_space<vmem>>, %arg3: memref<1x16x16x8xf32, #tpu.memory_space<vmem>>, %arg4: memref<1x2x8xf32, #tpu.memory_space<vmem>>, %arg5: memref<18x18x4xf32, #tpu.memory_space<vmem>>, %arg6: memref<16x16x36xf32, #tpu.memory_space<vmem>>) attributes {dimension_semantics = [#tpu.dimension_semantics<parallel>], iteration_bounds = array<i64: 2>, scalar_prefetch = 0 : i64, scratch_operands = 2 : i64, tpu.core_type = #tpu.core_type<tc>, window_params = [{transform_indices = @transform_0, window_bounds = array<i64: 1, 16, 16, 4>}, {pipeline_mode = #tpu.pipeline_mode<synchronous>, transform_indices = @transform_1, window_bounds = array<i64: 36, 8>}, {transform_indices = @transform_2, window_bounds = array<i64: 1, 16, 16, 8>}, {transform_indices = @transform_3, window_bounds = array<i64: 1, 2, 8>}]} {
    %cst = arith.constant 0.000000e+00 : f32
    %0 = vector.broadcast %cst : f32 to vector<18x18x4xf32>
    %c0 = arith.constant 0 : index
    %c0_0 = arith.constant 0 : index
    %c0_1 = arith.constant 0 : index
    %1 = vector.load %arg5[%c0, %c0_0, %c0_1] : memref<18x18x4xf32, #tpu.memory_space<vmem>>, vector<18x18x4xf32>
    tpu.vector_store %arg5[%c0, %c0_0, %c0_1], %0 {strides = array<i32>} : memref<18x18x4xf32, #tpu.memory_space<vmem>>, vector<18x18x4xf32>,
    %c0_2 = arith.constant 0 : index
    %c0_3 = arith.constant 0 : index
    %c0_4 = arith.constant 0 : index
    %c0_5 = arith.constant 0 : index
    %2 = vector.load %arg1[%c0_2, %c0_3, %c0_4, %c0_5] : memref<1x16x16x4xf32, #tpu.memory_space<vmem>>, vector<1x16x16x4xf32>
    %3 = vector.shape_cast %2 : vector<1x16x16x4xf32> to vector<16x16x4xf32>
    %c1 = arith.constant 1 : index
    %c1_6 = arith.constant 1 : index
    %c0_7 = arith.constant 0 : index
    %4 = vector.load %arg5[%c1, %c1_6, %c0_7] : memref<18x18x4xf32, #tpu.memory_space<vmem>>, vector<16x16x4xf32>
    tpu.vector_store %arg5[%c1, %c1_6, %c0_7], %3 {strides = array<i32>} : memref<18x18x4xf32, #tpu.memory_space<vmem>>, vector<16x16x4xf32>,
    %c0_8 = arith.constant 0 : index
    %c0_9 = arith.constant 0 : index
    %c0_10 = arith.constant 0 : index
    %5 = vector.load %arg5[%c0_8, %c0_9, %c0_10] : memref<18x18x4xf32, #tpu.memory_space<vmem>>, vector<16x16x4xf32>
    %c0_11 = arith.constant 0 : index
    %c0_12 = arith.constant 0 : index
    %c0_13 = arith.constant 0 : index
    %6 = vector.load %arg6[%c0_11, %c0_12, %c0_13] : memref<16x16x36xf32, #tpu.memory_space<vmem>>, vector<16x16x4xf32>
    tpu.vector_store %arg6[%c0_11, %c0_12, %c0_13], %5 {strides = array<i32>} : memref<16x16x36xf32, #tpu.memory_space<vmem>>, vector<16x16x4xf32>,
    %c0_14 = arith.constant 0 : index
    %c1_15 = arith.constant 1 : index
    %c0_16 = arith.constant 0 : index
    %7 = vector.load %arg5[%c0_14, %c1_15, %c0_16] : memref<18x18x4xf32, #tpu.memory_space<vmem>>, vector<16x16x4xf32>
    %c0_17 = arith.constant 0 : index
    %c0_18 = arith.constant 0 : index
    %c4 = arith.constant 4 : index
    %8 = vector.load %arg6[%c0_17, %c0_18, %c4] : memref<16x16x36xf32, #tpu.memory_space<vmem>>, vector<16x16x4xf32>
    tpu.vector_store %arg6[%c0_17, %c0_18, %c4], %7 {strides = array<i32>} : memref<16x16x36xf32, #tpu.memory_space<vmem>>, vector<16x16x4xf32>,
    %c0_19 = arith.constant 0 : index
    %c2 = arith.constant 2 : index
    %c0_20 = arith.constant 0 : index
    %9 = vector.load %arg5[%c0_19, %c2, %c0_20] : memref<18x18x4xf32, #tpu.memory_space<vmem>>, vector<16x16x4xf32>
    %c0_21 = arith.constant 0 : index
    %c0_22 = arith.constant 0 : index
    %c8 = arith.constant 8 : index
    %10 = vector.load %arg6[%c0_21, %c0_22, %c8] : memref<16x16x36xf32, #tpu.memory_space<vmem>>, vector<16x16x4xf32>
    tpu.vector_store %arg6[%c0_21, %c0_22, %c8], %9 {strides = array<i32>} : memref<16x16x36xf32, #tpu.memory_space<vmem>>, vector<16x16x4xf32>,
    %c1_23 = arith.constant 1 : index
    %c0_24 = arith.constant 0 : index
    %c0_25 = arith.constant 0 : index
    %11 = vector.load %arg5[%c1_23, %c0_24, %c0_25] : memref<18x18x4xf32, #tpu.memory_space<vmem>>, vector<16x16x4xf32>
    %c0_26 = arith.constant 0 : index
    %c0_27 = arith.constant 0 : index
    %c12 = arith.constant 12 : index
    %12 = vector.load %arg6[%c0_26, %c0_27, %c12] : memref<16x16x36xf32, #tpu.memory_space<vmem>>, vector<16x16x4xf32>
    tpu.vector_store %arg6[%c0_26, %c0_27, %c12], %11 {strides = array<i32>} : memref<16x16x36xf32, #tpu.memory_space<vmem>>, vector<16x16x4xf32>,
    %c1_28 = arith.constant 1 : index
    %c1_29 = arith.constant 1 : index
    %c0_30 = arith.constant 0 : index
    %13 = vector.load %arg5[%c1_28, %c1_29, %c0_30] : memref<18x18x4xf32, #tpu.memory_space<vmem>>, vector<16x16x4xf32>
    %c0_31 = arith.constant 0 : index
    %c0_32 = arith.constant 0 : index
    %c16 = arith.constant 16 : index
    %14 = vector.load %arg6[%c0_31, %c0_32, %c16] : memref<16x16x36xf32, #tpu.memory_space<vmem>>, vector<16x16x4xf32>
    tpu.vector_store %arg6[%c0_31, %c0_32, %c16], %13 {strides = array<i32>} : memref<16x16x36xf32, #tpu.memory_space<vmem>>, vector<16x16x4xf32>,
    %c1_33 = arith.constant 1 : index
    %c2_34 = arith.constant 2 : index
    %c0_35 = arith.constant 0 : index
    %15 = vector.load %arg5[%c1_33, %c2_34, %c0_35] : memref<18x18x4xf32, #tpu.memory_space<vmem>>, vector<16x16x4xf32>
    %c0_36 = arith.constant 0 : index
    %c0_37 = arith.constant 0 : index
    %c20 = arith.constant 20 : index
    %16 = vector.load %arg6[%c0_36, %c0_37, %c20] : memref<16x16x36xf32, #tpu.memory_space<vmem>>, vector<16x16x4xf32>
    tpu.vector_store %arg6[%c0_36, %c0_37, %c20], %15 {strides = array<i32>} : memref<16x16x36xf32, #tpu.memory_space<vmem>>, vector<16x16x4xf32>,
    %c2_38 = arith.constant 2 : index
    %c0_39 = arith.constant 0 : index
    %c0_40 = arith.constant 0 : index
    %17 = vector.load %arg5[%c2_38, %c0_39, %c0_40] : memref<18x18x4xf32, #tpu.memory_space<vmem>>, vector<16x16x4xf32>
    %c0_41 = arith.constant 0 : index
    %c0_42 = arith.constant 0 : index
    %c24 = arith.constant 24 : index
    %18 = vector.load %arg6[%c0_41, %c0_42, %c24] : memref<16x16x36xf32, #tpu.memory_space<vmem>>, vector<16x16x4xf32>
    tpu.vector_store %arg6[%c0_41, %c0_42, %c24], %17 {strides = array<i32>} : memref<16x16x36xf32, #tpu.memory_space<vmem>>, vector<16x16x4xf32>,
    %c2_43 = arith.constant 2 : index
    %c1_44 = arith.constant 1 : index
    %c0_45 = arith.constant 0 : index
    %19 = vector.load %arg5[%c2_43, %c1_44, %c0_45] : memref<18x18x4xf32, #tpu.memory_space<vmem>>, vector<16x16x4xf32>
    %c0_46 = arith.constant 0 : index
    %c0_47 = arith.constant 0 : index
    %c28 = arith.constant 28 : index
    %20 = vector.load %arg6[%c0_46, %c0_47, %c28] : memref<16x16x36xf32, #tpu.memory_space<vmem>>, vector<16x16x4xf32>
    tpu.vector_store %arg6[%c0_46, %c0_47, %c28], %19 {strides = array<i32>} : memref<16x16x36xf32, #tpu.memory_space<vmem>>, vector<16x16x4xf32>,
    %c2_48 = arith.constant 2 : index
    %c2_49 = arith.constant 2 : index
    %c0_50 = arith.constant 0 : index
    %21 = vector.load %arg5[%c2_48, %c2_49, %c0_50] : memref<18x18x4xf32, #tpu.memory_space<vmem>>, vector<16x16x4xf32>
    %c0_51 = arith.constant 0 : index
    %c0_52 = arith.constant 0 : index
    %c32 = arith.constant 32 : index
    %22 = vector.load %arg6[%c0_51, %c0_52, %c32] : memref<16x16x36xf32, #tpu.memory_space<vmem>>, vector<16x16x4xf32>
    tpu.vector_store %arg6[%c0_51, %c0_52, %c32], %21 {strides = array<i32>} : memref<16x16x36xf32, #tpu.memory_space<vmem>>, vector<16x16x4xf32>,
    %c0_53 = arith.constant 0 : index
    %c0_54 = arith.constant 0 : index
    %c0_55 = arith.constant 0 : index
    %23 = vector.load %arg6[%c0_53, %c0_54, %c0_55] : memref<16x16x36xf32, #tpu.memory_space<vmem>>, vector<16x16x36xf32>
    %24 = vector.shape_cast %23 : vector<16x16x36xf32> to vector<256x36xf32>
    %c0_56 = arith.constant 0 : index
    %c0_57 = arith.constant 0 : index
    %25 = vector.load %arg2[%c0_56, %c0_57] : memref<36x8xf32, #tpu.memory_space<vmem>>, vector<36x8xf32>
    %cst_58 = arith.constant dense<0.000000e+00> : vector<256x8xf32>
    %26 = tpu.matmul %24, %25, %cst_58 {dimension_numbers = #tpu.dot_dimension_numbers<[1], [0], [0], [1], [0, 0, 1, 1], [], []>} : vector<256x36xf32>, vector<36x8xf32>, vector<256x8xf32> -> vector<256x8xf32>
    %cst_59 = arith.constant dense<0.000000e+00> : vector<8xf32>
    %27 = vector.multi_reduction <add>, %26, %cst_59 [0] : vector<256x8xf32> to vector<8xf32>
    %28 = vector.shape_cast %27 : vector<8xf32> to vector<1x8xf32>
    %29 = arith.mulf %26, %26 : vector<256x8xf32>
    %cst_60 = arith.constant dense<0.000000e+00> : vector<8xf32>
    %30 = vector.multi_reduction <add>, %29, %cst_60 [0] : vector<256x8xf32> to vector<8xf32>
    %31 = vector.shape_cast %30 : vector<8xf32> to vector<1x8xf32>
    %32 = tpu.concatenate %28, %31 in 0 : vector<1x8xf32>, vector<1x8xf32> -> vector<2x8xf32>
    %c0_61 = arith.constant 0 : index
    %c0_62 = arith.constant 0 : index
    %c0_63 = arith.constant 0 : index
    %33 = vector.load %arg4[%c0_61, %c0_62, %c0_63] : memref<1x2x8xf32, #tpu.memory_space<vmem>>, vector<1x2x8xf32>
    %34 = vector.shape_cast %33 : vector<1x2x8xf32> to vector<2x8xf32>
    %35 = vector.shape_cast %32 : vector<2x8xf32> to vector<1x2x8xf32>
    tpu.vector_store %arg4[%c0_61, %c0_62, %c0_63], %35 {strides = array<i32>} : memref<1x2x8xf32, #tpu.memory_space<vmem>>, vector<1x2x8xf32>,
    %36 = vector.shape_cast %26 : vector<256x8xf32> to vector<16x16x8xf32>
    %c0_64 = arith.constant 0 : index
    %c0_65 = arith.constant 0 : index
    %c0_66 = arith.constant 0 : index
    %c0_67 = arith.constant 0 : index
    %37 = vector.load %arg3[%c0_64, %c0_65, %c0_66, %c0_67] : memref<1x16x16x8xf32, #tpu.memory_space<vmem>>, vector<1x16x16x8xf32>
    %38 = vector.shape_cast %37 : vector<1x16x16x8xf32> to vector<16x16x8xf32>
    %39 = vector.shape_cast %36 : vector<16x16x8xf32> to vector<1x16x16x8xf32>
    tpu.vector_store %arg3[%c0_64, %c0_65, %c0_66, %c0_67], %39 {strides = array<i32>} : memref<1x16x16x8xf32, #tpu.memory_space<vmem>>, vector<1x16x16x8xf32>,
    return
  }
  func.func @transform_0(%arg0: i32) -> (i32, i32, i32, i32) {
    %c0_i32 = arith.constant 0 : i32
    %c0_i32_0 = arith.constant 0 : i32
    %c0_i32_1 = arith.constant 0 : i32
    %c0_i32_2 = arith.constant 0 : i32
    return %arg0, %c0_i32, %c0_i32_0, %c0_i32_1 : i32, i32, i32, i32
  }
  func.func @transform_1(%arg0: i32) -> (i32, i32) {
    %c0_i32 = arith.constant 0 : i32
    %c0_i32_0 = arith.constant 0 : i32
    %c0_i32_1 = arith.constant 0 : i32
    return %c0_i32, %c0_i32_0 : i32, i32
  }
  func.func @transform_2(%arg0: i32) -> (i32, i32, i32, i32) {
    %c0_i32 = arith.constant 0 : i32
    %c0_i32_0 = arith.constant 0 : i32
    %c0_i32_1 = arith.constant 0 : i32
    %c0_i32_2 = arith.constant 0 : i32
    return %arg0, %c0_i32, %c0_i32_0, %c0_i32_1 : i32, i32, i32, i32
  }
  func.func @transform_3(%arg0: i32) -> (i32, i32, i32) {
    %c0_i32 = arith.constant 0 : i32
    %c0_i32_0 = arith.constant 0 : i32
    %c0_i32_1 = arith.constant 0 : i32
    return %arg0, %c0_i32, %c0_i32_0 : i32, i32, i32
  }
}

module attributes {stable_mosaic.version = 11 : i64} {
  func.func @_bn_relu_pool_kernel(%arg0: i32, %arg1: memref<1x16x16x8xf32, #tpu.memory_space<vmem>>, %arg2: memref<1x8xf32, #tpu.memory_space<vmem>>, %arg3: memref<1x8xf32, #tpu.memory_space<vmem>>, %arg4: memref<1x8x8x8xf32, #tpu.memory_space<vmem>>) attributes {dimension_semantics = [#tpu.dimension_semantics<parallel>], iteration_bounds = array<i64: 2>, scalar_prefetch = 0 : i64, scratch_operands = 0 : i64, tpu.core_type = #tpu.core_type<tc>, window_params = [{transform_indices = @transform_0, window_bounds = array<i64: 1, 16, 16, 8>}, {pipeline_mode = #tpu.pipeline_mode<synchronous>, transform_indices = @transform_1, window_bounds = array<i64: 1, 8>}, {pipeline_mode = #tpu.pipeline_mode<synchronous>, transform_indices = @transform_2, window_bounds = array<i64: 1, 8>}, {transform_indices = @transform_3, window_bounds = array<i64: 1, 8, 8, 8>}]} {
    %c0 = arith.constant 0 : index
    %c0_0 = arith.constant 0 : index
    %0 = vector.load %arg2[%c0, %c0_0] : memref<1x8xf32, #tpu.memory_space<vmem>>, vector<1x8xf32>
    %1 = vector.shape_cast %0 : vector<1x8xf32> to vector<1x1x8xf32>
    %c0_1 = arith.constant 0 : index
    %c0_2 = arith.constant 0 : index
    %2 = vector.load %arg3[%c0_1, %c0_2] : memref<1x8xf32, #tpu.memory_space<vmem>>, vector<1x8xf32>
    %3 = vector.shape_cast %2 : vector<1x8xf32> to vector<1x1x8xf32>
    %c0_3 = arith.constant 0 : index
    %c0_4 = arith.constant 0 : index
    %c0_5 = arith.constant 0 : index
    %c0_6 = arith.constant 0 : index
    %4 = vector.load %arg1[%c0_3, %c0_4, %c0_5, %c0_6] : memref<1x16x16x8xf32, #tpu.memory_space<vmem>>, vector<1x16x16x8xf32>
    %5 = vector.shape_cast %4 : vector<1x16x16x8xf32> to vector<16x16x8xf32>
    %6 = vector.broadcast %1 : vector<1x1x8xf32> to vector<16x16x8xf32>
    %7 = arith.mulf %5, %6 : vector<16x16x8xf32>
    %8 = vector.broadcast %3 : vector<1x1x8xf32> to vector<16x16x8xf32>
    %9 = arith.addf %7, %8 : vector<16x16x8xf32>
    %cst = arith.constant 0.000000e+00 : f32
    %10 = vector.broadcast %cst : f32 to vector<16x16x8xf32>
    %11 = arith.maximumf %9, %10 : vector<16x16x8xf32>
    %12 = vector.shape_cast %11 : vector<16x16x8xf32> to vector<8x2x16x8xf32>
    %13 = vector.extract_strided_slice %12 {offsets = [0, 0, 0, 0], sizes = [8, 1, 16, 8], strides = [1, 1, 1, 1]} : vector<8x2x16x8xf32> to vector<8x1x16x8xf32>
    %14 = vector.shape_cast %13 : vector<8x1x16x8xf32> to vector<8x16x8xf32>
    %15 = vector.extract_strided_slice %12 {offsets = [0, 1, 0, 0], sizes = [8, 1, 16, 8], strides = [1, 1, 1, 1]} : vector<8x2x16x8xf32> to vector<8x1x16x8xf32>
    %16 = vector.shape_cast %15 : vector<8x1x16x8xf32> to vector<8x16x8xf32>
    %17 = arith.maximumf %14, %16 : vector<8x16x8xf32>
    %18 = vector.shape_cast %17 : vector<8x16x8xf32> to vector<8x8x2x8xf32>
    %19 = vector.extract_strided_slice %18 {offsets = [0, 0, 0, 0], sizes = [8, 8, 1, 8], strides = [1, 1, 1, 1]} : vector<8x8x2x8xf32> to vector<8x8x1x8xf32>
    %20 = vector.shape_cast %19 : vector<8x8x1x8xf32> to vector<8x8x8xf32>
    %21 = vector.extract_strided_slice %18 {offsets = [0, 0, 1, 0], sizes = [8, 8, 1, 8], strides = [1, 1, 1, 1]} : vector<8x8x2x8xf32> to vector<8x8x1x8xf32>
    %22 = vector.shape_cast %21 : vector<8x8x1x8xf32> to vector<8x8x8xf32>
    %23 = arith.maximumf %20, %22 : vector<8x8x8xf32>
    %c0_7 = arith.constant 0 : index
    %c0_8 = arith.constant 0 : index
    %c0_9 = arith.constant 0 : index
    %c0_10 = arith.constant 0 : index
    %24 = vector.load %arg4[%c0_7, %c0_8, %c0_9, %c0_10] : memref<1x8x8x8xf32, #tpu.memory_space<vmem>>, vector<1x8x8x8xf32>
    %25 = vector.shape_cast %24 : vector<1x8x8x8xf32> to vector<8x8x8xf32>
    %26 = vector.shape_cast %23 : vector<8x8x8xf32> to vector<1x8x8x8xf32>
    tpu.vector_store %arg4[%c0_7, %c0_8, %c0_9, %c0_10], %26 {strides = array<i32>} : memref<1x8x8x8xf32, #tpu.memory_space<vmem>>, vector<1x8x8x8xf32>,
    return
  }
  func.func @transform_0(%arg0: i32) -> (i32, i32, i32, i32) {
    %c0_i32 = arith.constant 0 : i32
    %c0_i32_0 = arith.constant 0 : i32
    %c0_i32_1 = arith.constant 0 : i32
    %c0_i32_2 = arith.constant 0 : i32
    return %arg0, %c0_i32, %c0_i32_0, %c0_i32_1 : i32, i32, i32, i32
  }
  func.func @transform_1(%arg0: i32) -> (i32, i32) {
    %c0_i32 = arith.constant 0 : i32
    %c0_i32_0 = arith.constant 0 : i32
    %c0_i32_1 = arith.constant 0 : i32
    return %c0_i32, %c0_i32_0 : i32, i32
  }
  func.func @transform_2(%arg0: i32) -> (i32, i32) {
    %c0_i32 = arith.constant 0 : i32
    %c0_i32_0 = arith.constant 0 : i32
    %c0_i32_1 = arith.constant 0 : i32
    return %c0_i32, %c0_i32_0 : i32, i32
  }
  func.func @transform_3(%arg0: i32) -> (i32, i32, i32, i32) {
    %c0_i32 = arith.constant 0 : i32
    %c0_i32_0 = arith.constant 0 : i32
    %c0_i32_1 = arith.constant 0 : i32
    %c0_i32_2 = arith.constant 0 : i32
    return %arg0, %c0_i32, %c0_i32_0, %c0_i32_1 : i32, i32, i32, i32
  }
}

</mosaic_0001>

<llo_original>
// kernel: down_forward.3
$region0: #{down_forward.3}
  #allocation0 [shape = 'u32[]', space=smem, size = 0x4, offset = 0x4, fixed_abs, tag = 'smem constant byte address 0x4 - core index']
  #allocation1 [shape = 'u32[72,128]{1,0:T(1,128)}', space=vmem, size = 0x9000, scoped, tag = 'internal scratch']
  %s0 = inlined_call_operand.vmem [shape: f32[2,16,16,8], index: 0, kind: input, shape index: {}]
  %s1 = inlined_call_operand.vmem [shape: f32[1,8], index: 1, kind: input, shape index: {}]
  %s2 = inlined_call_operand.vmem [shape: f32[1,8], index: 2, kind: input, shape index: {}]
  %s3 = inlined_call_operand.vmem [shape: f32[2,8,8,8], index: 3, kind: output, shape index: {}]
  %s4 = sld [smem:[#allocation0]]
  $region45: #{down_forward.3} parent=0
    _
  %s6 = ssub.s32 1, %s4
  %s7 = scalar_select 0, %s6, %s4
  loop: start=0, step=1, limit=4
  $region2: #{down_forward.3} parent=0 // loop_pre_header
    _
  $region3: #{down_forward.3} parent=0 // loop_header
    %s9 = sphi 0, %s13
    %p10 = scmp.ge.s32.totalorder %s9, 4
    %s19 = sphi 0, %s21
    %s22 = sphi 0, %s19
    %s23 = sphi 0, %s22
    %s39 = sphi 0, %s23
    %s43 = sphi 0, %s43
    %s45 = sphi 0, %s43
    %s46 = sphi 0, %s45
    %s60 = sphi 0, %s46
    %s64 = sphi 0, %s64
    %s66 = sphi 0, %s64
    %s67 = sphi 0, %s66
    %s81 = sphi 0, %s67
    %s87 = sphi 0, %s89
    %s90 = sphi 0, %s87
    %s91 = sphi 0, %s90
    %s107 = sphi 0, %s91
  $region4: #{down_forward.3} parent=0 // loop_header_branch
    %12 = sbr.rel (%p10) target = $region8
  $region5: #{down_forward.3} parent=0 // loop_body
    %s14 = ssub.s32 %s9, 1
    %s15 = ssub.s32 %s9, 2
    %s16 = sadd.s32 %s9, 1
    %s17 = ssub.s32 %s9, %s16
    %p18 = scmp.eq.s32.totalorder %s17, 0
    %s20 = sadd.s32 %s19, 1
    %s21 = scalar_select %p18, %s19, %s20
    %p24 = pneg %p18
    %p25 = scmp.eq.s32.totalorder %s9, 1
    %p26 = por %p24, %p25
    %p27 = scmp.ne.s32.totalorder %s19, %s22
    %p28 = scmp.eq.s32.totalorder %s9, 0
    %p29 = por %p27, %p28
    %p30 = scmp.ne.s32.totalorder %s19, %s22
    %p31 = scmp.eq.s32.totalorder %s14, 1
    %p32 = por %p30, %p31
    %p33 = scmp.ne.s32.totalorder %s22, %s23
    %p34 = scmp.eq.s32.totalorder %s14, 0
    %p35 = por %p33, %p34
    %p36 = scmp.ne.s32.totalorder %s22, %s23
    %p37 = scmp.eq.s32.totalorder %s15, 1
    %p38 = por %p36, %p37
    %p40 = scmp.ne.s32.totalorder %s23, %s39
    %p41 = scmp.eq.s32.totalorder %s15, 0
    %p42 = por %p40, %p41
    %s44 = sadd.s32 %s43, 1
    %p47 = scmp.eq.s32.totalorder %s9, 1
    %p48 = scmp.ne.s32.totalorder %s43, %s45
    %p49 = scmp.eq.s32.totalorder %s9, 0
    %p50 = por %p48, %p49
    %p51 = scmp.ne.s32.totalorder %s43, %s45
    %p52 = scmp.eq.s32.totalorder %s14, 1
    %p53 = por %p51, %p52
    %p54 = scmp.ne.s32.totalorder %s45, %s46
    %p55 = scmp.eq.s32.totalorder %s14, 0
    %p56 = por %p54, %p55
    %p57 = scmp.ne.s32.totalorder %s45, %s46
    %p58 = scmp.eq.s32.totalorder %s15, 1
    %p59 = por %p57, %p58
    %p61 = scmp.ne.s32.totalorder %s46, %s60
    %p62 = scmp.eq.s32.totalorder %s15, 0
    %p63 = por %p61, %p62
    %s65 = sadd.s32 %s64, 1
    %p68 = scmp.eq.s32.totalorder %s9, 1
    %p69 = scmp.ne.s32.totalorder %s64, %s66
    %p70 = scmp.eq.s32.totalorder %s9, 0
    %p71 = por %p69, %p70
    %p72 = scmp.ne.s32.totalorder %s64, %s66
    %p73 = scmp.eq.s32.totalorder %s14, 1
    %p74 = por %p72, %p73
    %p75 = scmp.ne.s32.totalorder %s66, %s67
    %p76 = scmp.eq.s32.totalorder %s14, 0
    %p77 = por %p75, %p76
    %p78 = scmp.ne.s32.totalorder %s66, %s67
    %p79 = scmp.eq.s32.totalorder %s15, 1
    %p80 = por %p78, %p79
    %p82 = scmp.ne.s32.totalorder %s67, %s81
    %p83 = scmp.eq.s32.totalorder %s15, 0
    %p84 = por %p82, %p83
    %s85 = ssub.s32 %s9, %s16
    %p86 = scmp.eq.s32.totalorder %s85, 0
    %s88 = sadd.s32 %s87, 1
    %s89 = scalar_select %p86, %s87, %s88
    %p92 = pneg %p86
    %p93 = scmp.eq.s32.totalorder %s9, 1
    %p94 = por %p92, %p93
    %p95 = scmp.ne.s32.totalorder %s87, %s90
    %p96 = scmp.eq.s32.totalorder %s9, 0
    %p97 = por %p95, %p96
    %p98 = scmp.ne.s32.totalorder %s87, %s90
    %p99 = scmp.eq.s32.totalorder %s14, 1
    %p100 = por %p98, %p99
    %p101 = scmp.ne.s32.totalorder %s90, %s91
    %p102 = scmp.eq.s32.totalorder %s14, 0
    %p103 = por %p101, %p102
    %p104 = scmp.ne.s32.totalorder %s90, %s91
    %p105 = scmp.eq.s32.totalorder %s15, 1
    %p106 = por %p104, %p105
    %p108 = scmp.ne.s32.totalorder %s91, %s107
    %p109 = scmp.eq.s32.totalorder %s15, 0
    %p110 = por %p108, %p109
    %p111 = scmp.le.s32.totalorder 1, %s9
    %p112 = scmp.lt.s32.totalorder %s9, 3
    %p113 = pnand %p111, %p112
    %p114 = pneg %p113
    // Predicated region
    $region9: #{down_forward.3} parent=5 // pred_check
      _
    $region10: #{down_forward.3} parent=5 // pred_check_branch
      %116 = sbr.rel (%p113) target = $region12
    $region11: #{down_forward.3} parent=5 // pred_region
      %s117 = ssub.s32 %s9, 1
      // Predicated region
      $region13: #{down_forward.3} parent=11 // pred_check
        %p118 = pneg %p56
      $region14: #{down_forward.3} parent=11 // pred_check_branch
        %120 = sbr.rel (%p118) target = $region16
      $region15: #{down_forward.3} parent=11 // pred_region
        _
      $region16: #{down_forward.3} parent=11 // pred_fallthru
        _
      // Predicated region
      $region17: #{down_forward.3} parent=11 // pred_check
        %p121 = pneg %p77
      $region18: #{down_forward.3} parent=11 // pred_check_branch
        %123 = sbr.rel (%p121) target = $region20
      $region19: #{down_forward.3} parent=11 // pred_region
        _
      $region20: #{down_forward.3} parent=11 // pred_fallthru
        _
    $region12: #{down_forward.3} parent=5 // pred_fallthru
      _
    %p124 = scmp.lt.s32.totalorder %s9, 2
    // Predicated region
    $region21: #{down_forward.3} parent=5 // pred_check
      %p125 = pneg %p124
    $region22: #{down_forward.3} parent=5 // pred_check_branch
      %127 = sbr.rel (%p125) target = $region24
    $region23: #{down_forward.3} parent=5 // pred_region
      // Predicated region
      $region25: #{down_forward.3} parent=23 // pred_check
        %p128 = pneg %p29
      $region26: #{down_forward.3} parent=23 // pred_check_branch
        %130 = sbr.rel (%p128) target = $region28
      $region27: #{down_forward.3} parent=23 // pred_region
        %p131 = scmp.lt.s32.totalorder %s9, 1
        %s132 = scalar_select %p131, %s9, 1
        %s133 = smul.addr %s132, 32
        %s134 = smul.addr %s133, 8
        %s135 = scalar_lea.vmem %s0, %s134
      $region28: #{down_forward.3} parent=23 // pred_fallthru
        _
    $region24: #{down_forward.3} parent=5 // pred_fallthru
      _
    %p136 = scmp.le.s32.totalorder 1, %s9
    %p137 = scmp.lt.s32.totalorder %s9, 3
    %p138 = pnand %p136, %p137
    %p139 = pneg %p138
    // Predicated region
    $region29: #{down_forward.3} parent=5 // pred_check
      _
    $region30: #{down_forward.3} parent=5 // pred_check_branch
      %141 = sbr.rel (%p138) target = $region32
    $region31: #{down_forward.3} parent=5 // pred_region
      %s142 = ssub.s32 %s9, 1
      %p143 = scmp.lt.s32.totalorder %s14, 1
      %s144 = scalar_select %p143, %s14, 1
      %s145 = smul.addr %s144, 32
      %s146 = smul.addr %s145, 8
      %s147 = scalar_lea.vmem %s0, %s146
      %p148 = pneg %p35
      %p149 = pneg %p32
      %p150 = pneg %p56
      %p151 = pneg %p53
      %p152 = pneg %p77
      %p153 = pneg %p74
      %p154 = pneg %p103
      %p155 = pneg %p100
      %p156 = scmp.lt.s32.totalorder %s14, 1
      %s157 = scalar_select %p156, %s14, 1
      %s158 = smul.addr %s157, 8
      %s159 = smul.addr %s158, 8
      %s160 = scalar_lea.vmem %s3, %s159
      %p161 = scmp.lt.s32.totalorder %s14, 1
      %s162 = scalar_select %p161, %s14, 1
      %s163 = smul.addr %s162, 32
      %s164 = smul.addr %s163, 8
      %s165 = scalar_lea.vmem %s0, %s164
      %p166 = scmp.lt.s32.totalorder %s14, 1
      %s167 = scalar_select %p166, %s14, 1
      %s168 = smul.addr %s167, 8
      %s169 = smul.addr %s168, 8
      %s170 = scalar_lea.vmem %s3, %s169
      %v171 = vld [vmem:[%s1] sm:$0x1]
      %v172 = vld [vmem:[%s2] sm:$0x1]
      %v173 = vld [vmem:[%s165] sm:$0xff]
      %v174 = vld [vmem:[%s165 + $0x8] sm:$0xff]
      %v175 = vld [vmem:[%s165 + $0x10] sm:$0xff]
      %v176 = vld [vmem:[%s165 + $0x18] sm:$0xff]
      %v177 = vld [vmem:[%s165 + $0x20] sm:$0xff]
      %v178 = vld [vmem:[%s165 + $0x28] sm:$0xff]
      %v179 = vld [vmem:[%s165 + $0x30] sm:$0xff]
      %v180 = vld [vmem:[%s165 + $0x38] sm:$0xff]
      %v181 = vld [vmem:[%s165 + $0x40] sm:$0xff]
      %v182 = vld [vmem:[%s165 + $0x48] sm:$0xff]
      %v183 = vld [vmem:[%s165 + $0x50] sm:$0xff]
      %v184 = vld [vmem:[%s165 + $0x58] sm:$0xff]
      %v185 = vld [vmem:[%s165 + $0x60] sm:$0xff]
      %v186 = vld [vmem:[%s165 + $0x68] sm:$0xff]
      %v187 = vld [vmem:[%s165 + $0x70] sm:$0xff]
      %v188 = vld [vmem:[%s165 + $0x78] sm:$0xff]
      %v189 = vld [vmem:[%s165 + $0x80] sm:$0xff]
      %v190 = vld [vmem:[%s165 + $0x88] sm:$0xff]
      %v191 = vld [vmem:[%s165 + $0x90] sm:$0xff]
      %v192 = vld [vmem:[%s165 + $0x98] sm:$0xff]
      %v193 = vld [vmem:[%s165 + $0xa0] sm:$0xff]
      %v194 = vld [vmem:[%s165 + $0xa8] sm:$0xff]
      %v195 = vld [vmem:[%s165 + $0xb0] sm:$0xff]
      %v196 = vld [vmem:[%s165 + $0xb8] sm:$0xff]
      %v197 = vld [vmem:[%s165 + $0xc0] sm:$0xff]
      %v198 = vld [vmem:[%s165 + $0xc8] sm:$0xff]
      %v199 = vld [vmem:[%s165 + $0xd0] sm:$0xff]
      %v200 = vld [vmem:[%s165 + $0xd8] sm:$0xff]
      %v201 = vld [vmem:[%s165 + $0xe0] sm:$0xff]
      %v202 = vld [vmem:[%s165 + $0xe8] sm:$0xff]
      %v203 = vld [vmem:[%s165 + $0xf0] sm:$0xff]
      %v204 = vld [vmem:[%s165 + $0xf8] sm:$0xff]
      %v206 = vperm.slane %v171, 0
      %v208 = vmul.f32 %v173, %v206
      %v209 = vmul.f32 %v174, %v206
      %v210 = vmul.f32 %v175, %v206
      %v211 = vmul.f32 %v176, %v206
      %v212 = vmul.f32 %v177, %v206
      %v213 = vmul.f32 %v178, %v206
      %v214 = vmul.f32 %v179, %v206
      %v215 = vmul.f32 %v180, %v206
      %v216 = vmul.f32 %v181, %v206
      %v217 = vmul.f32 %v182, %v206
      %v218 = vmul.f32 %v183, %v206
      %v219 = vmul.f32 %v184, %v206
      %v220 = vmul.f32 %v185, %v206
      %v221 = vmul.f32 %v186, %v206
      %v222 = vmul.f32 %v187, %v206
      %v223 = vmul.f32 %v188, %v206
      %v224 = vmul.f32 %v189, %v206
      %v225 = vmul.f32 %v190, %v206
      %v226 = vmul.f32 %v191, %v206
      %v227 = vmul.f32 %v192, %v206
      %v228 = vmul.f32 %v193, %v206
      %v229 = vmul.f32 %v194, %v206
      %v230 = vmul.f32 %v195, %v206
      %v231 = vmul.f32 %v196, %v206
      %v232 = vmul.f32 %v197, %v206
      %v233 = vmul.f32 %v198, %v206
      %v234 = vmul.f32 %v199, %v206
      %v235 = vmul.f32 %v200, %v206
      %v236 = vmul.f32 %v201, %v206
      %v237 = vmul.f32 %v202, %v206
      %v238 = vmul.f32 %v203, %v206
      %v239 = vmul.f32 %v204, %v206
      %v241 = vperm.slane %v172, 0
      %v243 = vadd.f32 %v208, %v241
      %v244 = vadd.f32 %v209, %v241
      %v245 = vadd.f32 %v210, %v241
      %v246 = vadd.f32 %v211, %v241
      %v247 = vadd.f32 %v212, %v241
      %v248 = vadd.f32 %v213, %v241
      %v249 = vadd.f32 %v214, %v241
      %v250 = vadd.f32 %v215, %v241
      %v251 = vadd.f32 %v216, %v241
      %v252 = vadd.f32 %v217, %v241
      %v253 = vadd.f32 %v218, %v241
      %v254 = vadd.f32 %v219, %v241
      %v255 = vadd.f32 %v220, %v241
      %v256 = vadd.f32 %v221, %v241
      %v257 = vadd.f32 %v222, %v241
      %v258 = vadd.f32 %v223, %v241
      %v259 = vadd.f32 %v224, %v241
      %v260 = vadd.f32 %v225, %v241
      %v261 = vadd.f32 %v226, %v241
      %v262 = vadd.f32 %v227, %v241
      %v263 = vadd.f32 %v228, %v241
      %v264 = vadd.f32 %v229, %v241
      %v265 = vadd.f32 %v230, %v241
      %v266 = vadd.f32 %v231, %v241
      %v267 = vadd.f32 %v232, %v241
      %v268 = vadd.f32 %v233, %v241
      %v269 = vadd.f32 %v234, %v241
      %v270 = vadd.f32 %v235, %v241
      %v271 = vadd.f32 %v236, %v241
      %v272 = vadd.f32 %v237, %v241
      %v273 = vadd.f32 %v238, %v241
      %v274 = vadd.f32 %v239, %v241
      %v275 = vmax.f32 %v243, 0.0
      %v276 = vmax.f32 %v244, 0.0
      %v277 = vmax.f32 %v245, 0.0
      %v278 = vmax.f32 %v246, 0.0
      %v279 = vmax.f32 %v247, 0.0
      %v280 = vmax.f32 %v248, 0.0
      %v281 = vmax.f32 %v249, 0.0
      %v282 = vmax.f32 %v250, 0.0
      %v283 = vmax.f32 %v251, 0.0
      %v284 = vmax.f32 %v252, 0.0
      %v285 = vmax.f32 %v253, 0.0
      %v286 = vmax.f32 %v254, 0.0
      %v287 = vmax.f32 %v255, 0.0
      %v288 = vmax.f32 %v256, 0.0
      %v289 = vmax.f32 %v257, 0.0
      %v290 = vmax.f32 %v258, 0.0
      %v291 = vmax.f32 %v259, 0.0
      %v292 = vmax.f32 %v260, 0.0
      %v293 = vmax.f32 %v261, 0.0
      %v294 = vmax.f32 %v262, 0.0
      %v295 = vmax.f32 %v263, 0.0
      %v296 = vmax.f32 %v264, 0.0
      %v297 = vmax.f32 %v265, 0.0
      %v298 = vmax.f32 %v266, 0.0
      %v299 = vmax.f32 %v267, 0.0
      %v300 = vmax.f32 %v268, 0.0
      %v301 = vmax.f32 %v269, 0.0
      %v302 = vmax.f32 %v270, 0.0
      %v303 = vmax.f32 %v271, 0.0
      %v304 = vmax.f32 %v272, 0.0
      %v305 = vmax.f32 %v273, 0.0
      %v306 = vmax.f32 %v274, 0.0
      %v307 = vmax.f32 %v275, %v277
      %v308 = vmax.f32 %v276, %v278
      %v309 = vmax.f32 %v279, %v281
      %v310 = vmax.f32 %v280, %v282
      %v311 = vmax.f32 %v283, %v285
      %v312 = vmax.f32 %v284, %v286
      %v313 = vmax.f32 %v287, %v289
      %v314 = vmax.f32 %v288, %v290
      %v315 = vmax.f32 %v291, %v293
      %v316 = vmax.f32 %v292, %v294
      %v317 = vmax.f32 %v295, %v297
      %v318 = vmax.f32 %v296, %v298
      %v319 = vmax.f32 %v299, %v301
      %v320 = vmax.f32 %v300, %v302
      %v321 = vmax.f32 %v303, %v305
      %v322 = vmax.f32 %v304, %v306
      %v339 = vrot.slane %v307, 2
      %v340 = vrot.slane %v307, 4
      %v341 = vrot.slane %v307, 6
      %v342 = vrot.slane %v308, 2
      %v343 = vrot.slane %v308, 4
      %v344 = vrot.slane %v308, 6
      %v345 = vrot.slane %v309, 2
      %v346 = vrot.slane %v309, 4
      %v347 = vrot.slane %v309, 6
      %v348 = vrot.slane %v310, 2
      %v349 = vrot.slane %v310, 4
      %v350 = vrot.slane %v310, 6
      %v351 = vrot.slane %v311, 2
      %v352 = vrot.slane %v311, 4
      %v353 = vrot.slane %v311, 6
      %v354 = vrot.slane %v312, 2
      %v355 = vrot.slane %v312, 4
      %v356 = vrot.slane %v312, 6
      %v357 = vrot.slane %v313, 2
      %v358 = vrot.slane %v313, 4
      %v359 = vrot.slane %v313, 6
      %v360 = vrot.slane %v314, 2
      %v361 = vrot.slane %v314, 4
      %v362 = vrot.slane %v314, 6
      %v363 = vrot.slane %v315, 2
      %v364 = vrot.slane %v315, 4
      %v365 = vrot.slane %v315, 6
      %v366 = vrot.slane %v316, 2
      %v367 = vrot.slane %v316, 4
      %v368 = vrot.slane %v316, 6
      %v369 = vrot.slane %v317, 2
      %v370 = vrot.slane %v317, 4
      %v371 = vrot.slane %v317, 6
      %v372 = vrot.slane %v318, 2
      %v373 = vrot.slane %v318, 4
      %v374 = vrot.slane %v318, 6
      %v375 = vrot.slane %v319, 2
      %v376 = vrot.slane %v319, 4
      %v377 = vrot.slane %v319, 6
      %v378 = vrot.slane %v320, 2
      %v379 = vrot.slane %v320, 4
      %v380 = vrot.slane %v320, 6
      %v381 = vrot.slane %v321, 2
      %v382 = vrot.slane %v321, 4
      %v383 = vrot.slane %v321, 6
      %v384 = vrot.slane %v322, 2
      %v385 = vrot.slane %v322, 4
      %v386 = vrot.slane %v322, 6
      %v435 = vrot.slane %v307, 7
      %v436 = vrot.slane %v435, 2
      %v437 = vrot.slane %v339, 7
      %v438 = vrot.slane %v437, 2
      %v439 = vrot.slane %v340, 7
      %v440 = vrot.slane %v439, 2
      %v441 = vrot.slane %v341, 7
      %v442 = vrot.slane %v441, 2
      %v443 = vrot.slane %v308, 7
      %v444 = vrot.slane %v443, 2
      %v445 = vrot.slane %v342, 7
      %v446 = vrot.slane %v445, 2
      %v447 = vrot.slane %v343, 7
      %v448 = vrot.slane %v447, 2
      %v449 = vrot.slane %v344, 7
      %v450 = vrot.slane %v449, 2
      %v451 = vrot.slane %v309, 7
      %v452 = vrot.slane %v451, 2
      %v453 = vrot.slane %v345, 7
      %v454 = vrot.slane %v453, 2
      %v455 = vrot.slane %v346, 7
      %v456 = vrot.slane %v455, 2
      %v457 = vrot.slane %v347, 7
      %v458 = vrot.slane %v457, 2
      %v459 = vrot.slane %v310, 7
      %v460 = vrot.slane %v459, 2
      %v461 = vrot.slane %v348, 7
      %v462 = vrot.slane %v461, 2
      %v463 = vrot.slane %v349, 7
      %v464 = vrot.slane %v463, 2
      %v465 = vrot.slane %v350, 7
      %v466 = vrot.slane %v465, 2
      %v467 = vrot.slane %v311, 7
      %v468 = vrot.slane %v467, 2
      %v469 = vrot.slane %v351, 7
      %v470 = vrot.slane %v469, 2
      %v471 = vrot.slane %v352, 7
      %v472 = vrot.slane %v471, 2
      %v473 = vrot.slane %v353, 7
      %v474 = vrot.slane %v473, 2
      %v475 = vrot.slane %v312, 7
      %v476 = vrot.slane %v475, 2
      %v477 = vrot.slane %v354, 7
      %v478 = vrot.slane %v477, 2
      %v479 = vrot.slane %v355, 7
      %v480 = vrot.slane %v479, 2
      %v481 = vrot.slane %v356, 7
      %v482 = vrot.slane %v481, 2
      %v483 = vrot.slane %v313, 7
      %v484 = vrot.slane %v483, 2
      %v485 = vrot.slane %v357, 7
      %v486 = vrot.slane %v485, 2
      %v487 = vrot.slane %v358, 7
      %v488 = vrot.slane %v487, 2
      %v489 = vrot.slane %v359, 7
      %v490 = vrot.slane %v489, 2
      %v491 = vrot.slane %v314, 7
      %v492 = vrot.slane %v491, 2
      %v493 = vrot.slane %v360, 7
      %v494 = vrot.slane %v493, 2
      %v495 = vrot.slane %v361, 7
      %v496 = vrot.slane %v495, 2
      %v497 = vrot.slane %v362, 7
      %v498 = vrot.slane %v497, 2
      %v499 = vrot.slane %v315, 7
      %v500 = vrot.slane %v499, 2
      %v501 = vrot.slane %v363, 7
      %v502 = vrot.slane %v501, 2
      %v503 = vrot.slane %v364, 7
      %v504 = vrot.slane %v503, 2
      %v505 = vrot.slane %v365, 7
      %v506 = vrot.slane %v505, 2
      %v507 = vrot.slane %v316, 7
      %v508 = vrot.slane %v507, 2
      %v509 = vrot.slane %v366, 7
      %v510 = vrot.slane %v509, 2
      %v511 = vrot.slane %v367, 7
      %v512 = vrot.slane %v511, 2
      %v513 = vrot.slane %v368, 7
      %v514 = vrot.slane %v513, 2
      %v515 = vrot.slane %v317, 7
      %v516 = vrot.slane %v515, 2
      %v517 = vrot.slane %v369, 7
      %v518 = vrot.slane %v517, 2
      %v519 = vrot.slane %v370, 7
      %v520 = vrot.slane %v519, 2
      %v521 = vrot.slane %v371, 7
      %v522 = vrot.slane %v521, 2
      %v523 = vrot.slane %v318, 7
      %v524 = vrot.slane %v523, 2
      %v525 = vrot.slane %v372, 7
      %v526 = vrot.slane %v525, 2
      %v527 = vrot.slane %v373, 7
      %v528 = vrot.slane %v527, 2
      %v529 = vrot.slane %v374, 7
      %v530 = vrot.slane %v529, 2
      %v531 = vrot.slane %v319, 7
      %v532 = vrot.slane %v531, 2
      %v533 = vrot.slane %v375, 7
      %v534 = vrot.slane %v533, 2
      %v535 = vrot.slane %v376, 7
      %v536 = vrot.slane %v535, 2
      %v537 = vrot.slane %v377, 7
      %v538 = vrot.slane %v537, 2
      %v539 = vrot.slane %v320, 7
      %v540 = vrot.slane %v539, 2
      %v541 = vrot.slane %v378, 7
      %v542 = vrot.slane %v541, 2
      %v543 = vrot.slane %v379, 7
      %v544 = vrot.slane %v543, 2
      %v545 = vrot.slane %v380, 7
      %v546 = vrot.slane %v545, 2
      %v547 = vrot.slane %v321, 7
      %v548 = vrot.slane %v547, 2
      %v549 = vrot.slane %v381, 7
      %v550 = vrot.slane %v549, 2
      %v551 = vrot.slane %v382, 7
      %v552 = vrot.slane %v551, 2
      %v553 = vrot.slane %v383, 7
      %v554 = vrot.slane %v553, 2
      %v555 = vrot.slane %v322, 7
      %v556 = vrot.slane %v555, 2
      %v557 = vrot.slane %v384, 7
      %v558 = vrot.slane %v557, 2
      %v559 = vrot.slane %v385, 7
      %v560 = vrot.slane %v559, 2
      %v561 = vrot.slane %v386, 7
      %v562 = vrot.slane %v561, 2
      %v627 = vmax.f32 %v307, %v436
      %v628 = vmax.f32 %v339, %v438
      %v629 = vmax.f32 %v340, %v440
      %v630 = vmax.f32 %v341, %v442
      %v631 = vmax.f32 %v308, %v444
      %v632 = vmax.f32 %v342, %v446
      %v633 = vmax.f32 %v343, %v448
      %v634 = vmax.f32 %v344, %v450
      %v635 = vmax.f32 %v309, %v452
      %v636 = vmax.f32 %v345, %v454
      %v637 = vmax.f32 %v346, %v456
      %v638 = vmax.f32 %v347, %v458
      %v639 = vmax.f32 %v310, %v460
      %v640 = vmax.f32 %v348, %v462
      %v641 = vmax.f32 %v349, %v464
      %v642 = vmax.f32 %v350, %v466
      %v643 = vmax.f32 %v311, %v468
      %v644 = vmax.f32 %v351, %v470
      %v645 = vmax.f32 %v352, %v472
      %v646 = vmax.f32 %v353, %v474
      %v647 = vmax.f32 %v312, %v476
      %v648 = vmax.f32 %v354, %v478
      %v649 = vmax.f32 %v355, %v480
      %v650 = vmax.f32 %v356, %v482
      %v651 = vmax.f32 %v313, %v484
      %v652 = vmax.f32 %v357, %v486
      %v653 = vmax.f32 %v358, %v488
      %v654 = vmax.f32 %v359, %v490
      %v655 = vmax.f32 %v314, %v492
      %v656 = vmax.f32 %v360, %v494
      %v657 = vmax.f32 %v361, %v496
      %v658 = vmax.f32 %v362, %v498
      %v659 = vmax.f32 %v315, %v500
      %v660 = vmax.f32 %v363, %v502
      %v661 = vmax.f32 %v364, %v504
      %v662 = vmax.f32 %v365, %v506
      %v663 = vmax.f32 %v316, %v508
      %v664 = vmax.f32 %v366, %v510
      %v665 = vmax.f32 %v367, %v512
      %v666 = vmax.f32 %v368, %v514
      %v667 = vmax.f32 %v317, %v516
      %v668 = vmax.f32 %v369, %v518
      %v669 = vmax.f32 %v370, %v520
      %v670 = vmax.f32 %v371, %v522
      %v671 = vmax.f32 %v318, %v524
      %v672 = vmax.f32 %v372, %v526
      %v673 = vmax.f32 %v373, %v528
      %v674 = vmax.f32 %v374, %v530
      %v675 = vmax.f32 %v319, %v532
      %v676 = vmax.f32 %v375, %v534
      %v677 = vmax.f32 %v376, %v536
      %v678 = vmax.f32 %v377, %v538
      %v679 = vmax.f32 %v320, %v540
      %v680 = vmax.f32 %v378, %v542
      %v681 = vmax.f32 %v379, %v544
      %v682 = vmax.f32 %v380, %v546
      %v683 = vmax.f32 %v321, %v548
      %v684 = vmax.f32 %v381, %v550
      %v685 = vmax.f32 %v382, %v552
      %v686 = vmax.f32 %v383, %v554
      %v687 = vmax.f32 %v322, %v556
      %v688 = vmax.f32 %v384, %v558
      %v689 = vmax.f32 %v385, %v560
      %v690 = vmax.f32 %v386, %v562
      %v755 = vperm.slane %v627, 0
      %v756 = vperm.slane %v628, 0
      %v757 = vperm.slane %v629, 0
      %v758 = vperm.slane %v630, 0
      %v759 = vperm.slane %v631, 0
      %v760 = vperm.slane %v632, 0
      %v761 = vperm.slane %v633, 0
      %v762 = vperm.slane %v634, 0
      %v763 = vperm.slane %v635, 0
      %v764 = vperm.slane %v636, 0
      %v765 = vperm.slane %v637, 0
      %v766 = vperm.slane %v638, 0
      %v767 = vperm.slane %v639, 0
      %v768 = vperm.slane %v640, 0
      %v769 = vperm.slane %v641, 0
      %v770 = vperm.slane %v642, 0
      %v771 = vperm.slane %v643, 0
      %v772 = vperm.slane %v644, 0
      %v773 = vperm.slane %v645, 0
      %v774 = vperm.slane %v646, 0
      %v775 = vperm.slane %v647, 0
      %v776 = vperm.slane %v648, 0
      %v777 = vperm.slane %v649, 0
      %v778 = vperm.slane %v650, 0
      %v779 = vperm.slane %v651, 0
      %v780 = vperm.slane %v652, 0
      %v781 = vperm.slane %v653, 0
      %v782 = vperm.slane %v654, 0
      %v783 = vperm.slane %v655, 0
      %v784 = vperm.slane %v656, 0
      %v785 = vperm.slane %v657, 0
      %v786 = vperm.slane %v658, 0
      %v787 = vperm.slane %v659, 0
      %v788 = vperm.slane %v660, 0
      %v789 = vperm.slane %v661, 0
      %v790 = vperm.slane %v662, 0
      %v791 = vperm.slane %v663, 0
      %v792 = vperm.slane %v664, 0
      %v793 = vperm.slane %v665, 0
      %v794 = vperm.slane %v666, 0
      %v795 = vperm.slane %v667, 0
      %v796 = vperm.slane %v668, 0
      %v797 = vperm.slane %v669, 0
      %v798 = vperm.slane %v670, 0
      %v799 = vperm.slane %v671, 0
      %v800 = vperm.slane %v672, 0
      %v801 = vperm.slane %v673, 0
      %v802 = vperm.slane %v674, 0
      %v803 = vperm.slane %v675, 0
      %v804 = vperm.slane %v676, 0
      %v805 = vperm.slane %v677, 0
      %v806 = vperm.slane %v678, 0
      %v807 = vperm.slane %v679, 0
      %v808 = vperm.slane %v680, 0
      %v809 = vperm.slane %v681, 0
      %v810 = vperm.slane %v682, 0
      %v811 = vperm.slane %v683, 0
      %v812 = vperm.slane %v684, 0
      %v813 = vperm.slane %v685, 0
      %v814 = vperm.slane %v686, 0
      %v815 = vperm.slane %v687, 0
      %v816 = vperm.slane %v688, 0
      %v817 = vperm.slane %v689, 0
      %v818 = vperm.slane %v690, 0
      %vm819 = vcmask 1041409
      %v820 = vsel %vm819, %v756, %v755
      %vm821 = vcmask 1042434
      %v822 = vsel %vm821, %v757, %v820
      %vm823 = vcmask 1043459
      %v824 = vsel %vm823, %v758, %v822
      %vm825 = vcmask 1044484
      %v826 = vsel %vm825, %v759, %v824
      %vm827 = vcmask 1045509
      %v828 = vsel %vm827, %v760, %v826
      %vm829 = vcmask 1046534
      %v830 = vsel %vm829, %v761, %v828
      %vm831 = vcmask 1047559
      %v832 = vsel %vm831, %v762, %v830
      %v833 = vsel %vm819, %v764, %v763
      %v834 = vsel %vm821, %v765, %v833
      %v835 = vsel %vm823, %v766, %v834
      %v836 = vsel %vm825, %v767, %v835
      %v837 = vsel %vm827, %v768, %v836
      %v838 = vsel %vm829, %v769, %v837
      %v839 = vsel %vm831, %v770, %v838
      %v840 = vsel %vm819, %v772, %v771
      %v841 = vsel %vm821, %v773, %v840
      %v842 = vsel %vm823, %v774, %v841
      %v843 = vsel %vm825, %v775, %v842
      %v844 = vsel %vm827, %v776, %v843
      %v845 = vsel %vm829, %v777, %v844
      %v846 = vsel %vm831, %v778, %v845
      %v847 = vsel %vm819, %v780, %v779
      %v848 = vsel %vm821, %v781, %v847
      %v849 = vsel %vm823, %v782, %v848
      %v850 = vsel %vm825, %v783, %v849
      %v851 = vsel %vm827, %v784, %v850
      %v852 = vsel %vm829, %v785, %v851
      %v853 = vsel %vm831, %v786, %v852
      %v854 = vsel %vm819, %v788, %v787
      %v855 = vsel %vm821, %v789, %v854
      %v856 = vsel %vm823, %v790, %v855
      %v857 = vsel %vm825, %v791, %v856
      %v858 = vsel %vm827, %v792, %v857
      %v859 = vsel %vm829, %v793, %v858
      %v860 = vsel %vm831, %v794, %v859
      %v861 = vsel %vm819, %v796, %v795
      %v862 = vsel %vm821, %v797, %v861
      %v863 = vsel %vm823, %v798, %v862
      %v864 = vsel %vm825, %v799, %v863
      %v865 = vsel %vm827, %v800, %v864
      %v866 = vsel %vm829, %v801, %v865
      %v867 = vsel %vm831, %v802, %v866
      %v868 = vsel %vm819, %v804, %v803
      %v869 = vsel %vm821, %v805, %v868
      %v870 = vsel %vm823, %v806, %v869
      %v871 = vsel %vm825, %v807, %v870
      %v872 = vsel %vm827, %v808, %v871
      %v873 = vsel %vm829, %v809, %v872
      %v874 = vsel %vm831, %v810, %v873
      %v875 = vsel %vm819, %v812, %v811
      %v876 = vsel %vm821, %v813, %v875
      %v877 = vsel %vm823, %v814, %v876
      %v878 = vsel %vm825, %v815, %v877
      %v879 = vsel %vm827, %v816, %v878
      %v880 = vsel %vm829, %v817, %v879
      %v881 = vsel %vm831, %v818, %v880
      %vm890 = vcmask 64512
      %891 = vst.msk [vmem:[%s170] sm:$0xff] %vm890, %v832
      %892 = vst.msk [vmem:[%s170 + $0x8] sm:$0xff] %vm890, %v839
      %893 = vst.msk [vmem:[%s170 + $0x10] sm:$0xff] %vm890, %v846
      %894 = vst.msk [vmem:[%s170 + $0x18] sm:$0xff] %vm890, %v853
      %895 = vst.msk [vmem:[%s170 + $0x20] sm:$0xff] %vm890, %v860
      %896 = vst.msk [vmem:[%s170 + $0x28] sm:$0xff] %vm890, %v867
      %897 = vst.msk [vmem:[%s170 + $0x30] sm:$0xff] %vm890, %v874
      %898 = vst.msk [vmem:[%s170 + $0x38] sm:$0xff] %vm890, %v881
      %p899 = scmp.lt.s32.totalorder %s14, 1
      %s900 = scalar_select %p899, %s14, 1
      %s901 = smul.addr %s900, 8
      %s902 = smul.addr %s901, 8
      %s903 = scalar_lea.vmem %s3, %s902
      // Predicated region
      $region33: #{down_forward.3} parent=31 // pred_check
        %p904 = pneg %p100
      $region34: #{down_forward.3} parent=31 // pred_check_branch
        %906 = sbr.rel (%p904) target = $region36
      $region35: #{down_forward.3} parent=31 // pred_region
        _
      $region36: #{down_forward.3} parent=31 // pred_fallthru
        _
    $region32: #{down_forward.3} parent=5 // pred_fallthru
      _
    %p907 = scmp.le.s32.totalorder 2, %s9
    // Predicated region
    $region37: #{down_forward.3} parent=5 // pred_check
      %p908 = pneg %p907
    $region38: #{down_forward.3} parent=5 // pred_check_branch
      %910 = sbr.rel (%p908) target = $region40
    $region39: #{down_forward.3} parent=5 // pred_region
      %s911 = ssub.s32 %s9, 2
      // Predicated region
      $region41: #{down_forward.3} parent=39 // pred_check
        %p912 = pneg %p106
      $region42: #{down_forward.3} parent=39 // pred_check_branch
        %914 = sbr.rel (%p912) target = $region44
      $region43: #{down_forward.3} parent=39 // pred_region
        %p915 = scmp.lt.s32.totalorder %s15, 1
        %s916 = scalar_select %p915, %s15, 1
        %s917 = smul.addr %s916, 8
        %s918 = smul.addr %s917, 8
        %s919 = scalar_lea.vmem %s3, %s918
      $region44: #{down_forward.3} parent=39 // pred_fallthru
        _
    $region40: #{down_forward.3} parent=5 // pred_fallthru
      _
  $region6: #{down_forward.3} parent=0 // loop_footer
    %s13 = sadd.s32 1, %s9
  $region7: #{down_forward.3} parent=0 // loop_footer_branch
    %8 = sbr.rel target = $region3
  $region8: #{down_forward.3} parent=0 // loop_exit
    _

// kernel: down_forward.2
$region0: #{down_forward.2}
  #allocation0 [shape = 'u32[]', space=smem, size = 0x4, offset = 0x4, fixed_abs, tag = 'smem constant byte address 0x4 - core index']
  #allocation1 [shape = 'u32[72,128]{1,0:T(1,128)}', space=vmem, size = 0x9000, scoped, tag = 'internal scratch']
  #allocation2 [shape = 'f32[18,18,4]{2,1,0:T(8,128)}', space=vmem, size = 0x36000, scoped, tag = 'scratch operand']
  #allocation3 [shape = 'f32[16,16,36]{2,1,0:T(8,128)}', space=vmem, size = 0x20000, scoped, tag = 'scratch operand']
  %s0 = inlined_call_operand.vmem [shape: f32[2,16,16,4], index: 0, kind: input, shape index: {}]
  %s1 = inlined_call_operand.vmem [shape: f32[36,8], index: 1, kind: input, shape index: {}]
  %s2 = inlined_call_operand.vmem [shape: f32[2,16,16,8], index: 2, kind: output, shape index: {0}]
  %s3 = inlined_call_operand.vmem [shape: f32[2,2,8], index: 3, kind: output, shape index: {1}]
  %4 = xla_tuple %s2, %s3
  %s5 = sld [smem:[#allocation0]]
  $region49: #{down_forward.2} parent=0
    _
  %s7 = ssub.s32 1, %s5
  %s8 = scalar_select 0, %s7, %s5
  loop: start=0, step=1, limit=4
  $region2: #{down_forward.2} parent=0 // loop_pre_header
    _
  $region3: #{down_forward.2} parent=0 // loop_header
    %s10 = sphi 0, %s14
    %p11 = scmp.ge.s32.totalorder %s10, 4
    %s20 = sphi 0, %s22
    %s23 = sphi 0, %s20
    %s24 = sphi 0, %s23
    %s40 = sphi 0, %s24
    %s44 = sphi 0, %s44
    %s46 = sphi 0, %s44
    %s47 = sphi 0, %s46
    %s61 = sphi 0, %s47
    %s67 = sphi 0, %s69
    %s70 = sphi 0, %s67
    %s71 = sphi 0, %s70
    %s87 = sphi 0, %s71
    %s93 = sphi 0, %s95
    %s96 = sphi 0, %s93
    %s97 = sphi 0, %s96
    %s113 = sphi 0, %s97
  $region4: #{down_forward.2} parent=0 // loop_header_branch
    %13 = sbr.rel (%p11) target = $region8
  $region5: #{down_forward.2} parent=0 // loop_body
    %s15 = ssub.s32 %s10, 1
    %s16 = ssub.s32 %s10, 2
    %s17 = sadd.s32 %s10, 1
    %s18 = ssub.s32 %s10, %s17
    %p19 = scmp.eq.s32.totalorder %s18, 0
    %s21 = sadd.s32 %s20, 1
    %s22 = scalar_select %p19, %s20, %s21
    %p25 = pneg %p19
    %p26 = scmp.eq.s32.totalorder %s10, 1
    %p27 = por %p25, %p26
    %p28 = scmp.ne.s32.totalorder %s20, %s23
    %p29 = scmp.eq.s32.totalorder %s10, 0
    %p30 = por %p28, %p29
    %p31 = scmp.ne.s32.totalorder %s20, %s23
    %p32 = scmp.eq.s32.totalorder %s15, 1
    %p33 = por %p31, %p32
    %p34 = scmp.ne.s32.totalorder %s23, %s24
    %p35 = scmp.eq.s32.totalorder %s15, 0
    %p36 = por %p34, %p35
    %p37 = scmp.ne.s32.totalorder %s23, %s24
    %p38 = scmp.eq.s32.totalorder %s16, 1
    %p39 = por %p37, %p38
    %p41 = scmp.ne.s32.totalorder %s24, %s40
    %p42 = scmp.eq.s32.totalorder %s16, 0
    %p43 = por %p41, %p42
    %s45 = sadd.s32 %s44, 1
    %p48 = scmp.eq.s32.totalorder %s10, 1
    %p49 = scmp.ne.s32.totalorder %s44, %s46
    %p50 = scmp.eq.s32.totalorder %s10, 0
    %p51 = por %p49, %p50
    %p52 = scmp.ne.s32.totalorder %s44, %s46
    %p53 = scmp.eq.s32.totalorder %s15, 1
    %p54 = por %p52, %p53
    %p55 = scmp.ne.s32.totalorder %s46, %s47
    %p56 = scmp.eq.s32.totalorder %s15, 0
    %p57 = por %p55, %p56
    %p58 = scmp.ne.s32.totalorder %s46, %s47
    %p59 = scmp.eq.s32.totalorder %s16, 1
    %p60 = por %p58, %p59
    %p62 = scmp.ne.s32.totalorder %s47, %s61
    %p63 = scmp.eq.s32.totalorder %s16, 0
    %p64 = por %p62, %p63
    %s65 = ssub.s32 %s10, %s17
    %p66 = scmp.eq.s32.totalorder %s65, 0
    %s68 = sadd.s32 %s67, 1
    %s69 = scalar_select %p66, %s67, %s68
    %p72 = pneg %p66
    %p73 = scmp.eq.s32.totalorder %s10, 1
    %p74 = por %p72, %p73
    %p75 = scmp.ne.s32.totalorder %s67, %s70
    %p76 = scmp.eq.s32.totalorder %s10, 0
    %p77 = por %p75, %p76
    %p78 = scmp.ne.s32.totalorder %s67, %s70
    %p79 = scmp.eq.s32.totalorder %s15, 1
    %p80 = por %p78, %p79
    %p81 = scmp.ne.s32.totalorder %s70, %s71
    %p82 = scmp.eq.s32.totalorder %s15, 0
    %p83 = por %p81, %p82
    %p84 = scmp.ne.s32.totalorder %s70, %s71
    %p85 = scmp.eq.s32.totalorder %s16, 1
    %p86 = por %p84, %p85
    %p88 = scmp.ne.s32.totalorder %s71, %s87
    %p89 = scmp.eq.s32.totalorder %s16, 0
    %p90 = por %p88, %p89
    %s91 = ssub.s32 %s10, %s17
    %p92 = scmp.eq.s32.totalorder %s91, 0
    %s94 = sadd.s32 %s93, 1
    %s95 = scalar_select %p92, %s93, %s94
    %p98 = pneg %p92
    %p99 = scmp.eq.s32.totalorder %s10, 1
    %p100 = por %p98, %p99
    %p101 = scmp.ne.s32.totalorder %s93, %s96
    %p102 = scmp.eq.s32.totalorder %s10, 0
    %p103 = por %p101, %p102
    %p104 = scmp.ne.s32.totalorder %s93, %s96
    %p105 = scmp.eq.s32.totalorder %s15, 1
    %p106 = por %p104, %p105
    %p107 = scmp.ne.s32.totalorder %s96, %s97
    %p108 = scmp.eq.s32.totalorder %s15, 0
    %p109 = por %p107, %p108
    %p110 = scmp.ne.s32.totalorder %s96, %s97
    %p111 = scmp.eq.s32.totalorder %s16, 1
    %p112 = por %p110, %p111
    %p114 = scmp.ne.s32.totalorder %s97, %s113
    %p115 = scmp.eq.s32.totalorder %s16, 0
    %p116 = por %p114, %p115
    %p117 = scmp.le.s32.totalorder 1, %s10
    %p118 = scmp.lt.s32.totalorder %s10, 3
    %p119 = pnand %p117, %p118
    %p120 = pneg %p119
    // Predicated region
    $region9: #{down_forward.2} parent=5 // pred_check
      _
    $region10: #{down_forward.2} parent=5 // pred_check_branch
      %122 = sbr.rel (%p119) target = $region12
    $region11: #{down_forward.2} parent=5 // pred_region
      %s123 = ssub.s32 %s10, 1
      // Predicated region
      $region13: #{down_forward.2} parent=11 // pred_check
        %p124 = pneg %p57
      $region14: #{down_forward.2} parent=11 // pred_check_branch
        %126 = sbr.rel (%p124) target = $region16
      $region15: #{down_forward.2} parent=11 // pred_region
        _
      $region16: #{down_forward.2} parent=11 // pred_fallthru
        _
    $region12: #{down_forward.2} parent=5 // pred_fallthru
      _
    %p127 = scmp.lt.s32.totalorder %s10, 2
    // Predicated region
    $region17: #{down_forward.2} parent=5 // pred_check
      %p128 = pneg %p127
    $region18: #{down_forward.2} parent=5 // pred_check_branch
      %130 = sbr.rel (%p128) target = $region20
    $region19: #{down_forward.2} parent=5 // pred_region
      // Predicated region
      $region21: #{down_forward.2} parent=19 // pred_check
        %p131 = pneg %p30
      $region22: #{down_forward.2} parent=19 // pred_check_branch
        %133 = sbr.rel (%p131) target = $region24
      $region23: #{down_forward.2} parent=19 // pred_region
        %p134 = scmp.lt.s32.totalorder %s10, 1
        %s135 = scalar_select %p134, %s10, 1
        %s136 = smul.addr %s135, 32
        %s137 = smul.addr %s136, 8
        %s138 = scalar_lea.vmem %s0, %s137
      $region24: #{down_forward.2} parent=19 // pred_fallthru
        _
    $region20: #{down_forward.2} parent=5 // pred_fallthru
      _
    %p139 = scmp.le.s32.totalorder 1, %s10
    %p140 = scmp.lt.s32.totalorder %s10, 3
    %p141 = pnand %p139, %p140
    %p142 = pneg %p141
    // Predicated region
    $region25: #{down_forward.2} parent=5 // pred_check
      _
    $region26: #{down_forward.2} parent=5 // pred_check_branch
      %144 = sbr.rel (%p141) target = $region28
    $region27: #{down_forward.2} parent=5 // pred_region
      %s145 = ssub.s32 %s10, 1
      %p146 = scmp.lt.s32.totalorder %s15, 1
      %s147 = scalar_select %p146, %s15, 1
      %s148 = smul.addr %s147, 32
      %s149 = smul.addr %s148, 8
      %s150 = scalar_lea.vmem %s0, %s149
      %p151 = pneg %p36
      %p152 = pneg %p33
      %p153 = pneg %p57
      %p154 = pneg %p54
      %p155 = pneg %p83
      %p156 = pneg %p80
      %p157 = scmp.lt.s32.totalorder %s15, 1
      %s158 = scalar_select %p157, %s15, 1
      %s159 = smul.addr %s158, 32
      %s160 = smul.addr %s159, 8
      %s161 = scalar_lea.vmem %s2, %s160
      %p162 = pneg %p109
      %p163 = pneg %p106
      %p164 = scmp.lt.s32.totalorder %s15, 1
      %s165 = scalar_select %p164, %s15, 1
      %s166 = smul.addr %s165, 2
      %s167 = scalar_lea.vmem %s3, %s166
      %p168 = scmp.lt.s32.totalorder %s15, 1
      %s169 = scalar_select %p168, %s15, 1
      %s170 = smul.addr %s169, 32
      %s171 = smul.addr %s170, 8
      %s172 = scalar_lea.vmem %s0, %s171
      %p173 = scmp.lt.s32.totalorder %s15, 1
      %s174 = scalar_select %p173, %s15, 1
      %s175 = smul.addr %s174, 32
      %s176 = smul.addr %s175, 8
      %s177 = scalar_lea.vmem %s2, %s176
      %p178 = scmp.lt.s32.totalorder %s15, 1
      %s179 = scalar_select %p178, %s15, 1
      %s180 = smul.addr %s179, 2
      %s181 = scalar_lea.vmem %s3, %s180
      %vm182 = vcmask 31744
      %183 = vst.msk [vmem:[#allocation2] sm:$0xff] %vm182, 0.0
      %184 = vst.msk [vmem:[#allocation2 + $0x8] sm:$0xff] %vm182, 0.0
      %vm185 = vcmask 25600
      %186 = vst.msk [vmem:[#allocation2 + $0x10] sm:$0x3] %vm185, 0.0
      %187 = vst.msk [vmem:[#allocation2 + $0x18] sm:$0xff] %vm182, 0.0
      %188 = vst.msk [vmem:[#allocation2 + $0x20] sm:$0xff] %vm182, 0.0
      %189 = vst.msk [vmem:[#allocation2 + $0x28] sm:$0x3] %vm185, 0.0
      %190 = vst.msk [vmem:[#allocation2 + $0x30] sm:$0xff] %vm182, 0.0
      %191 = vst.msk [vmem:[#allocation2 + $0x38] sm:$0xff] %vm182, 0.0
      %192 = vst.msk [vmem:[#allocation2 + $0x40] sm:$0x3] %vm185, 0.0
      %193 = vst.msk [vmem:[#allocation2 + $0x48] sm:$0xff] %vm182, 0.0
      %194 = vst.msk [vmem:[#allocation2 + $0x50] sm:$0xff] %vm182, 0.0
      %195 = vst.msk [vmem:[#allocation2 + $0x58] sm:$0x3] %vm185, 0.0
      %196 = vst.msk [vmem:[#allocation2 + $0x60] sm:$0xff] %vm182, 0.0
      %197 = vst.msk [vmem:[#allocation2 + $0x68] sm:$0xff] %vm182, 0.0
      %198 = vst.msk [vmem:[#allocation2 + $0x70] sm:$0x3] %vm185, 0.0
      %199 = vst.msk [vmem:[#allocation2 + $0x78] sm:$0xff] %vm182, 0.0
      %200 = vst.msk [vmem:[#allocation2 + $0x80] sm:$0xff] %vm182, 0.0
      %201 = vst.msk [vmem:[#allocation2 + $0x88] sm:$0x3] %vm185, 0.0
      %202 = vst.msk [vmem:[#allocation2 + $0x90] sm:$0xff] %vm182, 0.0
      %203 = vst.msk [vmem:[#allocation2 + $0x98] sm:$0xff] %vm182, 0.0
      %204 = vst.msk [vmem:[#allocation2 + $0xa0] sm:$0x3] %vm185, 0.0
      %205 = vst.msk [vmem:[#allocation2 + $0xa8] sm:$0xff] %vm182, 0.0
      %206 = vst.msk [vmem:[#allocation2 + $0xb0] sm:$0xff] %vm182, 0.0
      %207 = vst.msk [vmem:[#allocation2 + $0xb8] sm:$0x3] %vm185, 0.0
      %208 = vst.msk [vmem:[#allocation2 + $0xc0] sm:$0xff] %vm182, 0.0
      %209 = vst.msk [vmem:[#allocation2 + $0xc8] sm:$0xff] %vm182, 0.0
      %210 = vst.msk [vmem:[#allocation2 + $0xd0] sm:$0x3] %vm185, 0.0
      %211 = vst.msk [vmem:[#allocation2 + $0xd8] sm:$0xff] %vm182, 0.0
      %212 = vst.msk [vmem:[#allocation2 + $0xe0] sm:$0xff] %vm182, 0.0
      %213 = vst.msk [vmem:[#allocation2 + $0xe8] sm:$0x3] %vm185, 0.0
      %214 = vst.msk [vmem:[#allocation2 + $0xf0] sm:$0xff] %vm182, 0.0
      %215 = vst.msk [vmem:[#allocation2 + $0xf8] sm:$0xff] %vm182, 0.0
      %216 = vst.msk [vmem:[#allocation2 + $0x100] sm:$0x3] %vm185, 0.0
      %217 = vst.msk [vmem:[#allocation2 + $0x108] sm:$0xff] %vm182, 0.0
      %218 = vst.msk [vmem:[#allocation2 + $0x110] sm:$0xff] %vm182, 0.0
      %219 = vst.msk [vmem:[#allocation2 + $0x118] sm:$0x3] %vm185, 0.0
      %220 = vst.msk [vmem:[#allocation2 + $0x120] sm:$0xff] %vm182, 0.0
      %221 = vst.msk [vmem:[#allocation2 + $0x128] sm:$0xff] %vm182, 0.0
      %222 = vst.msk [vmem:[#allocation2 + $0x130] sm:$0x3] %vm185, 0.0
      %223 = vst.msk [vmem:[#allocation2 + $0x138] sm:$0xff] %vm182, 0.0
      %224 = vst.msk [vmem:[#allocation2 + $0x140] sm:$0xff] %vm182, 0.0
      %225 = vst.msk [vmem:[#allocation2 + $0x148] sm:$0x3] %vm185, 0.0
      %226 = vst.msk [vmem:[#allocation2 + $0x150] sm:$0xff] %vm182, 0.0
      %227 = vst.msk [vmem:[#allocation2 + $0x158] sm:$0xff] %vm182, 0.0
      %228 = vst.msk [vmem:[#allocation2 + $0x160] sm:$0x3] %vm185, 0.0
      %229 = vst.msk [vmem:[#allocation2 + $0x168] sm:$0xff] %vm182, 0.0
      %230 = vst.msk [vmem:[#allocation2 + $0x170] sm:$0xff] %vm182, 0.0
      %231 = vst.msk [vmem:[#allocation2 + $0x178] sm:$0x3] %vm185, 0.0
      %232 = vst.msk [vmem:[#allocation2 + $0x180] sm:$0xff] %vm182, 0.0
      %233 = vst.msk [vmem:[#allocation2 + $0x188] sm:$0xff] %vm182, 0.0
      %234 = vst.msk [vmem:[#allocation2 + $0x190] sm:$0x3] %vm185, 0.0
      %235 = vst.msk [vmem:[#allocation2 + $0x198] sm:$0xff] %vm182, 0.0
      %236 = vst.msk [vmem:[#allocation2 + $0x1a0] sm:$0xff] %vm182, 0.0
      %237 = vst.msk [vmem:[#allocation2 + $0x1a8] sm:$0x3] %vm185, 0.0
      %v238 = vld [vmem:[%s172] sm:$0xff]
      %v239 = vld [vmem:[%s172 + $0x8] sm:$0xff]
      %v240 = vld [vmem:[%s172 + $0x10] sm:$0xff]
      %v241 = vld [vmem:[%s172 + $0x18] sm:$0xff]
      %v242 = vld [vmem:[%s172 + $0x20] sm:$0xff]
      %v243 = vld [vmem:[%s172 + $0x28] sm:$0xff]
      %v244 = vld [vmem:[%s172 + $0x30] sm:$0xff]
      %v245 = vld [vmem:[%s172 + $0x38] sm:$0xff]
      %v246 = vld [vmem:[%s172 + $0x40] sm:$0xff]
      %v247 = vld [vmem:[%s172 + $0x48] sm:$0xff]
      %v248 = vld [vmem:[%s172 + $0x50] sm:$0xff]
      %v249 = vld [vmem:[%s172 + $0x58] sm:$0xff]
      %v250 = vld [vmem:[%s172 + $0x60] sm:$0xff]
      %v251 = vld [vmem:[%s172 + $0x68] sm:$0xff]
      %v252 = vld [vmem:[%s172 + $0x70] sm:$0xff]
      %v253 = vld [vmem:[%s172 + $0x78] sm:$0xff]
      %v254 = vld [vmem:[%s172 + $0x80] sm:$0xff]
      %v255 = vld [vmem:[%s172 + $0x88] sm:$0xff]
      %v256 = vld [vmem:[%s172 + $0x90] sm:$0xff]
      %v257 = vld [vmem:[%s172 + $0x98] sm:$0xff]
      %v258 = vld [vmem:[%s172 + $0xa0] sm:$0xff]
      %v259 = vld [vmem:[%s172 + $0xa8] sm:$0xff]
      %v260 = vld [vmem:[%s172 + $0xb0] sm:$0xff]
      %v261 = vld [vmem:[%s172 + $0xb8] sm:$0xff]
      %v262 = vld [vmem:[%s172 + $0xc0] sm:$0xff]
      %v263 = vld [vmem:[%s172 + $0xc8] sm:$0xff]
      %v264 = vld [vmem:[%s172 + $0xd0] sm:$0xff]
      %v265 = vld [vmem:[%s172 + $0xd8] sm:$0xff]
      %v266 = vld [vmem:[%s172 + $0xe0] sm:$0xff]
      %v267 = vld [vmem:[%s172 + $0xe8] sm:$0xff]
      %v268 = vld [vmem:[%s172 + $0xf0] sm:$0xff]
      %v269 = vld [vmem:[%s172 + $0xf8] sm:$0xff]
      %s270 = scalar_lea.vmem [#allocation2], 24
      %271 = vst.msk [vmem:[%s270 + $0x1] sm:$0xff] %vm182, %v238
      %272 = vst.msk [vmem:[%s270 + $0x9] sm:$0xff] %vm182, %v239
      %273 = vst.msk [vmem:[%s270 + $0x19] sm:$0xff] %vm182, %v240
      %274 = vst.msk [vmem:[%s270 + $0x21] sm:$0xff] %vm182, %v241
      %275 = vst.msk [vmem:[%s270 + $0x31] sm:$0xff] %vm182, %v242
      %276 = vst.msk [vmem:[%s270 + $0x39] sm:$0xff] %vm182, %v243
      %277 = vst.msk [vmem:[%s270 + $0x49] sm:$0xff] %vm182, %v244
      %278 = vst.msk [vmem:[%s270 + $0x51] sm:$0xff] %vm182, %v245
      %279 = vst.msk [vmem:[%s270 + $0x61] sm:$0xff] %vm182, %v246
      %280 = vst.msk [vmem:[%s270 + $0x69] sm:$0xff] %vm182, %v247
      %281 = vst.msk [vmem:[%s270 + $0x79] sm:$0xff] %vm182, %v248
      %282 = vst.msk [vmem:[%s270 + $0x81] sm:$0xff] %vm182, %v249
      %283 = vst.msk [vmem:[%s270 + $0x91] sm:$0xff] %vm182, %v250
      %284 = vst.msk [vmem:[%s270 + $0x99] sm:$0xff] %vm182, %v251
      %285 = vst.msk [vmem:[%s270 + $0xa9] sm:$0xff] %vm182, %v252
      %286 = vst.msk [vmem:[%s270 + $0xb1] sm:$0xff] %vm182, %v253
      %287 = vst.msk [vmem:[%s270 + $0xc1] sm:$0xff] %vm182, %v254
      %288 = vst.msk [vmem:[%s270 + $0xc9] sm:$0xff] %vm182, %v255
      %289 = vst.msk [vmem:[%s270 + $0xd9] sm:$0xff] %vm182, %v256
      %290 = vst.msk [vmem:[%s270 + $0xe1] sm:$0xff] %vm182, %v257
      %291 = vst.msk [vmem:[%s270 + $0xf1] sm:$0xff] %vm182, %v258
      %292 = vst.msk [vmem:[%s270 + $0xf9] sm:$0xff] %vm182, %v259
      %293 = vst.msk [vmem:[%s270 + $0x109] sm:$0xff] %vm182, %v260
      %294 = vst.msk [vmem:[%s270 + $0x111] sm:$0xff] %vm182, %v261
      %295 = vst.msk [vmem:[%s270 + $0x121] sm:$0xff] %vm182, %v262
      %296 = vst.msk [vmem:[%s270 + $0x129] sm:$0xff] %vm182, %v263
      %297 = vst.msk [vmem:[%s270 + $0x139] sm:$0xff] %vm182, %v264
      %298 = vst.msk [vmem:[%s270 + $0x141] sm:$0xff] %vm182, %v265
      %299 = vst.msk [vmem:[%s270 + $0x151] sm:$0xff] %vm182, %v266
      %300 = vst.msk [vmem:[%s270 + $0x159] sm:$0xff] %vm182, %v267
      %301 = vst.msk [vmem:[%s270 + $0x169] sm:$0xff] %vm182, %v268
      %302 = vst.msk [vmem:[%s270 + $0x171] sm:$0xff] %vm182, %v269
      %v303 = vld [vmem:[#allocation2] sm:$0xff]
      %v304 = vld [vmem:[#allocation2 + $0x8] sm:$0xff]
      %v305 = vld [vmem:[#allocation2 + $0x18] sm:$0xff]
      %v306 = vld [vmem:[#allocation2 + $0x20] sm:$0xff]
      %v307 = vld [vmem:[#allocation2 + $0x30] sm:$0xff]
      %v308 = vld [vmem:[#allocation2 + $0x38] sm:$0xff]
      %v309 = vld [vmem:[#allocation2 + $0x48] sm:$0xff]
      %v310 = vld [vmem:[#allocation2 + $0x50] sm:$0xff]
      %v311 = vld [vmem:[#allocation2 + $0x60] sm:$0xff]
      %v312 = vld [vmem:[#allocation2 + $0x68] sm:$0xff]
      %v313 = vld [vmem:[#allocation2 + $0x78] sm:$0xff]
      %v314 = vld [vmem:[#allocation2 + $0x80] sm:$0xff]
      %v315 = vld [vmem:[#allocation2 + $0x90] sm:$0xff]
      %v316 = vld [vmem:[#allocation2 + $0x98] sm:$0xff]
      %v317 = vld [vmem:[#allocation2 + $0xa8] sm:$0xff]
      %v318 = vld [vmem:[#allocation2 + $0xb0] sm:$0xff]
      %v319 = vld [vmem:[#allocation2 + $0xc0] sm:$0xff]
      %v320 = vld [vmem:[#allocation2 + $0xc8] sm:$0xff]
      %v321 = vld [vmem:[#allocation2 + $0xd8] sm:$0xff]
      %v322 = vld [vmem:[#allocation2 + $0xe0] sm:$0xff]
      %v323 = vld [vmem:[#allocation2 + $0xf0] sm:$0xff]
      %v324 = vld [vmem:[#allocation2 + $0xf8] sm:$0xff]
      %v325 = vld [vmem:[#allocation2 + $0x108] sm:$0xff]
      %v326 = vld [vmem:[#allocation2 + $0x110] sm:$0xff]
      %v327 = vld [vmem:[#allocation2 + $0x120] sm:$0xff]
      %v328 = vld [vmem:[#allocation2 + $0x128] sm:$0xff]
      %v329 = vld [vmem:[#allocation2 + $0x138] sm:$0xff]
      %v330 = vld [vmem:[#allocation2 + $0x140] sm:$0xff]
      %v331 = vld [vmem:[#allocation2 + $0x150] sm:$0xff]
      %v332 = vld [vmem:[#allocation2 + $0x158] sm:$0xff]
      %v333 = vld [vmem:[#allocation2 + $0x168] sm:$0xff]
      %v334 = vld [vmem:[#allocation2 + $0x170] sm:$0xff]
      %335 = vst.msk [vmem:[#allocation3] sm:$0xff] %vm182, %v303
      %336 = vst.msk [vmem:[#allocation3 + $0x8] sm:$0xff] %vm182, %v304
      %337 = vst.msk [vmem:[#allocation3 + $0x10] sm:$0xff] %vm182, %v305
      %338 = vst.msk [vmem:[#allocation3 + $0x18] sm:$0xff] %vm182, %v306
      %339 = vst.msk [vmem:[#allocation3 + $0x20] sm:$0xff] %vm182, %v307
      %340 = vst.msk [vmem:[#allocation3 + $0x28] sm:$0xff] %vm182, %v308
      %341 = vst.msk [vmem:[#allocation3 + $0x30] sm:$0xff] %vm182, %v309
      %342 = vst.msk [vmem:[#allocation3 + $0x38] sm:$0xff] %vm182, %v310
      %343 = vst.msk [vmem:[#allocation3 + $0x40] sm:$0xff] %vm182, %v311
      %344 = vst.msk [vmem:[#allocation3 + $0x48] sm:$0xff] %vm182, %v312
      %345 = vst.msk [vmem:[#allocation3 + $0x50] sm:$0xff] %vm182, %v313
      %346 = vst.msk [vmem:[#allocation3 + $0x58] sm:$0xff] %vm182, %v314
      %347 = vst.msk [vmem:[#allocation3 + $0x60] sm:$0xff] %vm182, %v315
      %348 = vst.msk [vmem:[#allocation3 + $0x68] sm:$0xff] %vm182, %v316
      %349 = vst.msk [vmem:[#allocation3 + $0x70] sm:$0xff] %vm182, %v317
      %350 = vst.msk [vmem:[#allocation3 + $0x78] sm:$0xff] %vm182, %v318
      %351 = vst.msk [vmem:[#allocation3 + $0x80] sm:$0xff] %vm182, %v319
      %352 = vst.msk [vmem:[#allocation3 + $0x88] sm:$0xff] %vm182, %v320
      %353 = vst.msk [vmem:[#allocation3 + $0x90] sm:$0xff] %vm182, %v321
      %354 = vst.msk [vmem:[#allocation3 + $0x98] sm:$0xff] %vm182, %v322
      %355 = vst.msk [vmem:[#allocation3 + $0xa0] sm:$0xff] %vm182, %v323
      %356 = vst.msk [vmem:[#allocation3 + $0xa8] sm:$0xff] %vm182, %v324
      %357 = vst.msk [vmem:[#allocation3 + $0xb0] sm:$0xff] %vm182, %v325
      %358 = vst.msk [vmem:[#allocation3 + $0xb8] sm:$0xff] %vm182, %v326
      %359 = vst.msk [vmem:[#allocation3 + $0xc0] sm:$0xff] %vm182, %v327
      %360 = vst.msk [vmem:[#allocation3 + $0xc8] sm:$0xff] %vm182, %v328
      %361 = vst.msk [vmem:[#allocation3 + $0xd0] sm:$0xff] %vm182, %v329
      %362 = vst.msk [vmem:[#allocation3 + $0xd8] sm:$0xff] %vm182, %v330
      %363 = vst.msk [vmem:[#allocation3 + $0xe0] sm:$0xff] %vm182, %v331
      %364 = vst.msk [vmem:[#allocation3 + $0xe8] sm:$0xff] %vm182, %v332
      %365 = vst.msk [vmem:[#allocation3 + $0xf0] sm:$0xff] %vm182, %v333
      %366 = vst.msk [vmem:[#allocation3 + $0xf8] sm:$0xff] %vm182, %v334
      %v367 = vld [vmem:[#allocation2 + $0x1] sm:$0xff]
      %v368 = vld [vmem:[#allocation2 + $0x9] sm:$0xff]
      %v369 = vld [vmem:[#allocation2 + $0x19] sm:$0xff]
      %v370 = vld [vmem:[#allocation2 + $0x21] sm:$0xff]
      %v371 = vld [vmem:[#allocation2 + $0x31] sm:$0xff]
      %v372 = vld [vmem:[#allocation2 + $0x39] sm:$0xff]
      %v373 = vld [vmem:[#allocation2 + $0x49] sm:$0xff]
      %v374 = vld [vmem:[#allocation2 + $0x51] sm:$0xff]
      %v375 = vld [vmem:[#allocation2 + $0x61] sm:$0xff]
      %v376 = vld [vmem:[#allocation2 + $0x69] sm:$0xff]
      %v377 = vld [vmem:[#allocation2 + $0x79] sm:$0xff]
      %v378 = vld [vmem:[#allocation2 + $0x81] sm:$0xff]
      %v379 = vld [vmem:[#allocation2 + $0x91] sm:$0xff]
      %v380 = vld [vmem:[#allocation2 + $0x99] sm:$0xff]
      %v381 = vld [vmem:[#allocation2 + $0xa9] sm:$0xff]
      %v382 = vld [vmem:[#allocation2 + $0xb1] sm:$0xff]
      %v383 = vld [vmem:[#allocation2 + $0xc1] sm:$0xff]
      %v384 = vld [vmem:[#allocation2 + $0xc9] sm:$0xff]
      %v385 = vld [vmem:[#allocation2 + $0xd9] sm:$0xff]
      %v386 = vld [vmem:[#allocation2 + $0xe1] sm:$0xff]
      %v387 = vld [vmem:[#allocation2 + $0xf1] sm:$0xff]
      %v388 = vld [vmem:[#allocation2 + $0xf9] sm:$0xff]
      %v389 = vld [vmem:[#allocation2 + $0x109] sm:$0xff]
      %v390 = vld [vmem:[#allocation2 + $0x111] sm:$0xff]
      %v391 = vld [vmem:[#allocation2 + $0x121] sm:$0xff]
      %v392 = vld [vmem:[#allocation2 + $0x129] sm:$0xff]
      %v393 = vld [vmem:[#allocation2 + $0x139] sm:$0xff]
      %v394 = vld [vmem:[#allocation2 + $0x141] sm:$0xff]
      %v395 = vld [vmem:[#allocation2 + $0x151] sm:$0xff]
      %v396 = vld [vmem:[#allocation2 + $0x159] sm:$0xff]
      %v397 = vld [vmem:[#allocation2 + $0x169] sm:$0xff]
      %v398 = vld [vmem:[#allocation2 + $0x171] sm:$0xff]
      %431 = vrot.lane.b32.xlu0 %v367, 4
      %v432 = vpop.permute.xlu0 %431
      %433 = vrot.lane.b32.xlu0 %v368, 4
      %v434 = vpop.permute.xlu0 %433
      %435 = vrot.lane.b32.xlu0 %v369, 4
      %v436 = vpop.permute.xlu0 %435
      %437 = vrot.lane.b32.xlu0 %v370, 4
      %v438 = vpop.permute.xlu0 %437
      %439 = vrot.lane.b32.xlu0 %v371, 4
      %v440 = vpop.permute.xlu0 %439
      %441 = vrot.lane.b32.xlu0 %v372, 4
      %v442 = vpop.permute.xlu0 %441
      %443 = vrot.lane.b32.xlu0 %v373, 4
      %v444 = vpop.permute.xlu0 %443
      %445 = vrot.lane.b32.xlu0 %v374, 4
      %v446 = vpop.permute.xlu0 %445
      %447 = vrot.lane.b32.xlu0 %v375, 4
      %v448 = vpop.permute.xlu0 %447
      %449 = vrot.lane.b32.xlu0 %v376, 4
      %v450 = vpop.permute.xlu0 %449
      %451 = vrot.lane.b32.xlu0 %v377, 4
      %v452 = vpop.permute.xlu0 %451
      %453 = vrot.lane.b32.xlu0 %v378, 4
      %v454 = vpop.permute.xlu0 %453
      %455 = vrot.lane.b32.xlu0 %v379, 4
      %v456 = vpop.permute.xlu0 %455
      %457 = vrot.lane.b32.xlu0 %v380, 4
      %v458 = vpop.permute.xlu0 %457
      %459 = vrot.lane.b32.xlu0 %v381, 4
      %v460 = vpop.permute.xlu0 %459
      %461 = vrot.lane.b32.xlu0 %v382, 4
      %v462 = vpop.permute.xlu0 %461
      %463 = vrot.lane.b32.xlu0 %v383, 4
      %v464 = vpop.permute.xlu0 %463
      %465 = vrot.lane.b32.xlu0 %v384, 4
      %v466 = vpop.permute.xlu0 %465
      %467 = vrot.lane.b32.xlu0 %v385, 4
      %v468 = vpop.permute.xlu0 %467
      %469 = vrot.lane.b32.xlu0 %v386, 4
      %v470 = vpop.permute.xlu0 %469
      %471 = vrot.lane.b32.xlu0 %v387, 4
      %v472 = vpop.permute.xlu0 %471
      %473 = vrot.lane.b32.xlu0 %v388, 4
      %v474 = vpop.permute.xlu0 %473
      %475 = vrot.lane.b32.xlu0 %v389, 4
      %v476 = vpop.permute.xlu0 %475
      %477 = vrot.lane.b32.xlu0 %v390, 4
      %v478 = vpop.permute.xlu0 %477
      %479 = vrot.lane.b32.xlu0 %v391, 4
      %v480 = vpop.permute.xlu0 %479
      %481 = vrot.lane.b32.xlu0 %v392, 4
      %v482 = vpop.permute.xlu0 %481
      %483 = vrot.lane.b32.xlu0 %v393, 4
      %v484 = vpop.permute.xlu0 %483
      %485 = vrot.lane.b32.xlu0 %v394, 4
      %v486 = vpop.permute.xlu0 %485
      %487 = vrot.lane.b32.xlu0 %v395, 4
      %v488 = vpop.permute.xlu0 %487
      %489 = vrot.lane.b32.xlu0 %v396, 4
      %v490 = vpop.permute.xlu0 %489
      %491 = vrot.lane.b32.xlu0 %v397, 4
      %v492 = vpop.permute.xlu0 %491
      %493 = vrot.lane.b32.xlu0 %v398, 4
      %v494 = vpop.permute.xlu0 %493
      %vm527 = vcmask 64544
      %528 = vst.msk [vmem:[#allocation3] sm:$0xff] %vm527, %v432
      %529 = vst.msk [vmem:[#allocation3 + $0x8] sm:$0xff] %vm527, %v434
      %530 = vst.msk [vmem:[#allocation3 + $0x10] sm:$0xff] %vm527, %v436
      %531 = vst.msk [vmem:[#allocation3 + $0x18] sm:$0xff] %vm527, %v438
      %532 = vst.msk [vmem:[#allocation3 + $0x20] sm:$0xff] %vm527, %v440
      %533 = vst.msk [vmem:[#allocation3 + $0x28] sm:$0xff] %vm527, %v442
      %534 = vst.msk [vmem:[#allocation3 + $0x30] sm:$0xff] %vm527, %v444
      %535 = vst.msk [vmem:[#allocation3 + $0x38] sm:$0xff] %vm527, %v446
      %536 = vst.msk [vmem:[#allocation3 + $0x40] sm:$0xff] %vm527, %v448
      %537 = vst.msk [vmem:[#allocation3 + $0x48] sm:$0xff] %vm527, %v450
      %538 = vst.msk [vmem:[#allocation3 + $0x50] sm:$0xff] %vm527, %v452
      %539 = vst.msk [vmem:[#allocation3 + $0x58] sm:$0xff] %vm527, %v454
      %540 = vst.msk [vmem:[#allocation3 + $0x60] sm:$0xff] %vm527, %v456
      %541 = vst.msk [vmem:[#allocation3 + $0x68] sm:$0xff] %vm527, %v458
      %542 = vst.msk [vmem:[#allocation3 + $0x70] sm:$0xff] %vm527, %v460
      %543 = vst.msk [vmem:[#allocation3 + $0x78] sm:$0xff] %vm527, %v462
      %544 = vst.msk [vmem:[#allocation3 + $0x80] sm:$0xff] %vm527, %v464
      %545 = vst.msk [vmem:[#allocation3 + $0x88] sm:$0xff] %vm527, %v466
      %546 = vst.msk [vmem:[#allocation3 + $0x90] sm:$0xff] %vm527, %v468
      %547 = vst.msk [vmem:[#allocation3 + $0x98] sm:$0xff] %vm527, %v470
      %548 = vst.msk [vmem:[#allocation3 + $0xa0] sm:$0xff] %vm527, %v472
      %549 = vst.msk [vmem:[#allocation3 + $0xa8] sm:$0xff] %vm527, %v474
      %550 = vst.msk [vmem:[#allocation3 + $0xb0] sm:$0xff] %vm527, %v476
      %551 = vst.msk [vmem:[#allocation3 + $0xb8] sm:$0xff] %vm527, %v478
      %552 = vst.msk [vmem:[#allocation3 + $0xc0] sm:$0xff] %vm527, %v480
      %553 = vst.msk [vmem:[#allocation3 + $0xc8] sm:$0xff] %vm527, %v482
      %554 = vst.msk [vmem:[#allocation3 + $0xd0] sm:$0xff] %vm527, %v484
      %555 = vst.msk [vmem:[#allocation3 + $0xd8] sm:$0xff] %vm527, %v486
      %556 = vst.msk [vmem:[#allocation3 + $0xe0] sm:$0xff] %vm527, %v488
      %557 = vst.msk [vmem:[#allocation3 + $0xe8] sm:$0xff] %vm527, %v490
      %558 = vst.msk [vmem:[#allocation3 + $0xf0] sm:$0xff] %vm527, %v492
      %559 = vst.msk [vmem:[#allocation3 + $0xf8] sm:$0xff] %vm527, %v494
      %v560 = vld [vmem:[#allocation2 + $0x2] sm:$0xff]
      %v561 = vld [vmem:[#allocation2 + $0xa] sm:$0xff]
      %v562 = vld [vmem:[#allocation2 + $0x1a] sm:$0xff]
      %v563 = vld [vmem:[#allocation2 + $0x22] sm:$0xff]
      %v564 = vld [vmem:[#allocation2 + $0x32] sm:$0xff]
      %v565 = vld [vmem:[#allocation2 + $0x3a] sm:$0xff]
      %v566 = vld [vmem:[#allocation2 + $0x4a] sm:$0xff]
      %v567 = vld [vmem:[#allocation2 + $0x52] sm:$0xff]
      %v568 = vld [vmem:[#allocation2 + $0x62] sm:$0xff]
      %v569 = vld [vmem:[#allocation2 + $0x6a] sm:$0xff]
      %v570 = vld [vmem:[#allocation2 + $0x7a] sm:$0xff]
      %v571 = vld [vmem:[#allocation2 + $0x82] sm:$0xff]
      %v572 = vld [vmem:[#allocation2 + $0x92] sm:$0xff]
      %v573 = vld [vmem:[#allocation2 + $0x9a] sm:$0xff]
      %v574 = vld [vmem:[#allocation2 + $0xaa] sm:$0xff]
      %v575 = vld [vmem:[#allocation2 + $0xb2] sm:$0xff]
      %v576 = vld [vmem:[#allocation2 + $0xc2] sm:$0xff]
      %v577 = vld [vmem:[#allocation2 + $0xca] sm:$0xff]
      %v578 = vld [vmem:[#allocation2 + $0xda] sm:$0xff]
      %v579 = vld [vmem:[#allocation2 + $0xe2] sm:$0xff]
      %v580 = vld [vmem:[#allocation2 + $0xf2] sm:$0xff]
      %v581 = vld [vmem:[#allocation2 + $0xfa] sm:$0xff]
      %v582 = vld [vmem:[#allocation2 + $0x10a] sm:$0xff]
      %v583 = vld [vmem:[#allocation2 + $0x112] sm:$0xff]
      %v584 = vld [vmem:[#allocation2 + $0x122] sm:$0xff]
      %v585 = vld [vmem:[#allocation2 + $0x12a] sm:$0xff]
      %v586 = vld [vmem:[#allocation2 + $0x13a] sm:$0xff]
      %v587 = vld [vmem:[#allocation2 + $0x142] sm:$0xff]
      %v588 = vld [vmem:[#allocation2 + $0x152] sm:$0xff]
      %v589 = vld [vmem:[#allocation2 + $0x15a] sm:$0xff]
      %v590 = vld [vmem:[#allocation2 + $0x16a] sm:$0xff]
      %v591 = vld [vmem:[#allocation2 + $0x172] sm:$0xff]
      %624 = vrot.lane.b32.xlu0 %v560, 8
      %v625 = vpop.permute.xlu0 %624
      %626 = vrot.lane.b32.xlu0 %v561, 8
      %v627 = vpop.permute.xlu0 %626
      %628 = vrot.lane.b32.xlu0 %v562, 8
      %v629 = vpop.permute.xlu0 %628
      %630 = vrot.lane.b32.xlu0 %v563, 8
      %v631 = vpop.permute.xlu0 %630
      %632 = vrot.lane.b32.xlu0 %v564, 8
      %v633 = vpop.permute.xlu0 %632
      %634 = vrot.lane.b32.xlu0 %v565, 8
      %v635 = vpop.permute.xlu0 %634
      %636 = vrot.lane.b32.xlu0 %v566, 8
      %v637 = vpop.permute.xlu0 %636
      %638 = vrot.lane.b32.xlu0 %v567, 8
      %v639 = vpop.permute.xlu0 %638
      %640 = vrot.lane.b32.xlu0 %v568, 8
      %v641 = vpop.permute.xlu0 %640
      %642 = vrot.lane.b32.xlu0 %v569, 8
      %v643 = vpop.permute.xlu0 %642
      %644 = vrot.lane.b32.xlu0 %v570, 8
      %v645 = vpop.permute.xlu0 %644
      %646 = vrot.lane.b32.xlu0 %v571, 8
      %v647 = vpop.permute.xlu0 %646
      %648 = vrot.lane.b32.xlu0 %v572, 8
      %v649 = vpop.permute.xlu0 %648
      %650 = vrot.lane.b32.xlu0 %v573, 8
      %v651 = vpop.permute.xlu0 %650
      %652 = vrot.lane.b32.xlu0 %v574, 8
      %v653 = vpop.permute.xlu0 %652
      %654 = vrot.lane.b32.xlu0 %v575, 8
      %v655 = vpop.permute.xlu0 %654
      %656 = vrot.lane.b32.xlu0 %v576, 8
      %v657 = vpop.permute.xlu0 %656
      %658 = vrot.lane.b32.xlu0 %v577, 8
      %v659 = vpop.permute.xlu0 %658
      %660 = vrot.lane.b32.xlu0 %v578, 8
      %v661 = vpop.permute.xlu0 %660
      %662 = vrot.lane.b32.xlu0 %v579, 8
      %v663 = vpop.permute.xlu0 %662
      %664 = vrot.lane.b32.xlu0 %v580, 8
      %v665 = vpop.permute.xlu0 %664
      %666 = vrot.lane.b32.xlu0 %v581, 8
      %v667 = vpop.permute.xlu0 %666
      %668 = vrot.lane.b32.xlu0 %v582, 8
      %v669 = vpop.permute.xlu0 %668
      %670 = vrot.lane.b32.xlu0 %v583, 8
      %v671 = vpop.permute.xlu0 %670
      %672 = vrot.lane.b32.xlu0 %v584, 8
      %v673 = vpop.permute.xlu0 %672
      %674 = vrot.lane.b32.xlu0 %v585, 8
      %v675 = vpop.permute.xlu0 %674
      %676 = vrot.lane.b32.xlu0 %v586, 8
      %v677 = vpop.permute.xlu0 %676
      %678 = vrot.lane.b32.xlu0 %v587, 8
      %v679 = vpop.permute.xlu0 %678
      %680 = vrot.lane.b32.xlu0 %v588, 8
      %v681 = vpop.permute.xlu0 %680
      %682 = vrot.lane.b32.xlu0 %v589, 8
      %v683 = vpop.permute.xlu0 %682
      %684 = vrot.lane.b32.xlu0 %v590, 8
      %v685 = vpop.permute.xlu0 %684
      %686 = vrot.lane.b32.xlu0 %v591, 8
      %v687 = vpop.permute.xlu0 %686
      %vm720 = vcmask 97344
      %721 = vst.msk [vmem:[#allocation3] sm:$0xff] %vm720, %v625
      %722 = vst.msk [vmem:[#allocation3 + $0x8] sm:$0xff] %vm720, %v627
      %723 = vst.msk [vmem:[#allocation3 + $0x10] sm:$0xff] %vm720, %v629
      %724 = vst.msk [vmem:[#allocation3 + $0x18] sm:$0xff] %vm720, %v631
      %725 = vst.msk [vmem:[#allocation3 + $0x20] sm:$0xff] %vm720, %v633
      %726 = vst.msk [vmem:[#allocation3 + $0x28] sm:$0xff] %vm720, %v635
      %727 = vst.msk [vmem:[#allocation3 + $0x30] sm:$0xff] %vm720, %v637
      %728 = vst.msk [vmem:[#allocation3 + $0x38] sm:$0xff] %vm720, %v639
      %729 = vst.msk [vmem:[#allocation3 + $0x40] sm:$0xff] %vm720, %v641
      %730 = vst.msk [vmem:[#allocation3 + $0x48] sm:$0xff] %vm720, %v643
      %731 = vst.msk [vmem:[#allocation3 + $0x50] sm:$0xff] %vm720, %v645
      %732 = vst.msk [vmem:[#allocation3 + $0x58] sm:$0xff] %vm720, %v647
      %733 = vst.msk [vmem:[#allocation3 + $0x60] sm:$0xff] %vm720, %v649
      %734 = vst.msk [vmem:[#allocation3 + $0x68] sm:$0xff] %vm720, %v651
      %735 = vst.msk [vmem:[#allocation3 + $0x70] sm:$0xff] %vm720, %v653
      %736 = vst.msk [vmem:[#allocation3 + $0x78] sm:$0xff] %vm720, %v655
      %737 = vst.msk [vmem:[#allocation3 + $0x80] sm:$0xff] %vm720, %v657
      %738 = vst.msk [vmem:[#allocation3 + $0x88] sm:$0xff] %vm720, %v659
      %739 = vst.msk [vmem:[#allocation3 + $0x90] sm:$0xff] %vm720, %v661
      %740 = vst.msk [vmem:[#allocation3 + $0x98] sm:$0xff] %vm720, %v663
      %741 = vst.msk [vmem:[#allocation3 + $0xa0] sm:$0xff] %vm720, %v665
      %742 = vst.msk [vmem:[#allocation3 + $0xa8] sm:$0xff] %vm720, %v667
      %743 = vst.msk [vmem:[#allocation3 + $0xb0] sm:$0xff] %vm720, %v669
      %744 = vst.msk [vmem:[#allocation3 + $0xb8] sm:$0xff] %vm720, %v671
      %745 = vst.msk [vmem:[#allocation3 + $0xc0] sm:$0xff] %vm720, %v673
      %746 = vst.msk [vmem:[#allocation3 + $0xc8] sm:$0xff] %vm720, %v675
      %747 = vst.msk [vmem:[#allocation3 + $0xd0] sm:$0xff] %vm720, %v677
      %748 = vst.msk [vmem:[#allocation3 + $0xd8] sm:$0xff] %vm720, %v679
      %749 = vst.msk [vmem:[#allocation3 + $0xe0] sm:$0xff] %vm720, %v681
      %750 = vst.msk [vmem:[#allocation3 + $0xe8] sm:$0xff] %vm720, %v683
      %751 = vst.msk [vmem:[#allocation3 + $0xf0] sm:$0xff] %vm720, %v685
      %752 = vst.msk [vmem:[#allocation3 + $0xf8] sm:$0xff] %vm720, %v687
      %v753 = vld [vmem:[%s270] sm:$0xff]
      %v754 = vld [vmem:[%s270 + $0x8] sm:$0xff]
      %v755 = vld [vmem:[%s270 + $0x18] sm:$0xff]
      %v756 = vld [vmem:[%s270 + $0x20] sm:$0xff]
      %v757 = vld [vmem:[%s270 + $0x30] sm:$0xff]
      %v758 = vld [vmem:[%s270 + $0x38] sm:$0xff]
      %v759 = vld [vmem:[%s270 + $0x48] sm:$0xff]
      %v760 = vld [vmem:[%s270 + $0x50] sm:$0xff]
      %v761 = vld [vmem:[%s270 + $0x60] sm:$0xff]
      %v762 = vld [vmem:[%s270 + $0x68] sm:$0xff]
      %v763 = vld [vmem:[%s270 + $0x78] sm:$0xff]
      %v764 = vld [vmem:[%s270 + $0x80] sm:$0xff]
      %v765 = vld [vmem:[%s270 + $0x90] sm:$0xff]
      %v766 = vld [vmem:[%s270 + $0x98] sm:$0xff]
      %v767 = vld [vmem:[%s270 + $0xa8] sm:$0xff]
      %v768 = vld [vmem:[%s270 + $0xb0] sm:$0xff]
      %v769 = vld [vmem:[%s270 + $0xc0] sm:$0xff]
      %v770 = vld [vmem:[%s270 + $0xc8] sm:$0xff]
      %v771 = vld [vmem:[%s270 + $0xd8] sm:$0xff]
      %v772 = vld [vmem:[%s270 + $0xe0] sm:$0xff]
      %v773 = vld [vmem:[%s270 + $0xf0] sm:$0xff]
      %v774 = vld [vmem:[%s270 + $0xf8] sm:$0xff]
      %v775 = vld [vmem:[%s270 + $0x108] sm:$0xff]
      %v776 = vld [vmem:[%s270 + $0x110] sm:$0xff]
      %v777 = vld [vmem:[%s270 + $0x120] sm:$0xff]
      %v778 = vld [vmem:[%s270 + $0x128] sm:$0xff]
      %v779 = vld [vmem:[%s270 + $0x138] sm:$0xff]
      %v780 = vld [vmem:[%s270 + $0x140] sm:$0xff]
      %v781 = vld [vmem:[%s270 + $0x150] sm:$0xff]
      %v782 = vld [vmem:[%s270 + $0x158] sm:$0xff]
      %v783 = vld [vmem:[%s270 + $0x168] sm:$0xff]
      %v784 = vld [vmem:[%s270 + $0x170] sm:$0xff]
      %817 = vrot.lane.b32.xlu0 %v753, 12
      %v818 = vpop.permute.xlu0 %817
      %819 = vrot.lane.b32.xlu0 %v754, 12
      %v820 = vpop.permute.xlu0 %819
      %821 = vrot.lane.b32.xlu0 %v755, 12
      %v822 = vpop.permute.xlu0 %821
      %823 = vrot.lane.b32.xlu0 %v756, 12
      %v824 = vpop.permute.xlu0 %823
      %825 = vrot.lane.b32.xlu0 %v757, 12
      %v826 = vpop.permute.xlu0 %825
      %827 = vrot.lane.b32.xlu0 %v758, 12
      %v828 = vpop.permute.xlu0 %827
      %829 = vrot.lane.b32.xlu0 %v759, 12
      %v830 = vpop.permute.xlu0 %829
      %831 = vrot.lane.b32.xlu0 %v760, 12
      %v832 = vpop.permute.xlu0 %831
      %833 = vrot.lane.b32.xlu0 %v761, 12
      %v834 = vpop.permute.xlu0 %833
      %835 = vrot.lane.b32.xlu0 %v762, 12
      %v836 = vpop.permute.xlu0 %835
      %837 = vrot.lane.b32.xlu0 %v763, 12
      %v838 = vpop.permute.xlu0 %837
      %839 = vrot.lane.b32.xlu0 %v764, 12
      %v840 = vpop.permute.xlu0 %839
      %841 = vrot.lane.b32.xlu0 %v765, 12
      %v842 = vpop.permute.xlu0 %841
      %843 = vrot.lane.b32.xlu0 %v766, 12
      %v844 = vpop.permute.xlu0 %843
      %845 = vrot.lane.b32.xlu0 %v767, 12
      %v846 = vpop.permute.xlu0 %845
      %847 = vrot.lane.b32.xlu0 %v768, 12
      %v848 = vpop.permute.xlu0 %847
      %849 = vrot.lane.b32.xlu0 %v769, 12
      %v850 = vpop.permute.xlu0 %849
      %851 = vrot.lane.b32.xlu0 %v770, 12
      %v852 = vpop.permute.xlu0 %851
      %853 = vrot.lane.b32.xlu0 %v771, 12
      %v854 = vpop.permute.xlu0 %853
      %855 = vrot.lane.b32.xlu0 %v772, 12
      %v856 = vpop.permute.xlu0 %855
      %857 = vrot.lane.b32.xlu0 %v773, 12
      %v858 = vpop.permute.xlu0 %857
      %859 = vrot.lane.b32.xlu0 %v774, 12
      %v860 = vpop.permute.xlu0 %859
      %861 = vrot.lane.b32.xlu0 %v775, 12
      %v862 = vpop.permute.xlu0 %861
      %863 = vrot.lane.b32.xlu0 %v776, 12
      %v864 = vpop.permute.xlu0 %863
      %865 = vrot.lane.b32.xlu0 %v777, 12
      %v866 = vpop.permute.xlu0 %865
      %867 = vrot.lane.b32.xlu0 %v778, 12
      %v868 = vpop.permute.xlu0 %867
      %869 = vrot.lane.b32.xlu0 %v779, 12
      %v870 = vpop.permute.xlu0 %869
      %871 = vrot.lane.b32.xlu0 %v780, 12
      %v872 = vpop.permute.xlu0 %871
      %873 = vrot.lane.b32.xlu0 %v781, 12
      %v874 = vpop.permute.xlu0 %873
      %875 = vrot.lane.b32.xlu0 %v782, 12
      %v876 = vpop.permute.xlu0 %875
      %877 = vrot.lane.b32.xlu0 %v783, 12
      %v878 = vpop.permute.xlu0 %877
      %879 = vrot.lane.b32.xlu0 %v784, 12
      %v880 = vpop.permute.xlu0 %879
      %vm913 = vcmask 130144
      %914 = vst.msk [vmem:[#allocation3] sm:$0xff] %vm913, %v818
      %915 = vst.msk [vmem:[#allocation3 + $0x8] sm:$0xff] %vm913, %v820
      %916 = vst.msk [vmem:[#allocation3 + $0x10] sm:$0xff] %vm913, %v822
      %917 = vst.msk [vmem:[#allocation3 + $0x18] sm:$0xff] %vm913, %v824
      %918 = vst.msk [vmem:[#allocation3 + $0x20] sm:$0xff] %vm913, %v826
      %919 = vst.msk [vmem:[#allocation3 + $0x28] sm:$0xff] %vm913, %v828
      %920 = vst.msk [vmem:[#allocation3 + $0x30] sm:$0xff] %vm913, %v830
      %921 = vst.msk [vmem:[#allocation3 + $0x38] sm:$0xff] %vm913, %v832
      %922 = vst.msk [vmem:[#allocation3 + $0x40] sm:$0xff] %vm913, %v834
      %923 = vst.msk [vmem:[#allocation3 + $0x48] sm:$0xff] %vm913, %v836
      %924 = vst.msk [vmem:[#allocation3 + $0x50] sm:$0xff] %vm913, %v838
      %925 = vst.msk [vmem:[#allocation3 + $0x58] sm:$0xff] %vm913, %v840
      %926 = vst.msk [vmem:[#allocation3 + $0x60] sm:$0xff] %vm913, %v842
      %927 = vst.msk [vmem:[#allocation3 + $0x68] sm:$0xff] %vm913, %v844
      %928 = vst.msk [vmem:[#allocation3 + $0x70] sm:$0xff] %vm913, %v846
      %929 = vst.msk [vmem:[#allocation3 + $0x78] sm:$0xff] %vm913, %v848
      %930 = vst.msk [vmem:[#allocation3 + $0x80] sm:$0xff] %vm913, %v850
      %931 = vst.msk [vmem:[#allocation3 + $0x88] sm:$0xff] %vm913, %v852
      %932 = vst.msk [vmem:[#allocation3 + $0x90] sm:$0xff] %vm913, %v854
      %933 = vst.msk [vmem:[#allocation3 + $0x98] sm:$0xff] %vm913, %v856
      %934 = vst.msk [vmem:[#allocation3 + $0xa0] sm:$0xff] %vm913, %v858
      %935 = vst.msk [vmem:[#allocation3 + $0xa8] sm:$0xff] %vm913, %v860
      %936 = vst.msk [vmem:[#allocation3 + $0xb0] sm:$0xff] %vm913, %v862
      %937 = vst.msk [vmem:[#allocation3 + $0xb8] sm:$0xff] %vm913, %v864
      %938 = vst.msk [vmem:[#allocation3 + $0xc0] sm:$0xff] %vm913, %v866
      %939 = vst.msk [vmem:[#allocation3 + $0xc8] sm:$0xff] %vm913, %v868
      %940 = vst.msk [vmem:[#allocation3 + $0xd0] sm:$0xff] %vm913, %v870
      %941 = vst.msk [vmem:[#allocation3 + $0xd8] sm:$0xff] %vm913, %v872
      %942 = vst.msk [vmem:[#allocation3 + $0xe0] sm:$0xff] %vm913, %v874
      %943 = vst.msk [vmem:[#allocation3 + $0xe8] sm:$0xff] %vm913, %v876
      %944 = vst.msk [vmem:[#allocation3 + $0xf0] sm:$0xff] %vm913, %v878
      %945 = vst.msk [vmem:[#allocation3 + $0xf8] sm:$0xff] %vm913, %v880
      %v946 = vld [vmem:[%s270 + $0x1] sm:$0xff]
      %v947 = vld [vmem:[%s270 + $0x9] sm:$0xff]
      %v948 = vld [vmem:[%s270 + $0x19] sm:$0xff]
      %v949 = vld [vmem:[%s270 + $0x21] sm:$0xff]
      %v950 = vld [vmem:[%s270 + $0x31] sm:$0xff]
      %v951 = vld [vmem:[%s270 + $0x39] sm:$0xff]
      %v952 = vld [vmem:[%s270 + $0x49] sm:$0xff]
      %v953 = vld [vmem:[%s270 + $0x51] sm:$0xff]
      %v954 = vld [vmem:[%s270 + $0x61] sm:$0xff]
      %v955 = vld [vmem:[%s270 + $0x69] sm:$0xff]
      %v956 = vld [vmem:[%s270 + $0x79] sm:$0xff]
      %v957 = vld [vmem:[%s270 + $0x81] sm:$0xff]
      %v958 = vld [vmem:[%s270 + $0x91] sm:$0xff]
      %v959 = vld [vmem:[%s270 + $0x99] sm:$0xff]
      %v960 = vld [vmem:[%s270 + $0xa9] sm:$0xff]
      %v961 = vld [vmem:[%s270 + $0xb1] sm:$0xff]
      %v962 = vld [vmem:[%s270 + $0xc1] sm:$0xff]
      %v963 = vld [vmem:[%s270 + $0xc9] sm:$0xff]
      %v964 = vld [vmem:[%s270 + $0xd9] sm:$0xff]
      %v965 = vld [vmem:[%s270 + $0xe1] sm:$0xff]
      %v966 = vld [vmem:[%s270 + $0xf1] sm:$0xff]
      %v967 = vld [vmem:[%s270 + $0xf9] sm:$0xff]
      %v968 = vld [vmem:[%s270 + $0x109] sm:$0xff]
      %v969 = vld [vmem:[%s270 + $0x111] sm:$0xff]
      %v970 = vld [vmem:[%s270 + $0x121] sm:$0xff]
      %v971 = vld [vmem:[%s270 + $0x129] sm:$0xff]
      %v972 = vld [vmem:[%s270 + $0x139] sm:$0xff]
      %v973 = vld [vmem:[%s270 + $0x141] sm:$0xff]
      %v974 = vld [vmem:[%s270 + $0x151] sm:$0xff]
      %v975 = vld [vmem:[%s270 + $0x159] sm:$0xff]
      %v976 = vld [vmem:[%s270 + $0x169] sm:$0xff]
      %v977 = vld [vmem:[%s270 + $0x171] sm:$0xff]
      %1010 = vrot.lane.b32.xlu0 %v946, 16
      %v1011 = vpop.permute.xlu0 %1010
      %1012 = vrot.lane.b32.xlu0 %v947, 16
      %v1013 = vpop.permute.xlu0 %1012
      %1014 = vrot.lane.b32.xlu0 %v948, 16
      %v1015 = vpop.permute.xlu0 %1014
      %1016 = vrot.lane.b32.xlu0 %v949, 16
      %v1017 = vpop.permute.xlu0 %1016
      %1018 = vrot.lane.b32.xlu0 %v950, 16
      %v1019 = vpop.permute.xlu0 %1018
      %1020 = vrot.lane.b32.xlu0 %v951, 16
      %v1021 = vpop.permute.xlu0 %1020
      %1022 = vrot.lane.b32.xlu0 %v952, 16
      %v1023 = vpop.permute.xlu0 %1022
      %1024 = vrot.lane.b32.xlu0 %v953, 16
      %v1025 = vpop.permute.xlu0 %1024
      %1026 = vrot.lane.b32.xlu0 %v954, 16
      %v1027 = vpop.permute.xlu0 %1026
      %1028 = vrot.lane.b32.xlu0 %v955, 16
      %v1029 = vpop.permute.xlu0 %1028
      %1030 = vrot.lane.b32.xlu0 %v956, 16
      %v1031 = vpop.permute.xlu0 %1030
      %1032 = vrot.lane.b32.xlu0 %v957, 16
      %v1033 = vpop.permute.xlu0 %1032
      %1034 = vrot.lane.b32.xlu0 %v958, 16
      %v1035 = vpop.permute.xlu0 %1034
      %1036 = vrot.lane.b32.xlu0 %v959, 16
      %v1037 = vpop.permute.xlu0 %1036
      %1038 = vrot.lane.b32.xlu0 %v960, 16
      %v1039 = vpop.permute.xlu0 %1038
      %1040 = vrot.lane.b32.xlu0 %v961, 16
      %v1041 = vpop.permute.xlu0 %1040
      %1042 = vrot.lane.b32.xlu0 %v962, 16
      %v1043 = vpop.permute.xlu0 %1042
      %1044 = vrot.lane.b32.xlu0 %v963, 16
      %v1045 = vpop.permute.xlu0 %1044
      %1046 = vrot.lane.b32.xlu0 %v964, 16
      %v1047 = vpop.permute.xlu0 %1046
      %1048 = vrot.lane.b32.xlu0 %v965, 16
      %v1049 = vpop.permute.xlu0 %1048
      %1050 = vrot.lane.b32.xlu0 %v966, 16
      %v1051 = vpop.permute.xlu0 %1050
      %1052 = vrot.lane.b32.xlu0 %v967, 16
      %v1053 = vpop.permute.xlu0 %1052
      %1054 = vrot.lane.b32.xlu0 %v968, 16
      %v1055 = vpop.permute.xlu0 %1054
      %1056 = vrot.lane.b32.xlu0 %v969, 16
      %v1057 = vpop.permute.xlu0 %1056
      %1058 = vrot.lane.b32.xlu0 %v970, 16
      %v1059 = vpop.permute.xlu0 %1058
      %1060 = vrot.lane.b32.xlu0 %v971, 16
      %v1061 = vpop.permute.xlu0 %1060
      %1062 = vrot.lane.b32.xlu0 %v972, 16
      %v1063 = vpop.permute.xlu0 %1062
      %1064 = vrot.lane.b32.xlu0 %v973, 16
      %v1065 = vpop.permute.xlu0 %1064
      %1066 = vrot.lane.b32.xlu0 %v974, 16
      %v1067 = vpop.permute.xlu0 %1066
      %1068 = vrot.lane.b32.xlu0 %v975, 16
      %v1069 = vpop.permute.xlu0 %1068
      %1070 = vrot.lane.b32.xlu0 %v976, 16
      %v1071 = vpop.permute.xlu0 %1070
      %1072 = vrot.lane.b32.xlu0 %v977, 16
      %v1073 = vpop.permute.xlu0 %1072
      %vm1106 = vcmask 162944
      %1107 = vst.msk [vmem:[#allocation3] sm:$0xff] %vm1106, %v1011
      %1108 = vst.msk [vmem:[#allocation3 + $0x8] sm:$0xff] %vm1106, %v1013
      %1109 = vst.msk [vmem:[#allocation3 + $0x10] sm:$0xff] %vm1106, %v1015
      %1110 = vst.msk [vmem:[#allocation3 + $0x18] sm:$0xff] %vm1106, %v1017
      %1111 = vst.msk [vmem:[#allocation3 + $0x20] sm:$0xff] %vm1106, %v1019
      %1112 = vst.msk [vmem:[#allocation3 + $0x28] sm:$0xff] %vm1106, %v1021
      %1113 = vst.msk [vmem:[#allocation3 + $0x30] sm:$0xff] %vm1106, %v1023
      %1114 = vst.msk [vmem:[#allocation3 + $0x38] sm:$0xff] %vm1106, %v1025
      %1115 = vst.msk [vmem:[#allocation3 + $0x40] sm:$0xff] %vm1106, %v1027
      %1116 = vst.msk [vmem:[#allocation3 + $0x48] sm:$0xff] %vm1106, %v1029
      %1117 = vst.msk [vmem:[#allocation3 + $0x50] sm:$0xff] %vm1106, %v1031
      %1118 = vst.msk [vmem:[#allocation3 + $0x58] sm:$0xff] %vm1106, %v1033
      %1119 = vst.msk [vmem:[#allocation3 + $0x60] sm:$0xff] %vm1106, %v1035
      %1120 = vst.msk [vmem:[#allocation3 + $0x68] sm:$0xff] %vm1106, %v1037
      %1121 = vst.msk [vmem:[#allocation3 + $0x70] sm:$0xff] %vm1106, %v1039
      %1122 = vst.msk [vmem:[#allocation3 + $0x78] sm:$0xff] %vm1106, %v1041
      %1123 = vst.msk [vmem:[#allocation3 + $0x80] sm:$0xff] %vm1106, %v1043
      %1124 = vst.msk [vmem:[#allocation3 + $0x88] sm:$0xff] %vm1106, %v1045
      %1125 = vst.msk [vmem:[#allocation3 + $0x90] sm:$0xff] %vm1106, %v1047
      %1126 = vst.msk [vmem:[#allocation3 + $0x98] sm:$0xff] %vm1106, %v1049
      %1127 = vst.msk [vmem:[#allocation3 + $0xa0] sm:$0xff] %vm1106, %v1051
      %1128 = vst.msk [vmem:[#allocation3 + $0xa8] sm:$0xff] %vm1106, %v1053
      %1129 = vst.msk [vmem:[#allocation3 + $0xb0] sm:$0xff] %vm1106, %v1055
      %1130 = vst.msk [vmem:[#allocation3 + $0xb8] sm:$0xff] %vm1106, %v1057
      %1131 = vst.msk [vmem:[#allocation3 + $0xc0] sm:$0xff] %vm1106, %v1059
      %1132 = vst.msk [vmem:[#allocation3 + $0xc8] sm:$0xff] %vm1106, %v1061
      %1133 = vst.msk [vmem:[#allocation3 + $0xd0] sm:$0xff] %vm1106, %v1063
      %1134 = vst.msk [vmem:[#allocation3 + $0xd8] sm:$0xff] %vm1106, %v1065
      %1135 = vst.msk [vmem:[#allocation3 + $0xe0] sm:$0xff] %vm1106, %v1067
      %1136 = vst.msk [vmem:[#allocation3 + $0xe8] sm:$0xff] %vm1106, %v1069
      %1137 = vst.msk [vmem:[#allocation3 + $0xf0] sm:$0xff] %vm1106, %v1071
      %1138 = vst.msk [vmem:[#allocation3 + $0xf8] sm:$0xff] %vm1106, %v1073
      %v1139 = vld [vmem:[%s270 + $0x2] sm:$0xff]
      %v1140 = vld [vmem:[%s270 + $0xa] sm:$0xff]
      %v1141 = vld [vmem:[%s270 + $0x1a] sm:$0xff]
      %v1142 = vld [vmem:[%s270 + $0x22] sm:$0xff]
      %v1143 = vld [vmem:[%s270 + $0x32] sm:$0xff]
      %v1144 = vld [vmem:[%s270 + $0x3a] sm:$0xff]
      %v1145 = vld [vmem:[%s270 + $0x4a] sm:$0xff]
      %v1146 = vld [vmem:[%s270 + $0x52] sm:$0xff]
      %v1147 = vld [vmem:[%s270 + $0x62] sm:$0xff]
      %v1148 = vld [vmem:[%s270 + $0x6a] sm:$0xff]
      %v1149 = vld [vmem:[%s270 + $0x7a] sm:$0xff]
      %v1150 = vld [vmem:[%s270 + $0x82] sm:$0xff]
      %v1151 = vld [vmem:[%s270 + $0x92] sm:$0xff]
      %v1152 = vld [vmem:[%s270 + $0x9a] sm:$0xff]
      %v1153 = vld [vmem:[%s270 + $0xaa] sm:$0xff]
      %v1154 = vld [vmem:[%s270 + $0xb2] sm:$0xff]
      %v1155 = vld [vmem:[%s270 + $0xc2] sm:$0xff]
      %v1156 = vld [vmem:[%s270 + $0xca] sm:$0xff]
      %v1157 = vld [vmem:[%s270 + $0xda] sm:$0xff]
      %v1158 = vld [vmem:[%s270 + $0xe2] sm:$0xff]
      %v1159 = vld [vmem:[%s270 + $0xf2] sm:$0xff]
      %v1160 = vld [vmem:[%s270 + $0xfa] sm:$0xff]
      %v1161 = vld [vmem:[%s270 + $0x10a] sm:$0xff]
      %v1162 = vld [vmem:[%s270 + $0x112] sm:$0xff]
      %v1163 = vld [vmem:[%s270 + $0x122] sm:$0xff]
      %v1164 = vld [vmem:[%s270 + $0x12a] sm:$0xff]
      %v1165 = vld [vmem:[%s270 + $0x13a] sm:$0xff]
      %v1166 = vld [vmem:[%s270 + $0x142] sm:$0xff]
      %v1167 = vld [vmem:[%s270 + $0x152] sm:$0xff]
      %v1168 = vld [vmem:[%s270 + $0x15a] sm:$0xff]
      %v1169 = vld [vmem:[%s270 + $0x16a] sm:$0xff]
      %v1170 = vld [vmem:[%s270 + $0x172] sm:$0xff]
      %1203 = vrot.lane.b32.xlu0 %v1139, 20
      %v1204 = vpop.permute.xlu0 %1203
      %1205 = vrot.lane.b32.xlu0 %v1140, 20
      %v1206 = vpop.permute.xlu0 %1205
      %1207 = vrot.lane.b32.xlu0 %v1141, 20
      %v1208 = vpop.permute.xlu0 %1207
      %1209 = vrot.lane.b32.xlu0 %v1142, 20
      %v1210 = vpop.permute.xlu0 %1209
      %1211 = vrot.lane.b32.xlu0 %v1143, 20
      %v1212 = vpop.permute.xlu0 %1211
      %1213 = vrot.lane.b32.xlu0 %v1144, 20
      %v1214 = vpop.permute.xlu0 %1213
      %1215 = vrot.lane.b32.xlu0 %v1145, 20
      %v1216 = vpop.permute.xlu0 %1215
      %1217 = vrot.lane.b32.xlu0 %v1146, 20
      %v1218 = vpop.permute.xlu0 %1217
      %1219 = vrot.lane.b32.xlu0 %v1147, 20
      %v1220 = vpop.permute.xlu0 %1219
      %1221 = vrot.lane.b32.xlu0 %v1148, 20
      %v1222 = vpop.permute.xlu0 %1221
      %1223 = vrot.lane.b32.xlu0 %v1149, 20
      %v1224 = vpop.permute.xlu0 %1223
      %1225 = vrot.lane.b32.xlu0 %v1150, 20
      %v1226 = vpop.permute.xlu0 %1225
      %1227 = vrot.lane.b32.xlu0 %v1151, 20
      %v1228 = vpop.permute.xlu0 %1227
      %1229 = vrot.lane.b32.xlu0 %v1152, 20
      %v1230 = vpop.permute.xlu0 %1229
      %1231 = vrot.lane.b32.xlu0 %v1153, 20
      %v1232 = vpop.permute.xlu0 %1231
      %1233 = vrot.lane.b32.xlu0 %v1154, 20
      %v1234 = vpop.permute.xlu0 %1233
      %1235 = vrot.lane.b32.xlu0 %v1155, 20
      %v1236 = vpop.permute.xlu0 %1235
      %1237 = vrot.lane.b32.xlu0 %v1156, 20
      %v1238 = vpop.permute.xlu0 %1237
      %1239 = vrot.lane.b32.xlu0 %v1157, 20
      %v1240 = vpop.permute.xlu0 %1239
      %1241 = vrot.lane.b32.xlu0 %v1158, 20
      %v1242 = vpop.permute.xlu0 %1241
      %1243 = vrot.lane.b32.xlu0 %v1159, 20
      %v1244 = vpop.permute.xlu0 %1243
      %1245 = vrot.lane.b32.xlu0 %v1160, 20
      %v1246 = vpop.permute.xlu0 %1245
      %1247 = vrot.lane.b32.xlu0 %v1161, 20
      %v1248 = vpop.permute.xlu0 %1247
      %1249 = vrot.lane.b32.xlu0 %v1162, 20
      %v1250 = vpop.permute.xlu0 %1249
      %1251 = vrot.lane.b32.xlu0 %v1163, 20
      %v1252 = vpop.permute.xlu0 %1251
      %1253 = vrot.lane.b32.xlu0 %v1164, 20
      %v1254 = vpop.permute.xlu0 %1253
      %1255 = vrot.lane.b32.xlu0 %v1165, 20
      %v1256 = vpop.permute.xlu0 %1255
      %1257 = vrot.lane.b32.xlu0 %v1166, 20
      %v1258 = vpop.permute.xlu0 %1257
      %1259 = vrot.lane.b32.xlu0 %v1167, 20
      %v1260 = vpop.permute.xlu0 %1259
      %1261 = vrot.lane.b32.xlu0 %v1168, 20
      %v1262 = vpop.permute.xlu0 %1261
      %1263 = vrot.lane.b32.xlu0 %v1169, 20
      %v1264 = vpop.permute.xlu0 %1263
      %1265 = vrot.lane.b32.xlu0 %v1170, 20
      %v1266 = vpop.permute.xlu0 %1265
      %vm1299 = vcmask 195744
      %1300 = vst.msk [vmem:[#allocation3] sm:$0xff] %vm1299, %v1204
      %1301 = vst.msk [vmem:[#allocation3 + $0x8] sm:$0xff] %vm1299, %v1206
      %1302 = vst.msk [vmem:[#allocation3 + $0x10] sm:$0xff] %vm1299, %v1208
      %1303 = vst.msk [vmem:[#allocation3 + $0x18] sm:$0xff] %vm1299, %v1210
      %1304 = vst.msk [vmem:[#allocation3 + $0x20] sm:$0xff] %vm1299, %v1212
      %1305 = vst.msk [vmem:[#allocation3 + $0x28] sm:$0xff] %vm1299, %v1214
      %1306 = vst.msk [vmem:[#allocation3 + $0x30] sm:$0xff] %vm1299, %v1216
      %1307 = vst.msk [vmem:[#allocation3 + $0x38] sm:$0xff] %vm1299, %v1218
      %1308 = vst.msk [vmem:[#allocation3 + $0x40] sm:$0xff] %vm1299, %v1220
      %1309 = vst.msk [vmem:[#allocation3 + $0x48] sm:$0xff] %vm1299, %v1222
      %1310 = vst.msk [vmem:[#allocation3 + $0x50] sm:$0xff] %vm1299, %v1224
      %1311 = vst.msk [vmem:[#allocation3 + $0x58] sm:$0xff] %vm1299, %v1226
      %1312 = vst.msk [vmem:[#allocation3 + $0x60] sm:$0xff] %vm1299, %v1228
      %1313 = vst.msk [vmem:[#allocation3 + $0x68] sm:$0xff] %vm1299, %v1230
      %1314 = vst.msk [vmem:[#allocation3 + $0x70] sm:$0xff] %vm1299, %v1232
      %1315 = vst.msk [vmem:[#allocation3 + $0x78] sm:$0xff] %vm1299, %v1234
      %1316 = vst.msk [vmem:[#allocation3 + $0x80] sm:$0xff] %vm1299, %v1236
      %1317 = vst.msk [vmem:[#allocation3 + $0x88] sm:$0xff] %vm1299, %v1238
      %1318 = vst.msk [vmem:[#allocation3 + $0x90] sm:$0xff] %vm1299, %v1240
      %1319 = vst.msk [vmem:[#allocation3 + $0x98] sm:$0xff] %vm1299, %v1242
      %1320 = vst.msk [vmem:[#allocation3 + $0xa0] sm:$0xff] %vm1299, %v1244
      %1321 = vst.msk [vmem:[#allocation3 + $0xa8] sm:$0xff] %vm1299, %v1246
      %1322 = vst.msk [vmem:[#allocation3 + $0xb0] sm:$0xff] %vm1299, %v1248
      %1323 = vst.msk [vmem:[#allocation3 + $0xb8] sm:$0xff] %vm1299, %v1250
      %1324 = vst.msk [vmem:[#allocation3 + $0xc0] sm:$0xff] %vm1299, %v1252
      %1325 = vst.msk [vmem:[#allocation3 + $0xc8] sm:$0xff] %vm1299, %v1254
      %1326 = vst.msk [vmem:[#allocation3 + $0xd0] sm:$0xff] %vm1299, %v1256
      %1327 = vst.msk [vmem:[#allocation3 + $0xd8] sm:$0xff] %vm1299, %v1258
      %1328 = vst.msk [vmem:[#allocation3 + $0xe0] sm:$0xff] %vm1299, %v1260
      %1329 = vst.msk [vmem:[#allocation3 + $0xe8] sm:$0xff] %vm1299, %v1262
      %1330 = vst.msk [vmem:[#allocation3 + $0xf0] sm:$0xff] %vm1299, %v1264
      %1331 = vst.msk [vmem:[#allocation3 + $0xf8] sm:$0xff] %vm1299, %v1266
      %s1332 = scalar_lea.vmem [#allocation2], 48
      %v1333 = vld [vmem:[%s1332] sm:$0xff]
      %v1334 = vld [vmem:[%s1332 + $0x8] sm:$0xff]
      %v1335 = vld [vmem:[%s1332 + $0x18] sm:$0xff]
      %v1336 = vld [vmem:[%s1332 + $0x20] sm:$0xff]
      %v1337 = vld [vmem:[%s1332 + $0x30] sm:$0xff]
      %v1338 = vld [vmem:[%s1332 + $0x38] sm:$0xff]
      %v1339 = vld [vmem:[%s1332 + $0x48] sm:$0xff]
      %v1340 = vld [vmem:[%s1332 + $0x50] sm:$0xff]
      %v1341 = vld [vmem:[%s1332 + $0x60] sm:$0xff]
      %v1342 = vld [vmem:[%s1332 + $0x68] sm:$0xff]
      %v1343 = vld [vmem:[%s1332 + $0x78] sm:$0xff]
      %v1344 = vld [vmem:[%s1332 + $0x80] sm:$0xff]
      %v1345 = vld [vmem:[%s1332 + $0x90] sm:$0xff]
      %v1346 = vld [vmem:[%s1332 + $0x98] sm:$0xff]
      %v1347 = vld [vmem:[%s1332 + $0xa8] sm:$0xff]
      %v1348 = vld [vmem:[%s1332 + $0xb0] sm:$0xff]
      %v1349 = vld [vmem:[%s1332 + $0xc0] sm:$0xff]
      %v1350 = vld [vmem:[%s1332 + $0xc8] sm:$0xff]
      %v1351 = vld [vmem:[%s1332 + $0xd8] sm:$0xff]
      %v1352 = vld [vmem:[%s1332 + $0xe0] sm:$0xff]
      %v1353 = vld [vmem:[%s1332 + $0xf0] sm:$0xff]
      %v1354 = vld [vmem:[%s1332 + $0xf8] sm:$0xff]
      %v1355 = vld [vmem:[%s1332 + $0x108] sm:$0xff]
      %v1356 = vld [vmem:[%s1332 + $0x110] sm:$0xff]
      %v1357 = vld [vmem:[%s1332 + $0x120] sm:$0xff]
      %v1358 = vld [vmem:[%s1332 + $0x128] sm:$0xff]
      %v1359 = vld [vmem:[%s1332 + $0x138] sm:$0xff]
      %v1360 = vld [vmem:[%s1332 + $0x140] sm:$0xff]
      %v1361 = vld [vmem:[%s1332 + $0x150] sm:$0xff]
      %v1362 = vld [vmem:[%s1332 + $0x158] sm:$0xff]
      %v1363 = vld [vmem:[%s1332 + $0x168] sm:$0xff]
      %v1364 = vld [vmem:[%s1332 + $0x170] sm:$0xff]
      %1397 = vrot.lane.b32.xlu0 %v1333, 24
      %v1398 = vpop.permute.xlu0 %1397
      %1399 = vrot.lane.b32.xlu0 %v1334, 24
      %v1400 = vpop.permute.xlu0 %1399
      %1401 = vrot.lane.b32.xlu0 %v1335, 24
      %v1402 = vpop.permute.xlu0 %1401
      %1403 = vrot.lane.b32.xlu0 %v1336, 24
      %v1404 = vpop.permute.xlu0 %1403
      %1405 = vrot.lane.b32.xlu0 %v1337, 24
      %v1406 = vpop.permute.xlu0 %1405
      %1407 = vrot.lane.b32.xlu0 %v1338, 24
      %v1408 = vpop.permute.xlu0 %1407
      %1409 = vrot.lane.b32.xlu0 %v1339, 24
      %v1410 = vpop.permute.xlu0 %1409
      %1411 = vrot.lane.b32.xlu0 %v1340, 24
      %v1412 = vpop.permute.xlu0 %1411
      %1413 = vrot.lane.b32.xlu0 %v1341, 24
      %v1414 = vpop.permute.xlu0 %1413
      %1415 = vrot.lane.b32.xlu0 %v1342, 24
      %v1416 = vpop.permute.xlu0 %1415
      %1417 = vrot.lane.b32.xlu0 %v1343, 24
      %v1418 = vpop.permute.xlu0 %1417
      %1419 = vrot.lane.b32.xlu0 %v1344, 24
      %v1420 = vpop.permute.xlu0 %1419
      %1421 = vrot.lane.b32.xlu0 %v1345, 24
      %v1422 = vpop.permute.xlu0 %1421
      %1423 = vrot.lane.b32.xlu0 %v1346, 24
      %v1424 = vpop.permute.xlu0 %1423
      %1425 = vrot.lane.b32.xlu0 %v1347, 24
      %v1426 = vpop.permute.xlu0 %1425
      %1427 = vrot.lane.b32.xlu0 %v1348, 24
      %v1428 = vpop.permute.xlu0 %1427
      %1429 = vrot.lane.b32.xlu0 %v1349, 24
      %v1430 = vpop.permute.xlu0 %1429
      %1431 = vrot.lane.b32.xlu0 %v1350, 24
      %v1432 = vpop.permute.xlu0 %1431
      %1433 = vrot.lane.b32.xlu0 %v1351, 24
      %v1434 = vpop.permute.xlu0 %1433
      %1435 = vrot.lane.b32.xlu0 %v1352, 24
      %v1436 = vpop.permute.xlu0 %1435
      %1437 = vrot.lane.b32.xlu0 %v1353, 24
      %v1438 = vpop.permute.xlu0 %1437
      %1439 = vrot.lane.b32.xlu0 %v1354, 24
      %v1440 = vpop.permute.xlu0 %1439
      %1441 = vrot.lane.b32.xlu0 %v1355, 24
      %v1442 = vpop.permute.xlu0 %1441
      %1443 = vrot.lane.b32.xlu0 %v1356, 24
      %v1444 = vpop.permute.xlu0 %1443
      %1445 = vrot.lane.b32.xlu0 %v1357, 24
      %v1446 = vpop.permute.xlu0 %1445
      %1447 = vrot.lane.b32.xlu0 %v1358, 24
      %v1448 = vpop.permute.xlu0 %1447
      %1449 = vrot.lane.b32.xlu0 %v1359, 24
      %v1450 = vpop.permute.xlu0 %1449
      %1451 = vrot.lane.b32.xlu0 %v1360, 24
      %v1452 = vpop.permute.xlu0 %1451
      %1453 = vrot.lane.b32.xlu0 %v1361, 24
      %v1454 = vpop.permute.xlu0 %1453
      %1455 = vrot.lane.b32.xlu0 %v1362, 24
      %v1456 = vpop.permute.xlu0 %1455
      %1457 = vrot.lane.b32.xlu0 %v1363, 24
      %v1458 = vpop.permute.xlu0 %1457
      %1459 = vrot.lane.b32.xlu0 %v1364, 24
      %v1460 = vpop.permute.xlu0 %1459
      %vm1493 = vcmask 228544
      %1494 = vst.msk [vmem:[#allocation3] sm:$0xff] %vm1493, %v1398
      %1495 = vst.msk [vmem:[#allocation3 + $0x8] sm:$0xff] %vm1493, %v1400
      %1496 = vst.msk [vmem:[#allocation3 + $0x10] sm:$0xff] %vm1493, %v1402
      %1497 = vst.msk [vmem:[#allocation3 + $0x18] sm:$0xff] %vm1493, %v1404
      %1498 = vst.msk [vmem:[#allocation3 + $0x20] sm:$0xff] %vm1493, %v1406
      %1499 = vst.msk [vmem:[#allocation3 + $0x28] sm:$0xff] %vm1493, %v1408
      %1500 = vst.msk [vmem:[#allocation3 + $0x30] sm:$0xff] %vm1493, %v1410
      %1501 = vst.msk [vmem:[#allocation3 + $0x38] sm:$0xff] %vm1493, %v1412
      %1502 = vst.msk [vmem:[#allocation3 + $0x40] sm:$0xff] %vm1493, %v1414
      %1503 = vst.msk [vmem:[#allocation3 + $0x48] sm:$0xff] %vm1493, %v1416
      %1504 = vst.msk [vmem:[#allocation3 + $0x50] sm:$0xff] %vm1493, %v1418
      %1505 = vst.msk [vmem:[#allocation3 + $0x58] sm:$0xff] %vm1493, %v1420
      %1506 = vst.msk [vmem:[#allocation3 + $0x60] sm:$0xff] %vm1493, %v1422
      %1507 = vst.msk [vmem:[#allocation3 + $0x68] sm:$0xff] %vm1493, %v1424
      %1508 = vst.msk [vmem:[#allocation3 + $0x70] sm:$0xff] %vm1493, %v1426
      %1509 = vst.msk [vmem:[#allocation3 + $0x78] sm:$0xff] %vm1493, %v1428
      %1510 = vst.msk [vmem:[#allocation3 + $0x80] sm:$0xff] %vm1493, %v1430
      %1511 = vst.msk [vmem:[#allocation3 + $0x88] sm:$0xff] %vm1493, %v1432
      %1512 = vst.msk [vmem:[#allocation3 + $0x90] sm:$0xff] %vm1493, %v1434
      %1513 = vst.msk [vmem:[#allocation3 + $0x98] sm:$0xff] %vm1493, %v1436
      %1514 = vst.msk [vmem:[#allocation3 + $0xa0] sm:$0xff] %vm1493, %v1438
      %1515 = vst.msk [vmem:[#allocation3 + $0xa8] sm:$0xff] %vm1493, %v1440
      %1516 = vst.msk [vmem:[#allocation3 + $0xb0] sm:$0xff] %vm1493, %v1442
      %1517 = vst.msk [vmem:[#allocation3 + $0xb8] sm:$0xff] %vm1493, %v1444
      %1518 = vst.msk [vmem:[#allocation3 + $0xc0] sm:$0xff] %vm1493, %v1446
      %1519 = vst.msk [vmem:[#allocation3 + $0xc8] sm:$0xff] %vm1493, %v1448
      %1520 = vst.msk [vmem:[#allocation3 + $0xd0] sm:$0xff] %vm1493, %v1450
      %1521 = vst.msk [vmem:[#allocation3 + $0xd8] sm:$0xff] %vm1493, %v1452
      %1522 = vst.msk [vmem:[#allocation3 + $0xe0] sm:$0xff] %vm1493, %v1454
      %1523 = vst.msk [vmem:[#allocation3 + $0xe8] sm:$0xff] %vm1493, %v1456
      %1524 = vst.msk [vmem:[#allocation3 + $0xf0] sm:$0xff] %vm1493, %v1458
      %1525 = vst.msk [vmem:[#allocation3 + $0xf8] sm:$0xff] %vm1493, %v1460
      %v1526 = vld [vmem:[%s1332 + $0x1] sm:$0xff]
      %v1527 = vld [vmem:[%s1332 + $0x9] sm:$0xff]
      %v1528 = vld [vmem:[%s1332 + $0x19] sm:$0xff]
      %v1529 = vld [vmem:[%s1332 + $0x21] sm:$0xff]
      %v1530 = vld [vmem:[%s1332 + $0x31] sm:$0xff]
      %v1531 = vld [vmem:[%s1332 + $0x39] sm:$0xff]
      %v1532 = vld [vmem:[%s1332 + $0x49] sm:$0xff]
      %v1533 = vld [vmem:[%s1332 + $0x51] sm:$0xff]
      %v1534 = vld [vmem:[%s1332 + $0x61] sm:$0xff]
      %v1535 = vld [vmem:[%s1332 + $0x69] sm:$0xff]
      %v1536 = vld [vmem:[%s1332 + $0x79] sm:$0xff]
      %v1537 = vld [vmem:[%s1332 + $0x81] sm:$0xff]
      %v1538 = vld [vmem:[%s1332 + $0x91] sm:$0xff]
      %v1539 = vld [vmem:[%s1332 + $0x99] sm:$0xff]
      %v1540 = vld [vmem:[%s1332 + $0xa9] sm:$0xff]
      %v1541 = vld [vmem:[%s1332 + $0xb1] sm:$0xff]
      %v1542 = vld [vmem:[%s1332 + $0xc1] sm:$0xff]
      %v1543 = vld [vmem:[%s1332 + $0xc9] sm:$0xff]
      %v1544 = vld [vmem:[%s1332 + $0xd9] sm:$0xff]
      %v1545 = vld [vmem:[%s1332 + $0xe1] sm:$0xff]
      %v1546 = vld [vmem:[%s1332 + $0xf1] sm:$0xff]
      %v1547 = vld [vmem:[%s1332 + $0xf9] sm:$0xff]
      %v1548 = vld [vmem:[%s1332 + $0x109] sm:$0xff]
      %v1549 = vld [vmem:[%s1332 + $0x111] sm:$0xff]
      %v1550 = vld [vmem:[%s1332 + $0x121] sm:$0xff]
      %v1551 = vld [vmem:[%s1332 + $0x129] sm:$0xff]
      %v1552 = vld [vmem:[%s1332 + $0x139] sm:$0xff]
      %v1553 = vld [vmem:[%s1332 + $0x141] sm:$0xff]
      %v1554 = vld [vmem:[%s1332 + $0x151] sm:$0xff]
      %v1555 = vld [vmem:[%s1332 + $0x159] sm:$0xff]
      %v1556 = vld [vmem:[%s1332 + $0x169] sm:$0xff]
      %v1557 = vld [vmem:[%s1332 + $0x171] sm:$0xff]
      %1590 = vrot.lane.b32.xlu0 %v1526, 28
      %v1591 = vpop.permute.xlu0 %1590
      %1592 = vrot.lane.b32.xlu0 %v1527, 28
      %v1593 = vpop.permute.xlu0 %1592
      %1594 = vrot.lane.b32.xlu0 %v1528, 28
      %v1595 = vpop.permute.xlu0 %1594
      %1596 = vrot.lane.b32.xlu0 %v1529, 28
      %v1597 = vpop.permute.xlu0 %1596
      %1598 = vrot.lane.b32.xlu0 %v1530, 28
      %v1599 = vpop.permute.xlu0 %1598
      %1600 = vrot.lane.b32.xlu0 %v1531, 28
      %v1601 = vpop.permute.xlu0 %1600
      %1602 = vrot.lane.b32.xlu0 %v1532, 28
      %v1603 = vpop.permute.xlu0 %1602
      %1604 = vrot.lane.b32.xlu0 %v1533, 28
      %v1605 = vpop.permute.xlu0 %1604
      %1606 = vrot.lane.b32.xlu0 %v1534, 28
      %v1607 = vpop.permute.xlu0 %1606
      %1608 = vrot.lane.b32.xlu0 %v1535, 28
      %v1609 = vpop.permute.xlu0 %1608
      %1610 = vrot.lane.b32.xlu0 %v1536, 28
      %v1611 = vpop.permute.xlu0 %1610
      %1612 = vrot.lane.b32.xlu0 %v1537, 28
      %v1613 = vpop.permute.xlu0 %1612
      %1614 = vrot.lane.b32.xlu0 %v1538, 28
      %v1615 = vpop.permute.xlu0 %1614
      %1616 = vrot.lane.b32.xlu0 %v1539, 28
      %v1617 = vpop.permute.xlu0 %1616
      %1618 = vrot.lane.b32.xlu0 %v1540, 28
      %v1619 = vpop.permute.xlu0 %1618
      %1620 = vrot.lane.b32.xlu0 %v1541, 28
      %v1621 = vpop.permute.xlu0 %1620
      %1622 = vrot.lane.b32.xlu0 %v1542, 28
      %v1623 = vpop.permute.xlu0 %1622
      %1624 = vrot.lane.b32.xlu0 %v1543, 28
      %v1625 = vpop.permute.xlu0 %1624
      %1626 = vrot.lane.b32.xlu0 %v1544, 28
      %v1627 = vpop.permute.xlu0 %1626
      %1628 = vrot.lane.b32.xlu0 %v1545, 28
      %v1629 = vpop.permute.xlu0 %1628
      %1630 = vrot.lane.b32.xlu0 %v1546, 28
      %v1631 = vpop.permute.xlu0 %1630
      %1632 = vrot.lane.b32.xlu0 %v1547, 28
      %v1633 = vpop.permute.xlu0 %1632
      %1634 = vrot.lane.b32.xlu0 %v1548, 28
      %v1635 = vpop.permute.xlu0 %1634
      %1636 = vrot.lane.b32.xlu0 %v1549, 28
      %v1637 = vpop.permute.xlu0 %1636
      %1638 = vrot.lane.b32.xlu0 %v1550, 28
      %v1639 = vpop.permute.xlu0 %1638
      %1640 = vrot.lane.b32.xlu0 %v1551, 28
      %v1641 = vpop.permute.xlu0 %1640
      %1642 = vrot.lane.b32.xlu0 %v1552, 28
      %v1643 = vpop.permute.xlu0 %1642
      %1644 = vrot.lane.b32.xlu0 %v1553, 28
      %v1645 = vpop.permute.xlu0 %1644
      %1646 = vrot.lane.b32.xlu0 %v1554, 28
      %v1647 = vpop.permute.xlu0 %1646
      %1648 = vrot.lane.b32.xlu0 %v1555, 28
      %v1649 = vpop.permute.xlu0 %1648
      %1650 = vrot.lane.b32.xlu0 %v1556, 28
      %v1651 = vpop.permute.xlu0 %1650
      %1652 = vrot.lane.b32.xlu0 %v1557, 28
      %v1653 = vpop.permute.xlu0 %1652
      %vm1686 = vcmask 261344
      %1687 = vst.msk [vmem:[#allocation3] sm:$0xff] %vm1686, %v1591
      %1688 = vst.msk [vmem:[#allocation3 + $0x8] sm:$0xff] %vm1686, %v1593
      %1689 = vst.msk [vmem:[#allocation3 + $0x10] sm:$0xff] %vm1686, %v1595
      %1690 = vst.msk [vmem:[#allocation3 + $0x18] sm:$0xff] %vm1686, %v1597
      %1691 = vst.msk [vmem:[#allocation3 + $0x20] sm:$0xff] %vm1686, %v1599
      %1692 = vst.msk [vmem:[#allocation3 + $0x28] sm:$0xff] %vm1686, %v1601
      %1693 = vst.msk [vmem:[#allocation3 + $0x30] sm:$0xff] %vm1686, %v1603
      %1694 = vst.msk [vmem:[#allocation3 + $0x38] sm:$0xff] %vm1686, %v1605
      %1695 = vst.msk [vmem:[#allocation3 + $0x40] sm:$0xff] %vm1686, %v1607
      %1696 = vst.msk [vmem:[#allocation3 + $0x48] sm:$0xff] %vm1686, %v1609
      %1697 = vst.msk [vmem:[#allocation3 + $0x50] sm:$0xff] %vm1686, %v1611
      %1698 = vst.msk [vmem:[#allocation3 + $0x58] sm:$0xff] %vm1686, %v1613
      %1699 = vst.msk [vmem:[#allocation3 + $0x60] sm:$0xff] %vm1686, %v1615
      %1700 = vst.msk [vmem:[#allocation3 + $0x68] sm:$0xff] %vm1686, %v1617
      %1701 = vst.msk [vmem:[#allocation3 + $0x70] sm:$0xff] %vm1686, %v1619
      %1702 = vst.msk [vmem:[#allocation3 + $0x78] sm:$0xff] %vm1686, %v1621
      %1703 = vst.msk [vmem:[#allocation3 + $0x80] sm:$0xff] %vm1686, %v1623
      %1704 = vst.msk [vmem:[#allocation3 + $0x88] sm:$0xff] %vm1686, %v1625
      %1705 = vst.msk [vmem:[#allocation3 + $0x90] sm:$0xff] %vm1686, %v1627
      %1706 = vst.msk [vmem:[#allocation3 + $0x98] sm:$0xff] %vm1686, %v1629
      %1707 = vst.msk [vmem:[#allocation3 + $0xa0] sm:$0xff] %vm1686, %v1631
      %1708 = vst.msk [vmem:[#allocation3 + $0xa8] sm:$0xff] %vm1686, %v1633
      %1709 = vst.msk [vmem:[#allocation3 + $0xb0] sm:$0xff] %vm1686, %v1635
      %1710 = vst.msk [vmem:[#allocation3 + $0xb8] sm:$0xff] %vm1686, %v1637
      %1711 = vst.msk [vmem:[#allocation3 + $0xc0] sm:$0xff] %vm1686, %v1639
      %1712 = vst.msk [vmem:[#allocation3 + $0xc8] sm:$0xff] %vm1686, %v1641
      %1713 = vst.msk [vmem:[#allocation3 + $0xd0] sm:$0xff] %vm1686, %v1643
      %1714 = vst.msk [vmem:[#allocation3 + $0xd8] sm:$0xff] %vm1686, %v1645
      %1715 = vst.msk [vmem:[#allocation3 + $0xe0] sm:$0xff] %vm1686, %v1647
      %1716 = vst.msk [vmem:[#allocation3 + $0xe8] sm:$0xff] %vm1686, %v1649
      %1717 = vst.msk [vmem:[#allocation3 + $0xf0] sm:$0xff] %vm1686, %v1651
      %1718 = vst.msk [vmem:[#allocation3 + $0xf8] sm:$0xff] %vm1686, %v1653
      %v1719 = vld [vmem:[%s1332 + $0x2] sm:$0xff]
      %v1720 = vld [vmem:[%s1332 + $0xa] sm:$0xff]
      %v1721 = vld [vmem:[%s1332 + $0x1a] sm:$0xff]
      %v1722 = vld [vmem:[%s1332 + $0x22] sm:$0xff]
      %v1723 = vld [vmem:[%s1332 + $0x32] sm:$0xff]
      %v1724 = vld [vmem:[%s1332 + $0x3a] sm:$0xff]
      %v1725 = vld [vmem:[%s1332 + $0x4a] sm:$0xff]
      %v1726 = vld [vmem:[%s1332 + $0x52] sm:$0xff]
      %v1727 = vld [vmem:[%s1332 + $0x62] sm:$0xff]
      %v1728 = vld [vmem:[%s1332 + $0x6a] sm:$0xff]
      %v1729 = vld [vmem:[%s1332 + $0x7a] sm:$0xff]
      %v1730 = vld [vmem:[%s1332 + $0x82] sm:$0xff]
      %v1731 = vld [vmem:[%s1332 + $0x92] sm:$0xff]
      %v1732 = vld [vmem:[%s1332 + $0x9a] sm:$0xff]
      %v1733 = vld [vmem:[%s1332 + $0xaa] sm:$0xff]
      %v1734 = vld [vmem:[%s1332 + $0xb2] sm:$0xff]
      %v1735 = vld [vmem:[%s1332 + $0xc2] sm:$0xff]
      %v1736 = vld [vmem:[%s1332 + $0xca] sm:$0xff]
      %v1737 = vld [vmem:[%s1332 + $0xda] sm:$0xff]
      %v1738 = vld [vmem:[%s1332 + $0xe2] sm:$0xff]
      %v1739 = vld [vmem:[%s1332 + $0xf2] sm:$0xff]
      %v1740 = vld [vmem:[%s1332 + $0xfa] sm:$0xff]
      %v1741 = vld [vmem:[%s1332 + $0x10a] sm:$0xff]
      %v1742 = vld [vmem:[%s1332 + $0x112] sm:$0xff]
      %v1743 = vld [vmem:[%s1332 + $0x122] sm:$0xff]
      %v1744 = vld [vmem:[%s1332 + $0x12a] sm:$0xff]
      %v1745 = vld [vmem:[%s1332 + $0x13a] sm:$0xff]
      %v1746 = vld [vmem:[%s1332 + $0x142] sm:$0xff]
      %v1747 = vld [vmem:[%s1332 + $0x152] sm:$0xff]
      %v1748 = vld [vmem:[%s1332 + $0x15a] sm:$0xff]
      %v1749 = vld [vmem:[%s1332 + $0x16a] sm:$0xff]
      %v1750 = vld [vmem:[%s1332 + $0x172] sm:$0xff]
      %1783 = vrot.lane.b32.xlu0 %v1719, 32
      %v1784 = vpop.permute.xlu0 %1783
      %1785 = vrot.lane.b32.xlu0 %v1720, 32
      %v1786 = vpop.permute.xlu0 %1785
      %1787 = vrot.lane.b32.xlu0 %v1721, 32
      %v1788 = vpop.permute.xlu0 %1787
      %1789 = vrot.lane.b32.xlu0 %v1722, 32
      %v1790 = vpop.permute.xlu0 %1789
      %1791 = vrot.lane.b32.xlu0 %v1723, 32
      %v1792 = vpop.permute.xlu0 %1791
      %1793 = vrot.lane.b32.xlu0 %v1724, 32
      %v1794 = vpop.permute.xlu0 %1793
      %1795 = vrot.lane.b32.xlu0 %v1725, 32
      %v1796 = vpop.permute.xlu0 %1795
      %1797 = vrot.lane.b32.xlu0 %v1726, 32
      %v1798 = vpop.permute.xlu0 %1797
      %1799 = vrot.lane.b32.xlu0 %v1727, 32
      %v1800 = vpop.permute.xlu0 %1799
      %1801 = vrot.lane.b32.xlu0 %v1728, 32
      %v1802 = vpop.permute.xlu0 %1801
      %1803 = vrot.lane.b32.xlu0 %v1729, 32
      %v1804 = vpop.permute.xlu0 %1803
      %1805 = vrot.lane.b32.xlu0 %v1730, 32
      %v1806 = vpop.permute.xlu0 %1805
      %1807 = vrot.lane.b32.xlu0 %v1731, 32
      %v1808 = vpop.permute.xlu0 %1807
      %1809 = vrot.lane.b32.xlu0 %v1732, 32
      %v1810 = vpop.permute.xlu0 %1809
      %1811 = vrot.lane.b32.xlu0 %v1733, 32
      %v1812 = vpop.permute.xlu0 %1811
      %1813 = vrot.lane.b32.xlu0 %v1734, 32
      %v1814 = vpop.permute.xlu0 %1813
      %1815 = vrot.lane.b32.xlu0 %v1735, 32
      %v1816 = vpop.permute.xlu0 %1815
      %1817 = vrot.lane.b32.xlu0 %v1736, 32
      %v1818 = vpop.permute.xlu0 %1817
      %1819 = vrot.lane.b32.xlu0 %v1737, 32
      %v1820 = vpop.permute.xlu0 %1819
      %1821 = vrot.lane.b32.xlu0 %v1738, 32
      %v1822 = vpop.permute.xlu0 %1821
      %1823 = vrot.lane.b32.xlu0 %v1739, 32
      %v1824 = vpop.permute.xlu0 %1823
      %1825 = vrot.lane.b32.xlu0 %v1740, 32
      %v1826 = vpop.permute.xlu0 %1825
      %1827 = vrot.lane.b32.xlu0 %v1741, 32
      %v1828 = vpop.permute.xlu0 %1827
      %1829 = vrot.lane.b32.xlu0 %v1742, 32
      %v1830 = vpop.permute.xlu0 %1829
      %1831 = vrot.lane.b32.xlu0 %v1743, 32
      %v1832 = vpop.permute.xlu0 %1831
      %1833 = vrot.lane.b32.xlu0 %v1744, 32
      %v1834 = vpop.permute.xlu0 %1833
      %1835 = vrot.lane.b32.xlu0 %v1745, 32
      %v1836 = vpop.permute.xlu0 %1835
      %1837 = vrot.lane.b32.xlu0 %v1746, 32
      %v1838 = vpop.permute.xlu0 %1837
      %1839 = vrot.lane.b32.xlu0 %v1747, 32
      %v1840 = vpop.permute.xlu0 %1839
      %1841 = vrot.lane.b32.xlu0 %v1748, 32
      %v1842 = vpop.permute.xlu0 %1841
      %1843 = vrot.lane.b32.xlu0 %v1749, 32
      %v1844 = vpop.permute.xlu0 %1843
      %1845 = vrot.lane.b32.xlu0 %v1750, 32
      %v1846 = vpop.permute.xlu0 %1845
      %vm1879 = vcmask 294144
      %1880 = vst.msk [vmem:[#allocation3] sm:$0xff] %vm1879, %v1784
      %1881 = vst.msk [vmem:[#allocation3 + $0x8] sm:$0xff] %vm1879, %v1786
      %1882 = vst.msk [vmem:[#allocation3 + $0x10] sm:$0xff] %vm1879, %v1788
      %1883 = vst.msk [vmem:[#allocation3 + $0x18] sm:$0xff] %vm1879, %v1790
      %1884 = vst.msk [vmem:[#allocation3 + $0x20] sm:$0xff] %vm1879, %v1792
      %1885 = vst.msk [vmem:[#allocation3 + $0x28] sm:$0xff] %vm1879, %v1794
      %1886 = vst.msk [vmem:[#allocation3 + $0x30] sm:$0xff] %vm1879, %v1796
      %1887 = vst.msk [vmem:[#allocation3 + $0x38] sm:$0xff] %vm1879, %v1798
      %1888 = vst.msk [vmem:[#allocation3 + $0x40] sm:$0xff] %vm1879, %v1800
      %1889 = vst.msk [vmem:[#allocation3 + $0x48] sm:$0xff] %vm1879, %v1802
      %1890 = vst.msk [vmem:[#allocation3 + $0x50] sm:$0xff] %vm1879, %v1804
      %1891 = vst.msk [vmem:[#allocation3 + $0x58] sm:$0xff] %vm1879, %v1806
      %1892 = vst.msk [vmem:[#allocation3 + $0x60] sm:$0xff] %vm1879, %v1808
      %1893 = vst.msk [vmem:[#allocation3 + $0x68] sm:$0xff] %vm1879, %v1810
      %1894 = vst.msk [vmem:[#allocation3 + $0x70] sm:$0xff] %vm1879, %v1812
      %1895 = vst.msk [vmem:[#allocation3 + $0x78] sm:$0xff] %vm1879, %v1814
      %1896 = vst.msk [vmem:[#allocation3 + $0x80] sm:$0xff] %vm1879, %v1816
      %1897 = vst.msk [vmem:[#allocation3 + $0x88] sm:$0xff] %vm1879, %v1818
      %1898 = vst.msk [vmem:[#allocation3 + $0x90] sm:$0xff] %vm1879, %v1820
      %1899 = vst.msk [vmem:[#allocation3 + $0x98] sm:$0xff] %vm1879, %v1822
      %1900 = vst.msk [vmem:[#allocation3 + $0xa0] sm:$0xff] %vm1879, %v1824
      %1901 = vst.msk [vmem:[#allocation3 + $0xa8] sm:$0xff] %vm1879, %v1826
      %1902 = vst.msk [vmem:[#allocation3 + $0xb0] sm:$0xff] %vm1879, %v1828
      %1903 = vst.msk [vmem:[#allocation3 + $0xb8] sm:$0xff] %vm1879, %v1830
      %1904 = vst.msk [vmem:[#allocation3 + $0xc0] sm:$0xff] %vm1879, %v1832
      %1905 = vst.msk [vmem:[#allocation3 + $0xc8] sm:$0xff] %vm1879, %v1834
      %1906 = vst.msk [vmem:[#allocation3 + $0xd0] sm:$0xff] %vm1879, %v1836
      %1907 = vst.msk [vmem:[#allocation3 + $0xd8] sm:$0xff] %vm1879, %v1838
      %1908 = vst.msk [vmem:[#allocation3 + $0xe0] sm:$0xff] %vm1879, %v1840
      %1909 = vst.msk [vmem:[#allocation3 + $0xe8] sm:$0xff] %vm1879, %v1842
      %1910 = vst.msk [vmem:[#allocation3 + $0xf0] sm:$0xff] %vm1879, %v1844
      %1911 = vst.msk [vmem:[#allocation3 + $0xf8] sm:$0xff] %vm1879, %v1846
      %v1912 = vld [vmem:[#allocation3] sm:$0xff]
      %v1913 = vld [vmem:[#allocation3 + $0x8] sm:$0xff]
      %v1914 = vld [vmem:[#allocation3 + $0x10] sm:$0xff]
      %v1915 = vld [vmem:[#allocation3 + $0x18] sm:$0xff]
      %v1916 = vld [vmem:[#allocation3 + $0x20] sm:$0xff]
      %v1917 = vld [vmem:[#allocation3 + $0x28] sm:$0xff]
      %v1918 = vld [vmem:[#allocation3 + $0x30] sm:$0xff]
      %v1919 = vld [vmem:[#allocation3 + $0x38] sm:$0xff]
      %v1920 = vld [vmem:[#allocation3 + $0x40] sm:$0xff]
      %v1921 = vld [vmem:[#allocation3 + $0x48] sm:$0xff]
      %v1922 = vld [vmem:[#allocation3 + $0x50] sm:$0xff]
      %v1923 = vld [vmem:[#allocation3 + $0x58] sm:$0xff]
      %v1924 = vld [vmem:[#allocation3 + $0x60] sm:$0xff]
      %v1925 = vld [vmem:[#allocation3 + $0x68] sm:$0xff]
      %v1926 = vld [vmem:[#allocation3 + $0x70] sm:$0xff]
      %v1927 = vld [vmem:[#allocation3 + $0x78] sm:$0xff]
      %v1928 = vld [vmem:[#allocation3 + $0x80] sm:$0xff]
      %v1929 = vld [vmem:[#allocation3 + $0x88] sm:$0xff]
      %v1930 = vld [vmem:[#allocation3 + $0x90] sm:$0xff]
      %v1931 = vld [vmem:[#allocation3 + $0x98] sm:$0xff]
      %v1932 = vld [vmem:[#allocation3 + $0xa0] sm:$0xff]
      %v1933 = vld [vmem:[#allocation3 + $0xa8] sm:$0xff]
      %v1934 = vld [vmem:[#allocation3 + $0xb0] sm:$0xff]
      %v1935 = vld [vmem:[#allocation3 + $0xb8] sm:$0xff]
      %v1936 = vld [vmem:[#allocation3 + $0xc0] sm:$0xff]
      %v1937 = vld [vmem:[#allocation3 + $0xc8] sm:$0xff]
      %v1938 = vld [vmem:[#allocation3 + $0xd0] sm:$0xff]
      %v1939 = vld [vmem:[#allocation3 + $0xd8] sm:$0xff]
      %v1940 = vld [vmem:[#allocation3 + $0xe0] sm:$0xff]
      %v1941 = vld [vmem:[#allocation3 + $0xe8] sm:$0xff]
      %v1942 = vld [vmem:[#allocation3 + $0xf0] sm:$0xff]
      %v1943 = vld [vmem:[#allocation3 + $0xf8] sm:$0xff]
      %v1944 = vld [vmem:[%s1] sm:$0xff]
      %v1945 = vld [vmem:[%s1 + $0x8] sm:$0xff]
      %v1946 = vld [vmem:[%s1 + $0x10] sm:$0xff]
      %v1947 = vld [vmem:[%s1 + $0x18] sm:$0xff]
      %v1948 = vld [vmem:[%s1 + $0x20] sm:$0xf]
      %vm1949 = vcmask 293888
      %v1951 = vsel %vm1949, %v1912, 0
      %v1954 = vsel %vm1949, %v1913, 0
      %v1957 = vsel %vm1949, %v1914, 0
      %v1960 = vsel %vm1949, %v1915, 0
      %v1963 = vsel %vm1949, %v1916, 0
      %v1966 = vsel %vm1949, %v1917, 0
      %v1969 = vsel %vm1949, %v1918, 0
      %v1972 = vsel %vm1949, %v1919, 0
      %v1975 = vsel %vm1949, %v1920, 0
      %v1978 = vsel %vm1949, %v1921, 0
      %v1981 = vsel %vm1949, %v1922, 0
      %v1984 = vsel %vm1949, %v1923, 0
      %v1987 = vsel %vm1949, %v1924, 0
      %v1990 = vsel %vm1949, %v1925, 0
      %v1993 = vsel %vm1949, %v1926, 0
      %v1996 = vsel %vm1949, %v1927, 0
      %v1999 = vsel %vm1949, %v1928, 0
      %v2002 = vsel %vm1949, %v1929, 0
      %v2005 = vsel %vm1949, %v1930, 0
      %v2008 = vsel %vm1949, %v1931, 0
      %v2011 = vsel %vm1949, %v1932, 0
      %v2014 = vsel %vm1949, %v1933, 0
      %v2017 = vsel %vm1949, %v1934, 0
      %v2020 = vsel %vm1949, %v1935, 0
      %v2023 = vsel %vm1949, %v1936, 0
      %v2026 = vsel %vm1949, %v1937, 0
      %v2029 = vsel %vm1949, %v1938, 0
      %v2032 = vsel %vm1949, %v1939, 0
      %v2035 = vsel %vm1949, %v1940, 0
      %v2038 = vsel %vm1949, %v1941, 0
      %v2041 = vsel %vm1949, %v1942, 0
      %v2044 = vsel %vm1949, %v1943, 0
      %vm2046 = vcmask 1043456
      %v2048 = vsel %vm2046, %v1948, 0
      %2050 = vmatpush.msra.mxu0 0.0
      %2051 = vmatpush.msra.mxu0 0.0
      %2052 = vmatpush.msra.mxu0 0.0
      %2053 = vmatpush.msra.mxu0 0.0
      %2054 = vmatpush.msra.mxu0 0.0
      %2055 = vmatpush.msra.mxu0 0.0
      %2056 = vmatpush.msra.mxu0 0.0
      %2057 = vmatpush.msra.mxu0 0.0
      %2058 = vmatpush.msra.mxu0 0.0
      %2059 = vmatpush.msra.mxu0 0.0
      %2060 = vmatpush.msra.mxu0 0.0
      %2061 = vmatpush.msra.mxu0 %v2048
      %2062 = vmatpush.msra.mxu0 %v1947
      %2063 = vmatpush.msra.mxu0 %v1946
      %2064 = vmatpush.msra.mxu0 %v1945
      %2065 = vmatpush.msra.mxu0 %v1944
      %2066 = vmatmul.f32.gmra.mxu0 %v1951
      %v2067 = vpop.f32.mrf.mxu0
      %v2068 = vadd.f32 0.0, %v2067
      %2069 = vmatmul.f32.gmra.mxu0 %v1954
      %v2070 = vpop.f32.mrf.mxu0
      %v2071 = vadd.f32 0.0, %v2070
      %2072 = vmatmul.f32.gmra.mxu0 %v1957
      %v2073 = vpop.f32.mrf.mxu0
      %v2074 = vadd.f32 0.0, %v2073
      %2075 = vmatmul.f32.gmra.mxu0 %v1960
      %v2076 = vpop.f32.mrf.mxu0
      %v2077 = vadd.f32 0.0, %v2076
      %2078 = vmatmul.f32.gmra.mxu0 %v1963
      %v2079 = vpop.f32.mrf.mxu0
      %v2080 = vadd.f32 0.0, %v2079
      %2081 = vmatmul.f32.gmra.mxu0 %v1966
      %v2082 = vpop.f32.mrf.mxu0
      %v2083 = vadd.f32 0.0, %v2082
      %2084 = vmatmul.f32.gmra.mxu0 %v1969
      %v2085 = vpop.f32.mrf.mxu0
      %v2086 = vadd.f32 0.0, %v2085
      %2087 = vmatmul.f32.gmra.mxu0 %v1972
      %v2088 = vpop.f32.mrf.mxu0
      %v2089 = vadd.f32 0.0, %v2088
      %2090 = vmatmul.f32.gmra.mxu0 %v1975
      %v2091 = vpop.f32.mrf.mxu0
      %v2092 = vadd.f32 0.0, %v2091
      %2093 = vmatmul.f32.gmra.mxu0 %v1978
      %v2094 = vpop.f32.mrf.mxu0
      %v2095 = vadd.f32 0.0, %v2094
      %2096 = vmatmul.f32.gmra.mxu0 %v1981
      %v2097 = vpop.f32.mrf.mxu0
      %v2098 = vadd.f32 0.0, %v2097
      %2099 = vmatmul.f32.gmra.mxu0 %v1984
      %v2100 = vpop.f32.mrf.mxu0
      %v2101 = vadd.f32 0.0, %v2100
      %2102 = vmatmul.f32.gmra.mxu0 %v1987
      %v2103 = vpop.f32.mrf.mxu0
      %v2104 = vadd.f32 0.0, %v2103
      %2105 = vmatmul.f32.gmra.mxu0 %v1990
      %v2106 = vpop.f32.mrf.mxu0
      %v2107 = vadd.f32 0.0, %v2106
      %2108 = vmatmul.f32.gmra.mxu0 %v1993
      %v2109 = vpop.f32.mrf.mxu0
      %v2110 = vadd.f32 0.0, %v2109
      %2111 = vmatmul.f32.gmra.mxu0 %v1996
      %v2112 = vpop.f32.mrf.mxu0
      %v2113 = vadd.f32 0.0, %v2112
      %2114 = vmatmul.f32.gmra.mxu0 %v1999
      %v2115 = vpop.f32.mrf.mxu0
      %v2116 = vadd.f32 0.0, %v2115
      %2117 = vmatmul.f32.gmra.mxu0 %v2002
      %v2118 = vpop.f32.mrf.mxu0
      %v2119 = vadd.f32 0.0, %v2118
      %2120 = vmatmul.f32.gmra.mxu0 %v2005
      %v2121 = vpop.f32.mrf.mxu0
      %v2122 = vadd.f32 0.0, %v2121
      %2123 = vmatmul.f32.gmra.mxu0 %v2008
      %v2124 = vpop.f32.mrf.mxu0
      %v2125 = vadd.f32 0.0, %v2124
      %2126 = vmatmul.f32.gmra.mxu0 %v2011
      %v2127 = vpop.f32.mrf.mxu0
      %v2128 = vadd.f32 0.0, %v2127
      %2129 = vmatmul.f32.gmra.mxu0 %v2014
      %v2130 = vpop.f32.mrf.mxu0
      %v2131 = vadd.f32 0.0, %v2130
      %2132 = vmatmul.f32.gmra.mxu0 %v2017
      %v2133 = vpop.f32.mrf.mxu0
      %v2134 = vadd.f32 0.0, %v2133
      %2135 = vmatmul.f32.gmra.mxu0 %v2020
      %v2136 = vpop.f32.mrf.mxu0
      %v2137 = vadd.f32 0.0, %v2136
      %2138 = vmatmul.f32.gmra.mxu0 %v2023
      %v2139 = vpop.f32.mrf.mxu0
      %v2140 = vadd.f32 0.0, %v2139
      %2141 = vmatmul.f32.gmra.mxu0 %v2026
      %v2142 = vpop.f32.mrf.mxu0
      %v2143 = vadd.f32 0.0, %v2142
      %2144 = vmatmul.f32.gmra.mxu0 %v2029
      %v2145 = vpop.f32.mrf.mxu0
      %v2146 = vadd.f32 0.0, %v2145
      %2147 = vmatmul.f32.gmra.mxu0 %v2032
      %v2148 = vpop.f32.mrf.mxu0
      %v2149 = vadd.f32 0.0, %v2148
      %2150 = vmatmul.f32.gmra.mxu0 %v2035
      %v2151 = vpop.f32.mrf.mxu0
      %v2152 = vadd.f32 0.0, %v2151
      %2153 = vmatmul.f32.gmra.mxu0 %v2038
      %v2154 = vpop.f32.mrf.mxu0
      %v2155 = vadd.f32 0.0, %v2154
      %2156 = vmatmul.f32.gmra.mxu0 %v2041
      %v2157 = vpop.f32.mrf.mxu0
      %v2158 = vadd.f32 0.0, %v2157
      %2159 = vmatmul.f32.gmra.mxu0 %v2044
      %v2160 = vpop.f32.mrf.mxu0
      %v2161 = vadd.f32 0.0, %v2160
      %2162 = vdwg.mxu0
      %vm2163 = vcmask 64512
      %v2164 = vsel %vm2163, %v2068, 0.0
      %v2165 = vsel %vm2163, %v2071, 0.0
      %v2166 = vadd.f32 %v2164, %v2165
      %v2167 = vsel %vm2163, %v2074, 0.0
      %v2168 = vadd.f32 %v2166, %v2167
      %v2169 = vsel %vm2163, %v2077, 0.0
      %v2170 = vadd.f32 %v2168, %v2169
      %v2171 = vsel %vm2163, %v2080, 0.0
      %v2172 = vadd.f32 %v2170, %v2171
      %v2173 = vsel %vm2163, %v2083, 0.0
      %v2174 = vadd.f32 %v2172, %v2173
      %v2175 = vsel %vm2163, %v2086, 0.0
      %v2176 = vadd.f32 %v2174, %v2175
      %v2177 = vsel %vm2163, %v2089, 0.0
      %v2178 = vadd.f32 %v2176, %v2177
      %v2179 = vsel %vm2163, %v2092, 0.0
      %v2180 = vadd.f32 %v2178, %v2179
      %v2181 = vsel %vm2163, %v2095, 0.0
      %v2182 = vadd.f32 %v2180, %v2181
      %v2183 = vsel %vm2163, %v2098, 0.0
      %v2184 = vadd.f32 %v2182, %v2183
      %v2185 = vsel %vm2163, %v2101, 0.0
      %v2186 = vadd.f32 %v2184, %v2185
      %v2187 = vsel %vm2163, %v2104, 0.0
      %v2188 = vadd.f32 %v2186, %v2187
      %v2189 = vsel %vm2163, %v2107, 0.0
      %v2190 = vadd.f32 %v2188, %v2189
      %v2191 = vsel %vm2163, %v2110, 0.0
      %v2192 = vadd.f32 %v2190, %v2191
      %v2193 = vsel %vm2163, %v2113, 0.0
      %v2194 = vadd.f32 %v2192, %v2193
      %v2195 = vsel %vm2163, %v2116, 0.0
      %v2196 = vadd.f32 %v2194, %v2195
      %v2197 = vsel %vm2163, %v2119, 0.0
      %v2198 = vadd.f32 %v2196, %v2197
      %v2199 = vsel %vm2163, %v2122, 0.0
      %v2200 = vadd.f32 %v2198, %v2199
      %v2201 = vsel %vm2163, %v2125, 0.0
      %v2202 = vadd.f32 %v2200, %v2201
      %v2203 = vsel %vm2163, %v2128, 0.0
      %v2204 = vadd.f32 %v2202, %v2203
      %v2205 = vsel %vm2163, %v2131, 0.0
      %v2206 = vadd.f32 %v2204, %v2205
      %v2207 = vsel %vm2163, %v2134, 0.0
      %v2208 = vadd.f32 %v2206, %v2207
      %v2209 = vsel %vm2163, %v2137, 0.0
      %v2210 = vadd.f32 %v2208, %v2209
      %v2211 = vsel %vm2163, %v2140, 0.0
      %v2212 = vadd.f32 %v2210, %v2211
      %v2213 = vsel %vm2163, %v2143, 0.0
      %v2214 = vadd.f32 %v2212, %v2213
      %v2215 = vsel %vm2163, %v2146, 0.0
      %v2216 = vadd.f32 %v2214, %v2215
      %v2217 = vsel %vm2163, %v2149, 0.0
      %v2218 = vadd.f32 %v2216, %v2217
      %v2219 = vsel %vm2163, %v2152, 0.0
      %v2220 = vadd.f32 %v2218, %v2219
      %v2221 = vsel %vm2163, %v2155, 0.0
      %v2222 = vadd.f32 %v2220, %v2221
      %v2223 = vsel %vm2163, %v2158, 0.0
      %v2224 = vadd.f32 %v2222, %v2223
      %v2225 = vsel %vm2163, %v2161, 0.0
      %v2226 = vadd.f32 %v2224, %v2225
      %v2227 = vrot.slane %v2226, 4
      %v2228 = vadd.f32 %v2226, %v2227
      %v2229 = vrot.slane %v2228, 2
      %v2230 = vadd.f32 %v2228, %v2229
      %v2231 = vrot.slane %v2230, 1
      %v2232 = vadd.f32 %v2230, %v2231
      %v2233 = vmul.f32 %v2068, %v2068
      %v2234 = vmul.f32 %v2071, %v2071
      %v2235 = vmul.f32 %v2074, %v2074
      %v2236 = vmul.f32 %v2077, %v2077
      %v2237 = vmul.f32 %v2080, %v2080
      %v2238 = vmul.f32 %v2083, %v2083
      %v2239 = vmul.f32 %v2086, %v2086
      %v2240 = vmul.f32 %v2089, %v2089
      %v2241 = vmul.f32 %v2092, %v2092
      %v2242 = vmul.f32 %v2095, %v2095
      %v2243 = vmul.f32 %v2098, %v2098
      %v2244 = vmul.f32 %v2101, %v2101
      %v2245 = vmul.f32 %v2104, %v2104
      %v2246 = vmul.f32 %v2107, %v2107
      %v2247 = vmul.f32 %v2110, %v2110
      %v2248 = vmul.f32 %v2113, %v2113
      %v2249 = vmul.f32 %v2116, %v2116
      %v2250 = vmul.f32 %v2119, %v2119
      %v2251 = vmul.f32 %v2122, %v2122
      %v2252 = vmul.f32 %v2125, %v2125
      %v2253 = vmul.f32 %v2128, %v2128
      %v2254 = vmul.f32 %v2131, %v2131
      %v2255 = vmul.f32 %v2134, %v2134
      %v2256 = vmul.f32 %v2137, %v2137
      %v2257 = vmul.f32 %v2140, %v2140
      %v2258 = vmul.f32 %v2143, %v2143
      %v2259 = vmul.f32 %v2146, %v2146
      %v2260 = vmul.f32 %v2149, %v2149
      %v2261 = vmul.f32 %v2152, %v2152
      %v2262 = vmul.f32 %v2155, %v2155
      %v2263 = vmul.f32 %v2158, %v2158
      %v2264 = vmul.f32 %v2161, %v2161
      %v2265 = vsel %vm2163, %v2233, 0.0
      %v2266 = vsel %vm2163, %v2234, 0.0
      %v2267 = vadd.f32 %v2265, %v2266
      %v2268 = vsel %vm2163, %v2235, 0.0
      %v2269 = vadd.f32 %v2267, %v2268
      %v2270 = vsel %vm2163, %v2236, 0.0
      %v2271 = vadd.f32 %v2269, %v2270
      %v2272 = vsel %vm2163, %v2237, 0.0
      %v2273 = vadd.f32 %v2271, %v2272
      %v2274 = vsel %vm2163, %v2238, 0.0
      %v2275 = vadd.f32 %v2273, %v2274
      %v2276 = vsel %vm2163, %v2239, 0.0
      %v2277 = vadd.f32 %v2275, %v2276
      %v2278 = vsel %vm2163, %v2240, 0.0
      %v2279 = vadd.f32 %v2277, %v2278
      %v2280 = vsel %vm2163, %v2241, 0.0
      %v2281 = vadd.f32 %v2279, %v2280
      %v2282 = vsel %vm2163, %v2242, 0.0
      %v2283 = vadd.f32 %v2281, %v2282
      %v2284 = vsel %vm2163, %v2243, 0.0
      %v2285 = vadd.f32 %v2283, %v2284
      %v2286 = vsel %vm2163, %v2244, 0.0
      %v2287 = vadd.f32 %v2285, %v2286
      %v2288 = vsel %vm2163, %v2245, 0.0
      %v2289 = vadd.f32 %v2287, %v2288
      %v2290 = vsel %vm2163, %v2246, 0.0
      %v2291 = vadd.f32 %v2289, %v2290
      %v2292 = vsel %vm2163, %v2247, 0.0
      %v2293 = vadd.f32 %v2291, %v2292
      %v2294 = vsel %vm2163, %v2248, 0.0
      %v2295 = vadd.f32 %v2293, %v2294
      %v2296 = vsel %vm2163, %v2249, 0.0
      %v2297 = vadd.f32 %v2295, %v2296
      %v2298 = vsel %vm2163, %v2250, 0.0
      %v2299 = vadd.f32 %v2297, %v2298
      %v2300 = vsel %vm2163, %v2251, 0.0
      %v2301 = vadd.f32 %v2299, %v2300
      %v2302 = vsel %vm2163, %v2252, 0.0
      %v2303 = vadd.f32 %v2301, %v2302
      %v2304 = vsel %vm2163, %v2253, 0.0
      %v2305 = vadd.f32 %v2303, %v2304
      %v2306 = vsel %vm2163, %v2254, 0.0
      %v2307 = vadd.f32 %v2305, %v2306
      %v2308 = vsel %vm2163, %v2255, 0.0
      %v2309 = vadd.f32 %v2307, %v2308
      %v2310 = vsel %vm2163, %v2256, 0.0
      %v2311 = vadd.f32 %v2309, %v2310
      %v2312 = vsel %vm2163, %v2257, 0.0
      %v2313 = vadd.f32 %v2311, %v2312
      %v2314 = vsel %vm2163, %v2258, 0.0
      %v2315 = vadd.f32 %v2313, %v2314
      %v2316 = vsel %vm2163, %v2259, 0.0
      %v2317 = vadd.f32 %v2315, %v2316
      %v2318 = vsel %vm2163, %v2260, 0.0
      %v2319 = vadd.f32 %v2317, %v2318
      %v2320 = vsel %vm2163, %v2261, 0.0
      %v2321 = vadd.f32 %v2319, %v2320
      %v2322 = vsel %vm2163, %v2262, 0.0
      %v2323 = vadd.f32 %v2321, %v2322
      %v2324 = vsel %vm2163, %v2263, 0.0
      %v2325 = vadd.f32 %v2323, %v2324
      %v2326 = vsel %vm2163, %v2264, 0.0
      %v2327 = vadd.f32 %v2325, %v2326
      %v2328 = vrot.slane %v2327, 4
      %v2329 = vadd.f32 %v2327, %v2328
      %v2330 = vrot.slane %v2329, 2
      %v2331 = vadd.f32 %v2329, %v2330
      %v2332 = vrot.slane %v2331, 1
      %v2333 = vadd.f32 %v2331, %v2332
      %vm2334 = vcmask 1040384
      %v2335 = vsel %vm2334, %v2232, %v2333
      %vm2336 = vcmask 58368
      %2337 = vst.msk [vmem:[%s181] sm:$0x3] %vm2336, %v2335
      %2338 = vst.msk [vmem:[%s177] sm:$0xff] %vm2163, %v2068
      %2339 = vst.msk [vmem:[%s177 + $0x8] sm:$0xff] %vm2163, %v2071
      %2340 = vst.msk [vmem:[%s177 + $0x10] sm:$0xff] %vm2163, %v2074
      %2341 = vst.msk [vmem:[%s177 + $0x18] sm:$0xff] %vm2163, %v2077
      %2342 = vst.msk [vmem:[%s177 + $0x20] sm:$0xff] %vm2163, %v2080
      %2343 = vst.msk [vmem:[%s177 + $0x28] sm:$0xff] %vm2163, %v2083
      %2344 = vst.msk [vmem:[%s177 + $0x30] sm:$0xff] %vm2163, %v2086
      %2345 = vst.msk [vmem:[%s177 + $0x38] sm:$0xff] %vm2163, %v2089
      %2346 = vst.msk [vmem:[%s177 + $0x40] sm:$0xff] %vm2163, %v2092
      %2347 = vst.msk [vmem:[%s177 + $0x48] sm:$0xff] %vm2163, %v2095
      %2348 = vst.msk [vmem:[%s177 + $0x50] sm:$0xff] %vm2163, %v2098
      %2349 = vst.msk [vmem:[%s177 + $0x58] sm:$0xff] %vm2163, %v2101
      %2350 = vst.msk [vmem:[%s177 + $0x60] sm:$0xff] %vm2163, %v2104
      %2351 = vst.msk [vmem:[%s177 + $0x68] sm:$0xff] %vm2163, %v2107
      %2352 = vst.msk [vmem:[%s177 + $0x70] sm:$0xff] %vm2163, %v2110
      %2353 = vst.msk [vmem:[%s177 + $0x78] sm:$0xff] %vm2163, %v2113
      %2354 = vst.msk [vmem:[%s177 + $0x80] sm:$0xff] %vm2163, %v2116
      %2355 = vst.msk [vmem:[%s177 + $0x88] sm:$0xff] %vm2163, %v2119
      %2356 = vst.msk [vmem:[%s177 + $0x90] sm:$0xff] %vm2163, %v2122
      %2357 = vst.msk [vmem:[%s177 + $0x98] sm:$0xff] %vm2163, %v2125
      %2358 = vst.msk [vmem:[%s177 + $0xa0] sm:$0xff] %vm2163, %v2128
      %2359 = vst.msk [vmem:[%s177 + $0xa8] sm:$0xff] %vm2163, %v2131
      %2360 = vst.msk [vmem:[%s177 + $0xb0] sm:$0xff] %vm2163, %v2134
      %2361 = vst.msk [vmem:[%s177 + $0xb8] sm:$0xff] %vm2163, %v2137
      %2362 = vst.msk [vmem:[%s177 + $0xc0] sm:$0xff] %vm2163, %v2140
      %2363 = vst.msk [vmem:[%s177 + $0xc8] sm:$0xff] %vm2163, %v2143
      %2364 = vst.msk [vmem:[%s177 + $0xd0] sm:$0xff] %vm2163, %v2146
      %2365 = vst.msk [vmem:[%s177 + $0xd8] sm:$0xff] %vm2163, %v2149
      %2366 = vst.msk [vmem:[%s177 + $0xe0] sm:$0xff] %vm2163, %v2152
      %2367 = vst.msk [vmem:[%s177 + $0xe8] sm:$0xff] %vm2163, %v2155
      %2368 = vst.msk [vmem:[%s177 + $0xf0] sm:$0xff] %vm2163, %v2158
      %2369 = vst.msk [vmem:[%s177 + $0xf8] sm:$0xff] %vm2163, %v2161
      %p2370 = scmp.lt.s32.totalorder %s15, 1
      %s2371 = scalar_select %p2370, %s15, 1
      %s2372 = smul.addr %s2371, 32
      %s2373 = smul.addr %s2372, 8
      %s2374 = scalar_lea.vmem %s2, %s2373
      %p2375 = scmp.lt.s32.totalorder %s15, 1
      %s2376 = scalar_select %p2375, %s15, 1
      %s2377 = smul.addr %s2376, 2
      %s2378 = scalar_lea.vmem %s3, %s2377
      // Predicated region
      $region29: #{down_forward.2} parent=27 // pred_check
        %p2379 = pneg %p80
      $region30: #{down_forward.2} parent=27 // pred_check_branch
        %2381 = sbr.rel (%p2379) target = $region32
      $region31: #{down_forward.2} parent=27 // pred_region
        _
      $region32: #{down_forward.2} parent=27 // pred_fallthru
        _
      // Predicated region
      $region33: #{down_forward.2} parent=27 // pred_check
        %p2382 = pneg %p106
      $region34: #{down_forward.2} parent=27 // pred_check_branch
        %2384 = sbr.rel (%p2382) target = $region36
      $region35: #{down_forward.2} parent=27 // pred_region
        _
      $region36: #{down_forward.2} parent=27 // pred_fallthru
        _
    $region28: #{down_forward.2} parent=5 // pred_fallthru
      _
    %p2385 = scmp.le.s32.totalorder 2, %s10
    // Predicated region
    $region37: #{down_forward.2} parent=5 // pred_check
      %p2386 = pneg %p2385
    $region38: #{down_forward.2} parent=5 // pred_check_branch
      %2388 = sbr.rel (%p2386) target = $region40
    $region39: #{down_forward.2} parent=5 // pred_region
      %s2389 = ssub.s32 %s10, 2
      // Predicated region
      $region41: #{down_forward.2} parent=39 // pred_check
        %p2390 = pneg %p86
      $region42: #{down_forward.2} parent=39 // pred_check_branch
        %2392 = sbr.rel (%p2390) target = $region44
      $region43: #{down_forward.2} parent=39 // pred_region
        %p2393 = scmp.lt.s32.totalorder %s16, 1
        %s2394 = scalar_select %p2393, %s16, 1
        %s2395 = smul.addr %s2394, 32
        %s2396 = smul.addr %s2395, 8
        %s2397 = scalar_lea.vmem %s2, %s2396
      $region44: #{down_forward.2} parent=39 // pred_fallthru
        _
      // Predicated region
      $region45: #{down_forward.2} parent=39 // pred_check
        %p2398 = pneg %p112
      $region46: #{down_forward.2} parent=39 // pred_check_branch
        %2400 = sbr.rel (%p2398) target = $region48
      $region47: #{down_forward.2} parent=39 // pred_region
        %p2401 = scmp.lt.s32.totalorder %s16, 1
        %s2402 = scalar_select %p2401, %s16, 1
        %s2403 = smul.addr %s2402, 2
        %s2404 = scalar_lea.vmem %s3, %s2403
      $region48: #{down_forward.2} parent=39 // pred_fallthru
        _
    $region40: #{down_forward.2} parent=5 // pred_fallthru
      _
  $region6: #{down_forward.2} parent=0 // loop_footer
    %s14 = sadd.s32 1, %s10
  $region7: #{down_forward.2} parent=0 // loop_footer_branch
    %9 = sbr.rel target = $region3
  $region8: #{down_forward.2} parent=0 // loop_exit
    _

</llo_original>
